<compile_context>
chip_gen: v7x
topology: tpu7x:2x2x1
jax: 0.10.0
libtpu: 0.0.40
codegen_flags: <defaults>
</compile_context>

<pallas_src>
import functools

import jax
import jax.numpy as jnp
from jax.experimental import pallas as pl
from jax.experimental.pallas import tpu as pltpu

A_PAD = 128   # pad the 5-way action dim to a full 128-lane output row


# ------------------------------ Pallas kernel -------------------------------

def actor_fused_kernel(pt_ref, wc_ref, bc_ref, w1_ref, b1_ref,
                       w2_ref, b2_ref, w3_ref, b3_ref, o_ref, conv_scr):
    """One grid step == one image.  Everything stays in VMEM/vregs; only the
    (1, A_PAD) probability row is written back to HBM."""
    c_out, _ = conv_scr.shape          # (Cout, OH*OW)
    h1_dim = b1_ref.shape[-1]

    # Conv2d as an im2col matmul in transposed (Cout, P) layout:
    #   (Cout, Kp) @ (Kp, P)  + bias, ReLU
    conv = jnp.dot(wc_ref[...], pt_ref[0], preferred_element_type=jnp.float32)
    conv_scr[...] = jnp.maximum(conv + bc_ref[...], 0.0)

    # Linear(Cout*P, H1) + ReLU, contracted over (channel, spatial) as Cout
    # small matmuls -> no (Cout,P) -> (1, Cout*P) relayout inside the kernel.
    acc = jnp.zeros((1, h1_dim), dtype=jnp.float32)
    for c in range(c_out):
        acc = acc + jnp.dot(conv_scr[c:c + 1, :], w1_ref[c],
                            preferred_element_type=jnp.float32)
    h1 = jnp.maximum(acc + b1_ref[...], 0.0)

    # Linear(H1, H2) + ReLU
    h2 = jnp.dot(h1, w2_ref[...], preferred_element_type=jnp.float32)
    h2 = jnp.maximum(h2 + b2_ref[...], 0.0)

    # Linear(H2, A_PAD) + softmax.  Padded action lanes carry a -1e30 bias,
    # so exp() underflows to 0 there and the softmax equals the 5-way softmax.
    logits = jnp.dot(h2, w3_ref[...], preferred_element_type=jnp.float32)
    logits = logits + b3_ref[...]
    m = jnp.max(logits, axis=-1, keepdims=True)
    e = jnp.exp(logits - m)
    denom = jnp.sum(e, axis=-1, keepdims=True)
    o_ref[0] = e * pl.reciprocal(denom, approx=True)


# --------------------------- parameter relayout ------------------------------

def prepare_params(wc, bc, w1, b1, w2, b2, w3, b3):
    """One-time relayout of PyTorch-convention parameters into kernel layouts.
    Hoisted out of the per-forward hot path (these transposes are pure HBM
    traffic; the w1 permutation alone moves more bytes than the kernel)."""
    Cout, Cin, KH, KW = wc.shape
    K = Cin * KH * KW
    Kp = ((K + 127) // 128) * 128
    H1 = w1.shape[0]
    H2 = w2.shape[0]
    A = w3.shape[0]
    P = w1.shape[1] // Cout            # conv output spatial positions (OH*OW)

    wc_t = jnp.pad(wc.reshape(Cout, K), ((0, 0), (0, Kp - K)))     # (Cout, Kp)
    bc_k = bc.reshape(Cout, 1)

    # PyTorch Flatten is channel-major: flat[:, c*P + s].  The kernel computes
    # h1 = sum_c conv_t[c, :] @ w1_k[c], so w1_k[c] = w1[:, c*P:(c+1)*P].T
    w1_k = w1.reshape(H1, Cout, P).transpose(1, 2, 0)              # (Cout, P, H1)
    b1_k = b1.reshape(1, H1)
    w2_k = w2.T                                                    # (H1, H2)
    b2_k = b2.reshape(1, H2)
    w3_k = jnp.pad(w3.T, ((0, 0), (0, A_PAD - A)))                 # (H2, A_PAD)
    b3_k = jnp.concatenate(
        [b3, jnp.full((A_PAD - A,), -1e30, b3.dtype)]).reshape(1, A_PAD)

    return dict(wc_t=wc_t, bc=bc_k, w1=w1_k, b1=b1_k,
                w2=w2_k, b2=b2_k, w3=w3_k, b3=b3_k)


# ------------------------------ fused forward --------------------------------

@functools.partial(jax.jit, static_argnames=("num_actions", "kernel_size"))
def actor_net_forward(x, params, *, num_actions, kernel_size):
    """x: (N, Cin, H, W) float32; params from prepare_params().
    Returns softmax probabilities (N, num_actions) — the Categorical probs."""
    N, Cin, H, W = x.shape
    KH, KW = kernel_size
    OH, OW = H - KH + 1, W - KW + 1
    P = OH * OW
    K = Cin * KH * KW

    wc_t = params["wc_t"]
    Cout, Kp = wc_t.shape
    H1 = params["b1"].shape[-1]
    H2 = params["b2"].shape[-1]
    A_pad = params["b3"].shape[-1]

    # im2col into the kernel's transposed patch layout (N, Kp, P), k=(cin,kh,kw).
    # XLA glue on the 8 KB input; conv/MLP math all happens in the fused kernel.
    patches = jnp.stack(
        [x[:, :, kh:kh + OH, kw:kw + OW]
         for kh in range(KH) for kw in range(KW)], axis=2)   # (N, Cin, KH*KW, OH, OW)
    patches = patches.reshape(N, K, P)
    patches = jnp.pad(patches, ((0, 0), (0, Kp - K), (0, 0)))       # (N, Kp, P)

    out = pl.pallas_call(
        actor_fused_kernel,
        out_shape=jax.ShapeDtypeStruct((N, 1, A_pad), jnp.float32),
        grid=(N,),
        in_specs=[
            pl.BlockSpec((1, Kp, P), lambda n: (n, 0, 0)),      # patches (per image)
            pl.BlockSpec((Cout, Kp), lambda n: (0, 0)),         # conv weight
            pl.BlockSpec((Cout, 1), lambda n: (0, 0)),          # conv bias
            pl.BlockSpec((Cout, P, H1), lambda n: (0, 0, 0)),   # w1 (permuted)
            pl.BlockSpec((1, H1), lambda n: (0, 0)),            # b1
            pl.BlockSpec((H1, H2), lambda n: (0, 0)),           # w2
            pl.BlockSpec((1, H2), lambda n: (0, 0)),            # b2
            pl.BlockSpec((H2, A_pad), lambda n: (0, 0)),        # w3 (lane-padded)
            pl.BlockSpec((1, A_pad), lambda n: (0, 0)),         # b3 (lane-padded)
        ],
        out_specs=pl.BlockSpec((1, 1, A_pad), lambda n: (n, 0, 0)),
        scratch_shapes=[pltpu.VMEM((Cout, P), jnp.float32)],     # conv result
        compiler_params=pltpu.CompilerParams(
            dimension_semantics=("parallel",)),                  # v7x: 2 TCs
    )(patches, wc_t, params["bc"], params["w1"], params["b1"],
      params["w2"], params["b2"], params["w3"], params["b3"])

    # TODO(synk): torch.distributions.Categorical has no Pallas equivalent;
    # we return the softmax probabilities that parameterize it.
    return out.reshape(N, A_pad)[:, :num_actions]


# ---------------------------- pure-JAX reference -----------------------------

def reference(x, wc, bc, w1, b1, w2, b2, w3, b3):
    y = jax.lax.conv_general_dilated(
        x, wc, window_strides=(1, 1), padding='VALID',
        dimension_numbers=('NCHW', 'OIHW', 'NCHW'))
    y = jnp.maximum(y + bc[None, :, None, None], 0.0)
    flat = y.reshape(x.shape[0], -1)
    h1 = jnp.maximum(flat @ w1.T + b1, 0.0)
    h2 = jnp.maximum(h1 @ w2.T + b2, 0.0)
    logits = h2 @ w3.T + b3
    return jax.nn.softmax(logits, axis=-1)


# ---------------------------------- main -------------------------------------

if __name__ == "__main__":
    N, Cin, H, W = 2, 4, 16, 16            # small shapes (module implies 128x128)
    Cout, KH, KW = 32, 5, 5
    OH, OW = H - KH + 1, W - KW + 1
    F = Cout * OH * OW
    H1, H2, A = 128, 128, 5

    key = jax.random.PRNGKey(0)
    ks = jax.random.split(key, 9)
    scale = 0.05
    wc = jax.random.normal(ks[0], (Cout, Cin, KH, KW), jnp.float32) * scale
    bc = jax.random.normal(ks[1], (Cout,), jnp.float32) * scale
    w1 = jax.random.normal(ks[2], (H1, F), jnp.float32) * scale
    b1 = jax.random.normal(ks[3], (H1,), jnp.float32) * scale
    w2 = jax.random.normal(ks[4], (H2, H1), jnp.float32) * scale
    b2 = jax.random.normal(ks[5], (H2,), jnp.float32) * scale
    w3 = jax.random.normal(ks[6], (A, H2), jnp.float32) * scale
    b3 = jax.random.normal(ks[7], (A,), jnp.float32) * scale
    x = jax.random.normal(ks[8], (N, Cin, H, W), jnp.float32)

    # One-time weight relayout (hoisted out of the forward hot path).
    params = jax.tree_util.tree_map(
        jax.block_until_ready, prepare_params(wc, bc, w1, b1, w2, b2, w3, b3))

    probs = actor_net_forward(x, params, num_actions=A, kernel_size=(KH, KW))
    probs = jax.block_until_ready(probs)

    ref = jax.block_until_ready(reference(x, wc, bc, w1, b1, w2, b2, w3, b3))
    err = float(jnp.max(jnp.abs(probs - ref)))
    if err > 5e-3:
        raise AssertionError(f"Pallas output mismatch, max abs err = {err}")

    print("KERNEL_OK")
</pallas_src>

<mosaic_0001>
module attributes {stable_mosaic.version = 11 : i64} {
  func.func @actor_fused_kernel(%arg0: i32, %arg1: memref<1x128x144xf32, #tpu.memory_space<vmem>>, %arg2: memref<32x128xf32, #tpu.memory_space<vmem>>, %arg3: memref<32x1xf32, #tpu.memory_space<vmem>>, %arg4: memref<32x144x128xf32, #tpu.memory_space<vmem>>, %arg5: memref<1x128xf32, #tpu.memory_space<vmem>>, %arg6: memref<128x128xf32, #tpu.memory_space<vmem>>, %arg7: memref<1x128xf32, #tpu.memory_space<vmem>>, %arg8: memref<128x128xf32, #tpu.memory_space<vmem>>, %arg9: memref<1x128xf32, #tpu.memory_space<vmem>>, %arg10: memref<1x1x128xf32, #tpu.memory_space<vmem>>, %arg11: memref<32x144xf32, #tpu.memory_space<vmem>>) attributes {dimension_semantics = [#tpu.dimension_semantics<parallel>], iteration_bounds = array<i64: 2>, scalar_prefetch = 0 : i64, scratch_operands = 1 : i64, tpu.core_type = #tpu.core_type<tc>, window_params = [{transform_indices = @transform_0, window_bounds = array<i64: 1, 128, 144>}, {pipeline_mode = #tpu.pipeline_mode<synchronous>, transform_indices = @transform_1, window_bounds = array<i64: 32, 128>}, {pipeline_mode = #tpu.pipeline_mode<synchronous>, transform_indices = @transform_2, window_bounds = array<i64: 32, 1>}, {pipeline_mode = #tpu.pipeline_mode<synchronous>, transform_indices = @transform_3, window_bounds = array<i64: 32, 144, 128>}, {pipeline_mode = #tpu.pipeline_mode<synchronous>, transform_indices = @transform_4, window_bounds = array<i64: 1, 128>}, {pipeline_mode = #tpu.pipeline_mode<synchronous>, transform_indices = @transform_5, window_bounds = array<i64: 128, 128>}, {pipeline_mode = #tpu.pipeline_mode<synchronous>, transform_indices = @transform_6, window_bounds = array<i64: 1, 128>}, {pipeline_mode = #tpu.pipeline_mode<synchronous>, transform_indices = @transform_7, window_bounds = array<i64: 128, 128>}, {pipeline_mode = #tpu.pipeline_mode<synchronous>, transform_indices = @transform_8, window_bounds = array<i64: 1, 128>}, {transform_indices = @transform_9, window_bounds = array<i64: 1, 1, 128>}]} {
    %c0 = arith.constant 0 : index
    %c0_0 = arith.constant 0 : index
    %0 = vector.load %arg2[%c0, %c0_0] : memref<32x128xf32, #tpu.memory_space<vmem>>, vector<32x128xf32>
    %c0_1 = arith.constant 0 : index
    %c0_2 = arith.constant 0 : index
    %c0_3 = arith.constant 0 : index
    %1 = vector.load %arg1[%c0_1, %c0_2, %c0_3] : memref<1x128x144xf32, #tpu.memory_space<vmem>>, vector<1x128x144xf32>
    %2 = vector.shape_cast %1 : vector<1x128x144xf32> to vector<128x144xf32>
    %cst = arith.constant dense<0.000000e+00> : vector<32x144xf32>
    %3 = tpu.matmul %0, %2, %cst {dimension_numbers = #tpu.dot_dimension_numbers<[1], [0], [0], [1], [0, 0, 1, 1], [], []>} : vector<32x128xf32>, vector<128x144xf32>, vector<32x144xf32> -> vector<32x144xf32>
    %c0_4 = arith.constant 0 : index
    %c0_5 = arith.constant 0 : index
    %4 = vector.load %arg3[%c0_4, %c0_5] : memref<32x1xf32, #tpu.memory_space<vmem>>, vector<32x1xf32>
    %5 = vector.broadcast %4 : vector<32x1xf32> to vector<32x144xf32>
    %6 = arith.addf %3, %5 : vector<32x144xf32>
    %cst_6 = arith.constant 0.000000e+00 : f32
    %7 = vector.broadcast %cst_6 : f32 to vector<32x144xf32>
    %8 = arith.maximumf %6, %7 : vector<32x144xf32>
    %c0_7 = arith.constant 0 : index
    %c0_8 = arith.constant 0 : index
    %9 = vector.load %arg11[%c0_7, %c0_8] : memref<32x144xf32, #tpu.memory_space<vmem>>, vector<32x144xf32>
    tpu.vector_store %arg11[%c0_7, %c0_8], %8 {strides = array<i32>} : memref<32x144xf32, #tpu.memory_space<vmem>>, vector<32x144xf32>,
    %cst_9 = arith.constant 0.000000e+00 : f32
    %10 = vector.broadcast %cst_9 : f32 to vector<1x128xf32>
    %c0_10 = arith.constant 0 : index
    %c0_11 = arith.constant 0 : index
    %11 = vector.load %arg11[%c0_10, %c0_11] : memref<32x144xf32, #tpu.memory_space<vmem>>, vector<1x144xf32>
    %c0_12 = arith.constant 0 : index
    %c0_13 = arith.constant 0 : index
    %c0_14 = arith.constant 0 : index
    %12 = vector.load %arg4[%c0_12, %c0_13, %c0_14] : memref<32x144x128xf32, #tpu.memory_space<vmem>>, vector<1x144x128xf32>
    %13 = vector.shape_cast %12 : vector<1x144x128xf32> to vector<144x128xf32>
    %cst_15 = arith.constant dense<0.000000e+00> : vector<1x128xf32>
    %14 = tpu.matmul %11, %13, %cst_15 {dimension_numbers = #tpu.dot_dimension_numbers<[1], [0], [0], [1], [0, 0, 1, 1], [], []>} : vector<1x144xf32>, vector<144x128xf32>, vector<1x128xf32> -> vector<1x128xf32>
    %15 = arith.addf %10, %14 : vector<1x128xf32>
    %c1 = arith.constant 1 : index
    %c0_16 = arith.constant 0 : index
    %16 = vector.load %arg11[%c1, %c0_16] : memref<32x144xf32, #tpu.memory_space<vmem>>, vector<1x144xf32>
    %c1_17 = arith.constant 1 : index
    %c0_18 = arith.constant 0 : index
    %c0_19 = arith.constant 0 : index
    %17 = vector.load %arg4[%c1_17, %c0_18, %c0_19] : memref<32x144x128xf32, #tpu.memory_space<vmem>>, vector<1x144x128xf32>
    %18 = vector.shape_cast %17 : vector<1x144x128xf32> to vector<144x128xf32>
    %cst_20 = arith.constant dense<0.000000e+00> : vector<1x128xf32>
    %19 = tpu.matmul %16, %18, %cst_20 {dimension_numbers = #tpu.dot_dimension_numbers<[1], [0], [0], [1], [0, 0, 1, 1], [], []>} : vector<1x144xf32>, vector<144x128xf32>, vector<1x128xf32> -> vector<1x128xf32>
    %20 = arith.addf %15, %19 : vector<1x128xf32>
    %c2 = arith.constant 2 : index
    %c0_21 = arith.constant 0 : index
    %21 = vector.load %arg11[%c2, %c0_21] : memref<32x144xf32, #tpu.memory_space<vmem>>, vector<1x144xf32>
    %c2_22 = arith.constant 2 : index
    %c0_23 = arith.constant 0 : index
    %c0_24 = arith.constant 0 : index
    %22 = vector.load %arg4[%c2_22, %c0_23, %c0_24] : memref<32x144x128xf32, #tpu.memory_space<vmem>>, vector<1x144x128xf32>
    %23 = vector.shape_cast %22 : vector<1x144x128xf32> to vector<144x128xf32>
    %cst_25 = arith.constant dense<0.000000e+00> : vector<1x128xf32>
    %24 = tpu.matmul %21, %23, %cst_25 {dimension_numbers = #tpu.dot_dimension_numbers<[1], [0], [0], [1], [0, 0, 1, 1], [], []>} : vector<1x144xf32>, vector<144x128xf32>, vector<1x128xf32> -> vector<1x128xf32>
    %25 = arith.addf %20, %24 : vector<1x128xf32>
    %c3 = arith.constant 3 : index
    %c0_26 = arith.constant 0 : index
    %26 = vector.load %arg11[%c3, %c0_26] : memref<32x144xf32, #tpu.memory_space<vmem>>, vector<1x144xf32>
    %c3_27 = arith.constant 3 : index
    %c0_28 = arith.constant 0 : index
    %c0_29 = arith.constant 0 : index
    %27 = vector.load %arg4[%c3_27, %c0_28, %c0_29] : memref<32x144x128xf32, #tpu.memory_space<vmem>>, vector<1x144x128xf32>
    %28 = vector.shape_cast %27 : vector<1x144x128xf32> to vector<144x128xf32>
    %cst_30 = arith.constant dense<0.000000e+00> : vector<1x128xf32>
    %29 = tpu.matmul %26, %28, %cst_30 {dimension_numbers = #tpu.dot_dimension_numbers<[1], [0], [0], [1], [0, 0, 1, 1], [], []>} : vector<1x144xf32>, vector<144x128xf32>, vector<1x128xf32> -> vector<1x128xf32>
    %30 = arith.addf %25, %29 : vector<1x128xf32>
    %c4 = arith.constant 4 : index
    %c0_31 = arith.constant 0 : index
    %31 = vector.load %arg11[%c4, %c0_31] : memref<32x144xf32, #tpu.memory_space<vmem>>, vector<1x144xf32>
    %c4_32 = arith.constant 4 : index
    %c0_33 = arith.constant 0 : index
    %c0_34 = arith.constant 0 : index
    %32 = vector.load %arg4[%c4_32, %c0_33, %c0_34] : memref<32x144x128xf32, #tpu.memory_space<vmem>>, vector<1x144x128xf32>
    %33 = vector.shape_cast %32 : vector<1x144x128xf32> to vector<144x128xf32>
    %cst_35 = arith.constant dense<0.000000e+00> : vector<1x128xf32>
    %34 = tpu.matmul %31, %33, %cst_35 {dimension_numbers = #tpu.dot_dimension_numbers<[1], [0], [0], [1], [0, 0, 1, 1], [], []>} : vector<1x144xf32>, vector<144x128xf32>, vector<1x128xf32> -> vector<1x128xf32>
    %35 = arith.addf %30, %34 : vector<1x128xf32>
    %c5 = arith.constant 5 : index
    %c0_36 = arith.constant 0 : index
    %36 = vector.load %arg11[%c5, %c0_36] : memref<32x144xf32, #tpu.memory_space<vmem>>, vector<1x144xf32>
    %c5_37 = arith.constant 5 : index
    %c0_38 = arith.constant 0 : index
    %c0_39 = arith.constant 0 : index
    %37 = vector.load %arg4[%c5_37, %c0_38, %c0_39] : memref<32x144x128xf32, #tpu.memory_space<vmem>>, vector<1x144x128xf32>
    %38 = vector.shape_cast %37 : vector<1x144x128xf32> to vector<144x128xf32>
    %cst_40 = arith.constant dense<0.000000e+00> : vector<1x128xf32>
    %39 = tpu.matmul %36, %38, %cst_40 {dimension_numbers = #tpu.dot_dimension_numbers<[1], [0], [0], [1], [0, 0, 1, 1], [], []>} : vector<1x144xf32>, vector<144x128xf32>, vector<1x128xf32> -> vector<1x128xf32>
    %40 = arith.addf %35, %39 : vector<1x128xf32>
    %c6 = arith.constant 6 : index
    %c0_41 = arith.constant 0 : index
    %41 = vector.load %arg11[%c6, %c0_41] : memref<32x144xf32, #tpu.memory_space<vmem>>, vector<1x144xf32>
    %c6_42 = arith.constant 6 : index
    %c0_43 = arith.constant 0 : index
    %c0_44 = arith.constant 0 : index
    %42 = vector.load %arg4[%c6_42, %c0_43, %c0_44] : memref<32x144x128xf32, #tpu.memory_space<vmem>>, vector<1x144x128xf32>
    %43 = vector.shape_cast %42 : vector<1x144x128xf32> to vector<144x128xf32>
    %cst_45 = arith.constant dense<0.000000e+00> : vector<1x128xf32>
    %44 = tpu.matmul %41, %43, %cst_45 {dimension_numbers = #tpu.dot_dimension_numbers<[1], [0], [0], [1], [0, 0, 1, 1], [], []>} : vector<1x144xf32>, vector<144x128xf32>, vector<1x128xf32> -> vector<1x128xf32>
    %45 = arith.addf %40, %44 : vector<1x128xf32>
    %c7 = arith.constant 7 : index
    %c0_46 = arith.constant 0 : index
    %46 = vector.load %arg11[%c7, %c0_46] : memref<32x144xf32, #tpu.memory_space<vmem>>, vector<1x144xf32>
    %c7_47 = arith.constant 7 : index
    %c0_48 = arith.constant 0 : index
    %c0_49 = arith.constant 0 : index
    %47 = vector.load %arg4[%c7_47, %c0_48, %c0_49] : memref<32x144x128xf32, #tpu.memory_space<vmem>>, vector<1x144x128xf32>
    %48 = vector.shape_cast %47 : vector<1x144x128xf32> to vector<144x128xf32>
    %cst_50 = arith.constant dense<0.000000e+00> : vector<1x128xf32>
    %49 = tpu.matmul %46, %48, %cst_50 {dimension_numbers = #tpu.dot_dimension_numbers<[1], [0], [0], [1], [0, 0, 1, 1], [], []>} : vector<1x144xf32>, vector<144x128xf32>, vector<1x128xf32> -> vector<1x128xf32>
    %50 = arith.addf %45, %49 : vector<1x128xf32>
    %c8 = arith.constant 8 : index
    %c0_51 = arith.constant 0 : index
    %51 = vector.load %arg11[%c8, %c0_51] : memref<32x144xf32, #tpu.memory_space<vmem>>, vector<1x144xf32>
    %c8_52 = arith.constant 8 : index
    %c0_53 = arith.constant 0 : index
    %c0_54 = arith.constant 0 : index
    %52 = vector.load %arg4[%c8_52, %c0_53, %c0_54] : memref<32x144x128xf32, #tpu.memory_space<vmem>>, vector<1x144x128xf32>
    %53 = vector.shape_cast %52 : vector<1x144x128xf32> to vector<144x128xf32>
    %cst_55 = arith.constant dense<0.000000e+00> : vector<1x128xf32>
    %54 = tpu.matmul %51, %53, %cst_55 {dimension_numbers = #tpu.dot_dimension_numbers<[1], [0], [0], [1], [0, 0, 1, 1], [], []>} : vector<1x144xf32>, vector<144x128xf32>, vector<1x128xf32> -> vector<1x128xf32>
    %55 = arith.addf %50, %54 : vector<1x128xf32>
    %c9 = arith.constant 9 : index
    %c0_56 = arith.constant 0 : index
    %56 = vector.load %arg11[%c9, %c0_56] : memref<32x144xf32, #tpu.memory_space<vmem>>, vector<1x144xf32>
    %c9_57 = arith.constant 9 : index
    %c0_58 = arith.constant 0 : index
    %c0_59 = arith.constant 0 : index
    %57 = vector.load %arg4[%c9_57, %c0_58, %c0_59] : memref<32x144x128xf32, #tpu.memory_space<vmem>>, vector<1x144x128xf32>
    %58 = vector.shape_cast %57 : vector<1x144x128xf32> to vector<144x128xf32>
    %cst_60 = arith.constant dense<0.000000e+00> : vector<1x128xf32>
    %59 = tpu.matmul %56, %58, %cst_60 {dimension_numbers = #tpu.dot_dimension_numbers<[1], [0], [0], [1], [0, 0, 1, 1], [], []>} : vector<1x144xf32>, vector<144x128xf32>, vector<1x128xf32> -> vector<1x128xf32>
    %60 = arith.addf %55, %59 : vector<1x128xf32>
    %c10 = arith.constant 10 : index
    %c0_61 = arith.constant 0 : index
    %61 = vector.load %arg11[%c10, %c0_61] : memref<32x144xf32, #tpu.memory_space<vmem>>, vector<1x144xf32>
    %c10_62 = arith.constant 10 : index
    %c0_63 = arith.constant 0 : index
    %c0_64 = arith.constant 0 : index
    %62 = vector.load %arg4[%c10_62, %c0_63, %c0_64] : memref<32x144x128xf32, #tpu.memory_space<vmem>>, vector<1x144x128xf32>
    %63 = vector.shape_cast %62 : vector<1x144x128xf32> to vector<144x128xf32>
    %cst_65 = arith.constant dense<0.000000e+00> : vector<1x128xf32>
    %64 = tpu.matmul %61, %63, %cst_65 {dimension_numbers = #tpu.dot_dimension_numbers<[1], [0], [0], [1], [0, 0, 1, 1], [], []>} : vector<1x144xf32>, vector<144x128xf32>, vector<1x128xf32> -> vector<1x128xf32>
    %65 = arith.addf %60, %64 : vector<1x128xf32>
    %c11 = arith.constant 11 : index
    %c0_66 = arith.constant 0 : index
    %66 = vector.load %arg11[%c11, %c0_66] : memref<32x144xf32, #tpu.memory_space<vmem>>, vector<1x144xf32>
    %c11_67 = arith.constant 11 : index
    %c0_68 = arith.constant 0 : index
    %c0_69 = arith.constant 0 : index
    %67 = vector.load %arg4[%c11_67, %c0_68, %c0_69] : memref<32x144x128xf32, #tpu.memory_space<vmem>>, vector<1x144x128xf32>
    %68 = vector.shape_cast %67 : vector<1x144x128xf32> to vector<144x128xf32>
    %cst_70 = arith.constant dense<0.000000e+00> : vector<1x128xf32>
    %69 = tpu.matmul %66, %68, %cst_70 {dimension_numbers = #tpu.dot_dimension_numbers<[1], [0], [0], [1], [0, 0, 1, 1], [], []>} : vector<1x144xf32>, vector<144x128xf32>, vector<1x128xf32> -> vector<1x128xf32>
    %70 = arith.addf %65, %69 : vector<1x128xf32>
    %c12 = arith.constant 12 : index
    %c0_71 = arith.constant 0 : index
    %71 = vector.load %arg11[%c12, %c0_71] : memref<32x144xf32, #tpu.memory_space<vmem>>, vector<1x144xf32>
    %c12_72 = arith.constant 12 : index
    %c0_73 = arith.constant 0 : index
    %c0_74 = arith.constant 0 : index
    %72 = vector.load %arg4[%c12_72, %c0_73, %c0_74] : memref<32x144x128xf32, #tpu.memory_space<vmem>>, vector<1x144x128xf32>
    %73 = vector.shape_cast %72 : vector<1x144x128xf32> to vector<144x128xf32>
    %cst_75 = arith.constant dense<0.000000e+00> : vector<1x128xf32>
    %74 = tpu.matmul %71, %73, %cst_75 {dimension_numbers = #tpu.dot_dimension_numbers<[1], [0], [0], [1], [0, 0, 1, 1], [], []>} : vector<1x144xf32>, vector<144x128xf32>, vector<1x128xf32> -> vector<1x128xf32>
    %75 = arith.addf %70, %74 : vector<1x128xf32>
    %c13 = arith.constant 13 : index
    %c0_76 = arith.constant 0 : index
    %76 = vector.load %arg11[%c13, %c0_76] : memref<32x144xf32, #tpu.memory_space<vmem>>, vector<1x144xf32>
    %c13_77 = arith.constant 13 : index
    %c0_78 = arith.constant 0 : index
    %c0_79 = arith.constant 0 : index
    %77 = vector.load %arg4[%c13_77, %c0_78, %c0_79] : memref<32x144x128xf32, #tpu.memory_space<vmem>>, vector<1x144x128xf32>
    %78 = vector.shape_cast %77 : vector<1x144x128xf32> to vector<144x128xf32>
    %cst_80 = arith.constant dense<0.000000e+00> : vector<1x128xf32>
    %79 = tpu.matmul %76, %78, %cst_80 {dimension_numbers = #tpu.dot_dimension_numbers<[1], [0], [0], [1], [0, 0, 1, 1], [], []>} : vector<1x144xf32>, vector<144x128xf32>, vector<1x128xf32> -> vector<1x128xf32>
    %80 = arith.addf %75, %79 : vector<1x128xf32>
    %c14 = arith.constant 14 : index
    %c0_81 = arith.constant 0 : index
    %81 = vector.load %arg11[%c14, %c0_81] : memref<32x144xf32, #tpu.memory_space<vmem>>, vector<1x144xf32>
    %c14_82 = arith.constant 14 : index
    %c0_83 = arith.constant 0 : index
    %c0_84 = arith.constant 0 : index
    %82 = vector.load %arg4[%c14_82, %c0_83, %c0_84] : memref<32x144x128xf32, #tpu.memory_space<vmem>>, vector<1x144x128xf32>
    %83 = vector.shape_cast %82 : vector<1x144x128xf32> to vector<144x128xf32>
    %cst_85 = arith.constant dense<0.000000e+00> : vector<1x128xf32>
    %84 = tpu.matmul %81, %83, %cst_85 {dimension_numbers = #tpu.dot_dimension_numbers<[1], [0], [0], [1], [0, 0, 1, 1], [], []>} : vector<1x144xf32>, vector<144x128xf32>, vector<1x128xf32> -> vector<1x128xf32>
    %85 = arith.addf %80, %84 : vector<1x128xf32>
    %c15 = arith.constant 15 : index
    %c0_86 = arith.constant 0 : index
    %86 = vector.load %arg11[%c15, %c0_86] : memref<32x144xf32, #tpu.memory_space<vmem>>, vector<1x144xf32>
    %c15_87 = arith.constant 15 : index
    %c0_88 = arith.constant 0 : index
    %c0_89 = arith.constant 0 : index
    %87 = vector.load %arg4[%c15_87, %c0_88, %c0_89] : memref<32x144x128xf32, #tpu.memory_space<vmem>>, vector<1x144x128xf32>
    %88 = vector.shape_cast %87 : vector<1x144x128xf32> to vector<144x128xf32>
    %cst_90 = arith.constant dense<0.000000e+00> : vector<1x128xf32>
    %89 = tpu.matmul %86, %88, %cst_90 {dimension_numbers = #tpu.dot_dimension_numbers<[1], [0], [0], [1], [0, 0, 1, 1], [], []>} : vector<1x144xf32>, vector<144x128xf32>, vector<1x128xf32> -> vector<1x128xf32>
    %90 = arith.addf %85, %89 : vector<1x128xf32>
    %c16 = arith.constant 16 : index
    %c0_91 = arith.constant 0 : index
    %91 = vector.load %arg11[%c16, %c0_91] : memref<32x144xf32, #tpu.memory_space<vmem>>, vector<1x144xf32>
    %c16_92 = arith.constant 16 : index
    %c0_93 = arith.constant 0 : index
    %c0_94 = arith.constant 0 : index
    %92 = vector.load %arg4[%c16_92, %c0_93, %c0_94] : memref<32x144x128xf32, #tpu.memory_space<vmem>>, vector<1x144x128xf32>
    %93 = vector.shape_cast %92 : vector<1x144x128xf32> to vector<144x128xf32>
    %cst_95 = arith.constant dense<0.000000e+00> : vector<1x128xf32>
    %94 = tpu.matmul %91, %93, %cst_95 {dimension_numbers = #tpu.dot_dimension_numbers<[1], [0], [0], [1], [0, 0, 1, 1], [], []>} : vector<1x144xf32>, vector<144x128xf32>, vector<1x128xf32> -> vector<1x128xf32>
    %95 = arith.addf %90, %94 : vector<1x128xf32>
    %c17 = arith.constant 17 : index
    %c0_96 = arith.constant 0 : index
    %96 = vector.load %arg11[%c17, %c0_96] : memref<32x144xf32, #tpu.memory_space<vmem>>, vector<1x144xf32>
    %c17_97 = arith.constant 17 : index
    %c0_98 = arith.constant 0 : index
    %c0_99 = arith.constant 0 : index
    %97 = vector.load %arg4[%c17_97, %c0_98, %c0_99] : memref<32x144x128xf32, #tpu.memory_space<vmem>>, vector<1x144x128xf32>
    %98 = vector.shape_cast %97 : vector<1x144x128xf32> to vector<144x128xf32>
    %cst_100 = arith.constant dense<0.000000e+00> : vector<1x128xf32>
    %99 = tpu.matmul %96, %98, %cst_100 {dimension_numbers = #tpu.dot_dimension_numbers<[1], [0], [0], [1], [0, 0, 1, 1], [], []>} : vector<1x144xf32>, vector<144x128xf32>, vector<1x128xf32> -> vector<1x128xf32>
    %100 = arith.addf %95, %99 : vector<1x128xf32>
    %c18 = arith.constant 18 : index
    %c0_101 = arith.constant 0 : index
    %101 = vector.load %arg11[%c18, %c0_101] : memref<32x144xf32, #tpu.memory_space<vmem>>, vector<1x144xf32>
    %c18_102 = arith.constant 18 : index
    %c0_103 = arith.constant 0 : index
    %c0_104 = arith.constant 0 : index
    %102 = vector.load %arg4[%c18_102, %c0_103, %c0_104] : memref<32x144x128xf32, #tpu.memory_space<vmem>>, vector<1x144x128xf32>
    %103 = vector.shape_cast %102 : vector<1x144x128xf32> to vector<144x128xf32>
    %cst_105 = arith.constant dense<0.000000e+00> : vector<1x128xf32>
    %104 = tpu.matmul %101, %103, %cst_105 {dimension_numbers = #tpu.dot_dimension_numbers<[1], [0], [0], [1], [0, 0, 1, 1], [], []>} : vector<1x144xf32>, vector<144x128xf32>, vector<1x128xf32> -> vector<1x128xf32>
    %105 = arith.addf %100, %104 : vector<1x128xf32>
    %c19 = arith.constant 19 : index
    %c0_106 = arith.constant 0 : index
    %106 = vector.load %arg11[%c19, %c0_106] : memref<32x144xf32, #tpu.memory_space<vmem>>, vector<1x144xf32>
    %c19_107 = arith.constant 19 : index
    %c0_108 = arith.constant 0 : index
    %c0_109 = arith.constant 0 : index
    %107 = vector.load %arg4[%c19_107, %c0_108, %c0_109] : memref<32x144x128xf32, #tpu.memory_space<vmem>>, vector<1x144x128xf32>
    %108 = vector.shape_cast %107 : vector<1x144x128xf32> to vector<144x128xf32>
    %cst_110 = arith.constant dense<0.000000e+00> : vector<1x128xf32>
    %109 = tpu.matmul %106, %108, %cst_110 {dimension_numbers = #tpu.dot_dimension_numbers<[1], [0], [0], [1], [0, 0, 1, 1], [], []>} : vector<1x144xf32>, vector<144x128xf32>, vector<1x128xf32> -> vector<1x128xf32>
    %110 = arith.addf %105, %109 : vector<1x128xf32>
    %c20 = arith.constant 20 : index
    %c0_111 = arith.constant 0 : index
    %111 = vector.load %arg11[%c20, %c0_111] : memref<32x144xf32, #tpu.memory_space<vmem>>, vector<1x144xf32>
    %c20_112 = arith.constant 20 : index
    %c0_113 = arith.constant 0 : index
    %c0_114 = arith.constant 0 : index
    %112 = vector.load %arg4[%c20_112, %c0_113, %c0_114] : memref<32x144x128xf32, #tpu.memory_space<vmem>>, vector<1x144x128xf32>
    %113 = vector.shape_cast %112 : vector<1x144x128xf32> to vector<144x128xf32>
    %cst_115 = arith.constant dense<0.000000e+00> : vector<1x128xf32>
    %114 = tpu.matmul %111, %113, %cst_115 {dimension_numbers = #tpu.dot_dimension_numbers<[1], [0], [0], [1], [0, 0, 1, 1], [], []>} : vector<1x144xf32>, vector<144x128xf32>, vector<1x128xf32> -> vector<1x128xf32>
    %115 = arith.addf %110, %114 : vector<1x128xf32>
    %c21 = arith.constant 21 : index
    %c0_116 = arith.constant 0 : index
    %116 = vector.load %arg11[%c21, %c0_116] : memref<32x144xf32, #tpu.memory_space<vmem>>, vector<1x144xf32>
    %c21_117 = arith.constant 21 : index
    %c0_118 = arith.constant 0 : index
    %c0_119 = arith.constant 0 : index
    %117 = vector.load %arg4[%c21_117, %c0_118, %c0_119] : memref<32x144x128xf32, #tpu.memory_space<vmem>>, vector<1x144x128xf32>
    %118 = vector.shape_cast %117 : vector<1x144x128xf32> to vector<144x128xf32>
    %cst_120 = arith.constant dense<0.000000e+00> : vector<1x128xf32>
    %119 = tpu.matmul %116, %118, %cst_120 {dimension_numbers = #tpu.dot_dimension_numbers<[1], [0], [0], [1], [0, 0, 1, 1], [], []>} : vector<1x144xf32>, vector<144x128xf32>, vector<1x128xf32> -> vector<1x128xf32>
    %120 = arith.addf %115, %119 : vector<1x128xf32>
    %c22 = arith.constant 22 : index
    %c0_121 = arith.constant 0 : index
    %121 = vector.load %arg11[%c22, %c0_121] : memref<32x144xf32, #tpu.memory_space<vmem>>, vector<1x144xf32>
    %c22_122 = arith.constant 22 : index
    %c0_123 = arith.constant 0 : index
    %c0_124 = arith.constant 0 : index
    %122 = vector.load %arg4[%c22_122, %c0_123, %c0_124] : memref<32x144x128xf32, #tpu.memory_space<vmem>>, vector<1x144x128xf32>
    %123 = vector.shape_cast %122 : vector<1x144x128xf32> to vector<144x128xf32>
    %cst_125 = arith.constant dense<0.000000e+00> : vector<1x128xf32>
    %124 = tpu.matmul %121, %123, %cst_125 {dimension_numbers = #tpu.dot_dimension_numbers<[1], [0], [0], [1], [0, 0, 1, 1], [], []>} : vector<1x144xf32>, vector<144x128xf32>, vector<1x128xf32> -> vector<1x128xf32>
    %125 = arith.addf %120, %124 : vector<1x128xf32>
    %c23 = arith.constant 23 : index
    %c0_126 = arith.constant 0 : index
    %126 = vector.load %arg11[%c23, %c0_126] : memref<32x144xf32, #tpu.memory_space<vmem>>, vector<1x144xf32>
    %c23_127 = arith.constant 23 : index
    %c0_128 = arith.constant 0 : index
    %c0_129 = arith.constant 0 : index
    %127 = vector.load %arg4[%c23_127, %c0_128, %c0_129] : memref<32x144x128xf32, #tpu.memory_space<vmem>>, vector<1x144x128xf32>
    %128 = vector.shape_cast %127 : vector<1x144x128xf32> to vector<144x128xf32>
    %cst_130 = arith.constant dense<0.000000e+00> : vector<1x128xf32>
    %129 = tpu.matmul %126, %128, %cst_130 {dimension_numbers = #tpu.dot_dimension_numbers<[1], [0], [0], [1], [0, 0, 1, 1], [], []>} : vector<1x144xf32>, vector<144x128xf32>, vector<1x128xf32> -> vector<1x128xf32>
    %130 = arith.addf %125, %129 : vector<1x128xf32>
    %c24 = arith.constant 24 : index
    %c0_131 = arith.constant 0 : index
    %131 = vector.load %arg11[%c24, %c0_131] : memref<32x144xf32, #tpu.memory_space<vmem>>, vector<1x144xf32>
    %c24_132 = arith.constant 24 : index
    %c0_133 = arith.constant 0 : index
    %c0_134 = arith.constant 0 : index
    %132 = vector.load %arg4[%c24_132, %c0_133, %c0_134] : memref<32x144x128xf32, #tpu.memory_space<vmem>>, vector<1x144x128xf32>
    %133 = vector.shape_cast %132 : vector<1x144x128xf32> to vector<144x128xf32>
    %cst_135 = arith.constant dense<0.000000e+00> : vector<1x128xf32>
    %134 = tpu.matmul %131, %133, %cst_135 {dimension_numbers = #tpu.dot_dimension_numbers<[1], [0], [0], [1], [0, 0, 1, 1], [], []>} : vector<1x144xf32>, vector<144x128xf32>, vector<1x128xf32> -> vector<1x128xf32>
    %135 = arith.addf %130, %134 : vector<1x128xf32>
    %c25 = arith.constant 25 : index
    %c0_136 = arith.constant 0 : index
    %136 = vector.load %arg11[%c25, %c0_136] : memref<32x144xf32, #tpu.memory_space<vmem>>, vector<1x144xf32>
    %c25_137 = arith.constant 25 : index
    %c0_138 = arith.constant 0 : index
    %c0_139 = arith.constant 0 : index
    %137 = vector.load %arg4[%c25_137, %c0_138, %c0_139] : memref<32x144x128xf32, #tpu.memory_space<vmem>>, vector<1x144x128xf32>
    %138 = vector.shape_cast %137 : vector<1x144x128xf32> to vector<144x128xf32>
    %cst_140 = arith.constant dense<0.000000e+00> : vector<1x128xf32>
    %139 = tpu.matmul %136, %138, %cst_140 {dimension_numbers = #tpu.dot_dimension_numbers<[1], [0], [0], [1], [0, 0, 1, 1], [], []>} : vector<1x144xf32>, vector<144x128xf32>, vector<1x128xf32> -> vector<1x128xf32>
    %140 = arith.addf %135, %139 : vector<1x128xf32>
    %c26 = arith.constant 26 : index
    %c0_141 = arith.constant 0 : index
    %141 = vector.load %arg11[%c26, %c0_141] : memref<32x144xf32, #tpu.memory_space<vmem>>, vector<1x144xf32>
    %c26_142 = arith.constant 26 : index
    %c0_143 = arith.constant 0 : index
    %c0_144 = arith.constant 0 : index
    %142 = vector.load %arg4[%c26_142, %c0_143, %c0_144] : memref<32x144x128xf32, #tpu.memory_space<vmem>>, vector<1x144x128xf32>
    %143 = vector.shape_cast %142 : vector<1x144x128xf32> to vector<144x128xf32>
    %cst_145 = arith.constant dense<0.000000e+00> : vector<1x128xf32>
    %144 = tpu.matmul %141, %143, %cst_145 {dimension_numbers = #tpu.dot_dimension_numbers<[1], [0], [0], [1], [0, 0, 1, 1], [], []>} : vector<1x144xf32>, vector<144x128xf32>, vector<1x128xf32> -> vector<1x128xf32>
    %145 = arith.addf %140, %144 : vector<1x128xf32>
    %c27 = arith.constant 27 : index
    %c0_146 = arith.constant 0 : index
    %146 = vector.load %arg11[%c27, %c0_146] : memref<32x144xf32, #tpu.memory_space<vmem>>, vector<1x144xf32>
    %c27_147 = arith.constant 27 : index
    %c0_148 = arith.constant 0 : index
    %c0_149 = arith.constant 0 : index
    %147 = vector.load %arg4[%c27_147, %c0_148, %c0_149] : memref<32x144x128xf32, #tpu.memory_space<vmem>>, vector<1x144x128xf32>
    %148 = vector.shape_cast %147 : vector<1x144x128xf32> to vector<144x128xf32>
    %cst_150 = arith.constant dense<0.000000e+00> : vector<1x128xf32>
    %149 = tpu.matmul %146, %148, %cst_150 {dimension_numbers = #tpu.dot_dimension_numbers<[1], [0], [0], [1], [0, 0, 1, 1], [], []>} : vector<1x144xf32>, vector<144x128xf32>, vector<1x128xf32> -> vector<1x128xf32>
    %150 = arith.addf %145, %149 : vector<1x128xf32>
    %c28 = arith.constant 28 : index
    %c0_151 = arith.constant 0 : index
    %151 = vector.load %arg11[%c28, %c0_151] : memref<32x144xf32, #tpu.memory_space<vmem>>, vector<1x144xf32>
    %c28_152 = arith.constant 28 : index
    %c0_153 = arith.constant 0 : index
    %c0_154 = arith.constant 0 : index
    %152 = vector.load %arg4[%c28_152, %c0_153, %c0_154] : memref<32x144x128xf32, #tpu.memory_space<vmem>>, vector<1x144x128xf32>
    %153 = vector.shape_cast %152 : vector<1x144x128xf32> to vector<144x128xf32>
    %cst_155 = arith.constant dense<0.000000e+00> : vector<1x128xf32>
    %154 = tpu.matmul %151, %153, %cst_155 {dimension_numbers = #tpu.dot_dimension_numbers<[1], [0], [0], [1], [0, 0, 1, 1], [], []>} : vector<1x144xf32>, vector<144x128xf32>, vector<1x128xf32> -> vector<1x128xf32>
    %155 = arith.addf %150, %154 : vector<1x128xf32>
    %c29 = arith.constant 29 : index
    %c0_156 = arith.constant 0 : index
    %156 = vector.load %arg11[%c29, %c0_156] : memref<32x144xf32, #tpu.memory_space<vmem>>, vector<1x144xf32>
    %c29_157 = arith.constant 29 : index
    %c0_158 = arith.constant 0 : index
    %c0_159 = arith.constant 0 : index
    %157 = vector.load %arg4[%c29_157, %c0_158, %c0_159] : memref<32x144x128xf32, #tpu.memory_space<vmem>>, vector<1x144x128xf32>
    %158 = vector.shape_cast %157 : vector<1x144x128xf32> to vector<144x128xf32>
    %cst_160 = arith.constant dense<0.000000e+00> : vector<1x128xf32>
    %159 = tpu.matmul %156, %158, %cst_160 {dimension_numbers = #tpu.dot_dimension_numbers<[1], [0], [0], [1], [0, 0, 1, 1], [], []>} : vector<1x144xf32>, vector<144x128xf32>, vector<1x128xf32> -> vector<1x128xf32>
    %160 = arith.addf %155, %159 : vector<1x128xf32>
    %c30 = arith.constant 30 : index
    %c0_161 = arith.constant 0 : index
    %161 = vector.load %arg11[%c30, %c0_161] : memref<32x144xf32, #tpu.memory_space<vmem>>, vector<1x144xf32>
    %c30_162 = arith.constant 30 : index
    %c0_163 = arith.constant 0 : index
    %c0_164 = arith.constant 0 : index
    %162 = vector.load %arg4[%c30_162, %c0_163, %c0_164] : memref<32x144x128xf32, #tpu.memory_space<vmem>>, vector<1x144x128xf32>
    %163 = vector.shape_cast %162 : vector<1x144x128xf32> to vector<144x128xf32>
    %cst_165 = arith.constant dense<0.000000e+00> : vector<1x128xf32>
    %164 = tpu.matmul %161, %163, %cst_165 {dimension_numbers = #tpu.dot_dimension_numbers<[1], [0], [0], [1], [0, 0, 1, 1], [], []>} : vector<1x144xf32>, vector<144x128xf32>, vector<1x128xf32> -> vector<1x128xf32>
    %165 = arith.addf %160, %164 : vector<1x128xf32>
    %c31 = arith.constant 31 : index
    %c0_166 = arith.constant 0 : index
    %166 = vector.load %arg11[%c31, %c0_166] : memref<32x144xf32, #tpu.memory_space<vmem>>, vector<1x144xf32>
    %c31_167 = arith.constant 31 : index
    %c0_168 = arith.constant 0 : index
    %c0_169 = arith.constant 0 : index
    %167 = vector.load %arg4[%c31_167, %c0_168, %c0_169] : memref<32x144x128xf32, #tpu.memory_space<vmem>>, vector<1x144x128xf32>
    %168 = vector.shape_cast %167 : vector<1x144x128xf32> to vector<144x128xf32>
    %cst_170 = arith.constant dense<0.000000e+00> : vector<1x128xf32>
    %169 = tpu.matmul %166, %168, %cst_170 {dimension_numbers = #tpu.dot_dimension_numbers<[1], [0], [0], [1], [0, 0, 1, 1], [], []>} : vector<1x144xf32>, vector<144x128xf32>, vector<1x128xf32> -> vector<1x128xf32>
    %170 = arith.addf %165, %169 : vector<1x128xf32>
    %c0_171 = arith.constant 0 : index
    %c0_172 = arith.constant 0 : index
    %171 = vector.load %arg5[%c0_171, %c0_172] : memref<1x128xf32, #tpu.memory_space<vmem>>, vector<1x128xf32>
    %172 = arith.addf %170, %171 : vector<1x128xf32>
    %cst_173 = arith.constant 0.000000e+00 : f32
    %173 = vector.broadcast %cst_173 : f32 to vector<1x128xf32>
    %174 = arith.maximumf %172, %173 : vector<1x128xf32>
    %c0_174 = arith.constant 0 : index
    %c0_175 = arith.constant 0 : index
    %175 = vector.load %arg6[%c0_174, %c0_175] : memref<128x128xf32, #tpu.memory_space<vmem>>, vector<128x128xf32>
    %cst_176 = arith.constant dense<0.000000e+00> : vector<1x128xf32>
    %176 = tpu.matmul %174, %175, %cst_176 {dimension_numbers = #tpu.dot_dimension_numbers<[1], [0], [0], [1], [0, 0, 1, 1], [], []>} : vector<1x128xf32>, vector<128x128xf32>, vector<1x128xf32> -> vector<1x128xf32>
    %c0_177 = arith.constant 0 : index
    %c0_178 = arith.constant 0 : index
    %177 = vector.load %arg7[%c0_177, %c0_178] : memref<1x128xf32, #tpu.memory_space<vmem>>, vector<1x128xf32>
    %178 = arith.addf %176, %177 : vector<1x128xf32>
    %cst_179 = arith.constant 0.000000e+00 : f32
    %179 = vector.broadcast %cst_179 : f32 to vector<1x128xf32>
    %180 = arith.maximumf %178, %179 : vector<1x128xf32>
    %c0_180 = arith.constant 0 : index
    %c0_181 = arith.constant 0 : index
    %181 = vector.load %arg8[%c0_180, %c0_181] : memref<128x128xf32, #tpu.memory_space<vmem>>, vector<128x128xf32>
    %cst_182 = arith.constant dense<0.000000e+00> : vector<1x128xf32>
    %182 = tpu.matmul %180, %181, %cst_182 {dimension_numbers = #tpu.dot_dimension_numbers<[1], [0], [0], [1], [0, 0, 1, 1], [], []>} : vector<1x128xf32>, vector<128x128xf32>, vector<1x128xf32> -> vector<1x128xf32>
    %c0_183 = arith.constant 0 : index
    %c0_184 = arith.constant 0 : index
    %183 = vector.load %arg9[%c0_183, %c0_184] : memref<1x128xf32, #tpu.memory_space<vmem>>, vector<1x128xf32>
    %184 = arith.addf %182, %183 : vector<1x128xf32>
    %cst_185 = arith.constant dense<0xFF800000> : vector<1xf32>
    %185 = vector.multi_reduction <maximumf>, %184, %cst_185 [1] : vector<1x128xf32> to vector<1xf32>
    %186 = vector.shape_cast %185 : vector<1xf32> to vector<1x1xf32>
    %187 = vector.broadcast %186 : vector<1x1xf32> to vector<1x128xf32>
    %188 = arith.subf %184, %187 : vector<1x128xf32>
    %189 = math.exp %188 : vector<1x128xf32>
    %cst_186 = arith.constant dense<0.000000e+00> : vector<1xf32>
    %190 = vector.multi_reduction <add>, %189, %cst_186 [1] : vector<1x128xf32> to vector<1xf32>
    %191 = vector.shape_cast %190 : vector<1xf32> to vector<1x1xf32>
    %192 = tpu.reciprocal %191 {approx = true} : vector<1x1xf32> -> vector<1x1xf32>
    %193 = vector.broadcast %192 : vector<1x1xf32> to vector<1x128xf32>
    %194 = arith.mulf %189, %193 : vector<1x128xf32>
    %c0_187 = arith.constant 0 : index
    %c0_188 = arith.constant 0 : index
    %c0_189 = arith.constant 0 : index
    %195 = vector.load %arg10[%c0_187, %c0_188, %c0_189] : memref<1x1x128xf32, #tpu.memory_space<vmem>>, vector<1x1x128xf32>
    %196 = vector.shape_cast %195 : vector<1x1x128xf32> to vector<1x128xf32>
    %197 = vector.shape_cast %194 : vector<1x128xf32> to vector<1x1x128xf32>
    tpu.vector_store %arg10[%c0_187, %c0_188, %c0_189], %197 {strides = array<i32>} : memref<1x1x128xf32, #tpu.memory_space<vmem>>, vector<1x1x128xf32>,
    return
  }
  func.func @transform_0(%arg0: i32) -> (i32, i32, i32) {
    %c0_i32 = arith.constant 0 : i32
    %c0_i32_0 = arith.constant 0 : i32
    %c0_i32_1 = arith.constant 0 : i32
    return %arg0, %c0_i32, %c0_i32_0 : i32, i32, i32
  }
  func.func @transform_1(%arg0: i32) -> (i32, i32) {
    %c0_i32 = arith.constant 0 : i32
    %c0_i32_0 = arith.constant 0 : i32
    %c0_i32_1 = arith.constant 0 : i32
    return %c0_i32, %c0_i32_0 : i32, i32
  }
  func.func @transform_2(%arg0: i32) -> (i32, i32) {
    %c0_i32 = arith.constant 0 : i32
    %c0_i32_0 = arith.constant 0 : i32
    %c0_i32_1 = arith.constant 0 : i32
    return %c0_i32, %c0_i32_0 : i32, i32
  }
  func.func @transform_3(%arg0: i32) -> (i32, i32, i32) {
    %c0_i32 = arith.constant 0 : i32
    %c0_i32_0 = arith.constant 0 : i32
    %c0_i32_1 = arith.constant 0 : i32
    %c0_i32_2 = arith.constant 0 : i32
    return %c0_i32, %c0_i32_0, %c0_i32_1 : i32, i32, i32
  }
  func.func @transform_4(%arg0: i32) -> (i32, i32) {
    %c0_i32 = arith.constant 0 : i32
    %c0_i32_0 = arith.constant 0 : i32
    %c0_i32_1 = arith.constant 0 : i32
    return %c0_i32, %c0_i32_0 : i32, i32
  }
  func.func @transform_5(%arg0: i32) -> (i32, i32) {
    %c0_i32 = arith.constant 0 : i32
    %c0_i32_0 = arith.constant 0 : i32
    %c0_i32_1 = arith.constant 0 : i32
    return %c0_i32, %c0_i32_0 : i32, i32
  }
  func.func @transform_6(%arg0: i32) -> (i32, i32) {
    %c0_i32 = arith.constant 0 : i32
    %c0_i32_0 = arith.constant 0 : i32
    %c0_i32_1 = arith.constant 0 : i32
    return %c0_i32, %c0_i32_0 : i32, i32
  }
  func.func @transform_7(%arg0: i32) -> (i32, i32) {
    %c0_i32 = arith.constant 0 : i32
    %c0_i32_0 = arith.constant 0 : i32
    %c0_i32_1 = arith.constant 0 : i32
    return %c0_i32, %c0_i32_0 : i32, i32
  }
  func.func @transform_8(%arg0: i32) -> (i32, i32) {
    %c0_i32 = arith.constant 0 : i32
    %c0_i32_0 = arith.constant 0 : i32
    %c0_i32_1 = arith.constant 0 : i32
    return %c0_i32, %c0_i32_0 : i32, i32
  }
  func.func @transform_9(%arg0: i32) -> (i32, i32, i32) {
    %c0_i32 = arith.constant 0 : i32
    %c0_i32_0 = arith.constant 0 : i32
    %c0_i32_1 = arith.constant 0 : i32
    return %arg0, %c0_i32, %c0_i32_0 : i32, i32, i32
  }
}

</mosaic_0001>

<llo_original>
// kernel: actor_net_forward.1
$region0: #{actor_net_forward.1}
  #allocation0 [shape = 'u32[]', space=smem, size = 0x4, offset = 0x4, fixed_abs, tag = 'smem constant byte address 0x4 - core index']
  #allocation1 [shape = 'u32[144,128]{1,0:T(1,128)}', space=vmem, size = 0x12000, scoped, tag = 'internal scratch']
  #allocation2 [shape = 'f32[32,144]{1,0:T(8,128)}', space=vmem, size = 0x8000, scoped, tag = 'scratch operand']
  %s0 = inlined_call_operand.vmem [shape: f32[2,128,144], index: 0, kind: input, shape index: {}]
  %s1 = inlined_call_operand.vmem [shape: f32[32,128], index: 1, kind: input, shape index: {}]
  %s2 = inlined_call_operand.vmem [shape: f32[32,1], index: 2, kind: input, shape index: {}]
  %s3 = inlined_call_operand.vmem [shape: f32[32,144,128], index: 3, kind: input, shape index: {}]
  %s4 = inlined_call_operand.vmem [shape: f32[1,128], index: 4, kind: input, shape index: {}]
  %s5 = inlined_call_operand.vmem [shape: f32[128,128], index: 5, kind: input, shape index: {}]
  %s6 = inlined_call_operand.vmem [shape: f32[1,128], index: 6, kind: input, shape index: {}]
  %s7 = inlined_call_operand.vmem [shape: f32[128,128], index: 7, kind: input, shape index: {}]
  %s8 = inlined_call_operand.vmem [shape: f32[1,128], index: 8, kind: input, shape index: {}]
  %s9 = inlined_call_operand.hbm [shape: f32[2,1,128], index: 9, kind: output, shape index: {}]
  %s10 = sld [smem:[#allocation0]]
  $region69: #{actor_net_forward.1} parent=0
    _
  %s12 = ssub.s32 1, %s10
  %s13 = scalar_select 0, %s12, %s10
  $region1: #{actor_net_forward.1} parent=0
    #allocation3 [shape = 'u8[1024]{0}', space=vmem, size = 0x400, scoped, tag = 'output window, operand 0']
    #allocation4 [shape = 's32[2]{0}', space=sflag, size = 0x8, scoped, tag = 'scoped memory for actor_net_forward.1']
    %14 = vsyncpa [#allocation4], 0
    %s15 = scalar_lea.sflag [#allocation4], 1
    %16 = vsyncpa %s15, 0
    loop: start=0, step=1, limit=4
    $region2: #{actor_net_forward.1} parent=1 // loop_pre_header
      _
    $region3: #{actor_net_forward.1} parent=1 // loop_header
      %s18 = sphi 0, %s22
      %p19 = scmp.ge.s32.totalorder %s18, 4
      %s28 = sphi 0, %s30
      %s31 = sphi 0, %s28
      %s32 = sphi 0, %s31
      %s48 = sphi 0, %s32
      %s52 = sphi 0, %s52
      %s54 = sphi 0, %s52
      %s55 = sphi 0, %s54
      %s69 = sphi 0, %s55
      %s73 = sphi 0, %s73
      %s75 = sphi 0, %s73
      %s76 = sphi 0, %s75
      %s90 = sphi 0, %s76
      %s94 = sphi 0, %s94
      %s96 = sphi 0, %s94
      %s97 = sphi 0, %s96
      %s111 = sphi 0, %s97
      %s115 = sphi 0, %s115
      %s117 = sphi 0, %s115
      %s118 = sphi 0, %s117
      %s132 = sphi 0, %s118
      %s136 = sphi 0, %s136
      %s138 = sphi 0, %s136
      %s139 = sphi 0, %s138
      %s153 = sphi 0, %s139
      %s157 = sphi 0, %s157
      %s159 = sphi 0, %s157
      %s160 = sphi 0, %s159
      %s174 = sphi 0, %s160
      %s178 = sphi 0, %s178
      %s180 = sphi 0, %s178
      %s181 = sphi 0, %s180
      %s195 = sphi 0, %s181
      %s199 = sphi 0, %s199
      %s201 = sphi 0, %s199
      %s202 = sphi 0, %s201
      %s216 = sphi 0, %s202
      %s222 = sphi 0, %s224
      %s225 = sphi 0, %s222
      %s226 = sphi 0, %s225
      %s242 = sphi 0, %s226
    $region4: #{actor_net_forward.1} parent=1 // loop_header_branch
      %21 = sbr.rel (%p19) target = $region8
    $region5: #{actor_net_forward.1} parent=1 // loop_body
      %s23 = ssub.s32 %s18, 1
      %s24 = ssub.s32 %s18, 2
      %s25 = sadd.s32 %s18, 1
      %s26 = ssub.s32 %s18, %s25
      %p27 = scmp.eq.s32.totalorder %s26, 0
      %s29 = sadd.s32 %s28, 1
      %s30 = scalar_select %p27, %s28, %s29
      %p33 = pneg %p27
      %p34 = scmp.eq.s32.totalorder %s18, 1
      %p35 = por %p33, %p34
      %p36 = scmp.ne.s32.totalorder %s28, %s31
      %p37 = scmp.eq.s32.totalorder %s18, 0
      %p38 = por %p36, %p37
      %p39 = scmp.ne.s32.totalorder %s28, %s31
      %p40 = scmp.eq.s32.totalorder %s23, 1
      %p41 = por %p39, %p40
      %p42 = scmp.ne.s32.totalorder %s31, %s32
      %p43 = scmp.eq.s32.totalorder %s23, 0
      %p44 = por %p42, %p43
      %p45 = scmp.ne.s32.totalorder %s31, %s32
      %p46 = scmp.eq.s32.totalorder %s24, 1
      %p47 = por %p45, %p46
      %p49 = scmp.ne.s32.totalorder %s32, %s48
      %p50 = scmp.eq.s32.totalorder %s24, 0
      %p51 = por %p49, %p50
      %s53 = sadd.s32 %s52, 1
      %p56 = scmp.eq.s32.totalorder %s18, 1
      %p57 = scmp.ne.s32.totalorder %s52, %s54
      %p58 = scmp.eq.s32.totalorder %s18, 0
      %p59 = por %p57, %p58
      %p60 = scmp.ne.s32.totalorder %s52, %s54
      %p61 = scmp.eq.s32.totalorder %s23, 1
      %p62 = por %p60, %p61
      %p63 = scmp.ne.s32.totalorder %s54, %s55
      %p64 = scmp.eq.s32.totalorder %s23, 0
      %p65 = por %p63, %p64
      %p66 = scmp.ne.s32.totalorder %s54, %s55
      %p67 = scmp.eq.s32.totalorder %s24, 1
      %p68 = por %p66, %p67
      %p70 = scmp.ne.s32.totalorder %s55, %s69
      %p71 = scmp.eq.s32.totalorder %s24, 0
      %p72 = por %p70, %p71
      %s74 = sadd.s32 %s73, 1
      %p77 = scmp.eq.s32.totalorder %s18, 1
      %p78 = scmp.ne.s32.totalorder %s73, %s75
      %p79 = scmp.eq.s32.totalorder %s18, 0
      %p80 = por %p78, %p79
      %p81 = scmp.ne.s32.totalorder %s73, %s75
      %p82 = scmp.eq.s32.totalorder %s23, 1
      %p83 = por %p81, %p82
      %p84 = scmp.ne.s32.totalorder %s75, %s76
      %p85 = scmp.eq.s32.totalorder %s23, 0
      %p86 = por %p84, %p85
      %p87 = scmp.ne.s32.totalorder %s75, %s76
      %p88 = scmp.eq.s32.totalorder %s24, 1
      %p89 = por %p87, %p88
      %p91 = scmp.ne.s32.totalorder %s76, %s90
      %p92 = scmp.eq.s32.totalorder %s24, 0
      %p93 = por %p91, %p92
      %s95 = sadd.s32 %s94, 1
      %p98 = scmp.eq.s32.totalorder %s18, 1
      %p99 = scmp.ne.s32.totalorder %s94, %s96
      %p100 = scmp.eq.s32.totalorder %s18, 0
      %p101 = por %p99, %p100
      %p102 = scmp.ne.s32.totalorder %s94, %s96
      %p103 = scmp.eq.s32.totalorder %s23, 1
      %p104 = por %p102, %p103
      %p105 = scmp.ne.s32.totalorder %s96, %s97
      %p106 = scmp.eq.s32.totalorder %s23, 0
      %p107 = por %p105, %p106
      %p108 = scmp.ne.s32.totalorder %s96, %s97
      %p109 = scmp.eq.s32.totalorder %s24, 1
      %p110 = por %p108, %p109
      %p112 = scmp.ne.s32.totalorder %s97, %s111
      %p113 = scmp.eq.s32.totalorder %s24, 0
      %p114 = por %p112, %p113
      %s116 = sadd.s32 %s115, 1
      %p119 = scmp.eq.s32.totalorder %s18, 1
      %p120 = scmp.ne.s32.totalorder %s115, %s117
      %p121 = scmp.eq.s32.totalorder %s18, 0
      %p122 = por %p120, %p121
      %p123 = scmp.ne.s32.totalorder %s115, %s117
      %p124 = scmp.eq.s32.totalorder %s23, 1
      %p125 = por %p123, %p124
      %p126 = scmp.ne.s32.totalorder %s117, %s118
      %p127 = scmp.eq.s32.totalorder %s23, 0
      %p128 = por %p126, %p127
      %p129 = scmp.ne.s32.totalorder %s117, %s118
      %p130 = scmp.eq.s32.totalorder %s24, 1
      %p131 = por %p129, %p130
      %p133 = scmp.ne.s32.totalorder %s118, %s132
      %p134 = scmp.eq.s32.totalorder %s24, 0
      %p135 = por %p133, %p134
      %s137 = sadd.s32 %s136, 1
      %p140 = scmp.eq.s32.totalorder %s18, 1
      %p141 = scmp.ne.s32.totalorder %s136, %s138
      %p142 = scmp.eq.s32.totalorder %s18, 0
      %p143 = por %p141, %p142
      %p144 = scmp.ne.s32.totalorder %s136, %s138
      %p145 = scmp.eq.s32.totalorder %s23, 1
      %p146 = por %p144, %p145
      %p147 = scmp.ne.s32.totalorder %s138, %s139
      %p148 = scmp.eq.s32.totalorder %s23, 0
      %p149 = por %p147, %p148
      %p150 = scmp.ne.s32.totalorder %s138, %s139
      %p151 = scmp.eq.s32.totalorder %s24, 1
      %p152 = por %p150, %p151
      %p154 = scmp.ne.s32.totalorder %s139, %s153
      %p155 = scmp.eq.s32.totalorder %s24, 0
      %p156 = por %p154, %p155
      %s158 = sadd.s32 %s157, 1
      %p161 = scmp.eq.s32.totalorder %s18, 1
      %p162 = scmp.ne.s32.totalorder %s157, %s159
      %p163 = scmp.eq.s32.totalorder %s18, 0
      %p164 = por %p162, %p163
      %p165 = scmp.ne.s32.totalorder %s157, %s159
      %p166 = scmp.eq.s32.totalorder %s23, 1
      %p167 = por %p165, %p166
      %p168 = scmp.ne.s32.totalorder %s159, %s160
      %p169 = scmp.eq.s32.totalorder %s23, 0
      %p170 = por %p168, %p169
      %p171 = scmp.ne.s32.totalorder %s159, %s160
      %p172 = scmp.eq.s32.totalorder %s24, 1
      %p173 = por %p171, %p172
      %p175 = scmp.ne.s32.totalorder %s160, %s174
      %p176 = scmp.eq.s32.totalorder %s24, 0
      %p177 = por %p175, %p176
      %s179 = sadd.s32 %s178, 1
      %p182 = scmp.eq.s32.totalorder %s18, 1
      %p183 = scmp.ne.s32.totalorder %s178, %s180
      %p184 = scmp.eq.s32.totalorder %s18, 0
      %p185 = por %p183, %p184
      %p186 = scmp.ne.s32.totalorder %s178, %s180
      %p187 = scmp.eq.s32.totalorder %s23, 1
      %p188 = por %p186, %p187
      %p189 = scmp.ne.s32.totalorder %s180, %s181
      %p190 = scmp.eq.s32.totalorder %s23, 0
      %p191 = por %p189, %p190
      %p192 = scmp.ne.s32.totalorder %s180, %s181
      %p193 = scmp.eq.s32.totalorder %s24, 1
      %p194 = por %p192, %p193
      %p196 = scmp.ne.s32.totalorder %s181, %s195
      %p197 = scmp.eq.s32.totalorder %s24, 0
      %p198 = por %p196, %p197
      %s200 = sadd.s32 %s199, 1
      %p203 = scmp.eq.s32.totalorder %s18, 1
      %p204 = scmp.ne.s32.totalorder %s199, %s201
      %p205 = scmp.eq.s32.totalorder %s18, 0
      %p206 = por %p204, %p205
      %p207 = scmp.ne.s32.totalorder %s199, %s201
      %p208 = scmp.eq.s32.totalorder %s23, 1
      %p209 = por %p207, %p208
      %p210 = scmp.ne.s32.totalorder %s201, %s202
      %p211 = scmp.eq.s32.totalorder %s23, 0
      %p212 = por %p210, %p211
      %p213 = scmp.ne.s32.totalorder %s201, %s202
      %p214 = scmp.eq.s32.totalorder %s24, 1
      %p215 = por %p213, %p214
      %p217 = scmp.ne.s32.totalorder %s202, %s216
      %p218 = scmp.eq.s32.totalorder %s24, 0
      %p219 = por %p217, %p218
      %s220 = ssub.s32 %s18, %s25
      %p221 = scmp.eq.s32.totalorder %s220, 0
      %s223 = sadd.s32 %s222, 1
      %s224 = scalar_select %p221, %s222, %s223
      %p227 = pneg %p221
      %p228 = scmp.eq.s32.totalorder %s18, 1
      %p229 = por %p227, %p228
      %p230 = scmp.ne.s32.totalorder %s222, %s225
      %p231 = scmp.eq.s32.totalorder %s18, 0
      %p232 = por %p230, %p231
      %p233 = scmp.ne.s32.totalorder %s222, %s225
      %p234 = scmp.eq.s32.totalorder %s23, 1
      %p235 = por %p233, %p234
      %p236 = scmp.ne.s32.totalorder %s225, %s226
      %p237 = scmp.eq.s32.totalorder %s23, 0
      %p238 = por %p236, %p237
      %p239 = scmp.ne.s32.totalorder %s225, %s226
      %p240 = scmp.eq.s32.totalorder %s24, 1
      %p241 = por %p239, %p240
      %p243 = scmp.ne.s32.totalorder %s226, %s242
      %p244 = scmp.eq.s32.totalorder %s24, 0
      %p245 = por %p243, %p244
      %p246 = scmp.le.s32.totalorder 1, %s18
      %p247 = scmp.lt.s32.totalorder %s18, 3
      %p248 = pnand %p246, %p247
      %p249 = pneg %p248
      // Predicated region
      $region9: #{actor_net_forward.1} parent=5 // pred_check
        _
      $region10: #{actor_net_forward.1} parent=5 // pred_check_branch
        %251 = sbr.rel (%p248) target = $region12
      $region11: #{actor_net_forward.1} parent=5 // pred_region
        %s252 = ssub.s32 %s18, 1
        // Predicated region
        $region13: #{actor_net_forward.1} parent=11 // pred_check
          %p253 = pneg %p65
        $region14: #{actor_net_forward.1} parent=11 // pred_check_branch
          %255 = sbr.rel (%p253) target = $region16
        $region15: #{actor_net_forward.1} parent=11 // pred_region
          _
        $region16: #{actor_net_forward.1} parent=11 // pred_fallthru
          _
        // Predicated region
        $region17: #{actor_net_forward.1} parent=11 // pred_check
          %p256 = pneg %p86
        $region18: #{actor_net_forward.1} parent=11 // pred_check_branch
          %258 = sbr.rel (%p256) target = $region20
        $region19: #{actor_net_forward.1} parent=11 // pred_region
          _
        $region20: #{actor_net_forward.1} parent=11 // pred_fallthru
          _
        // Predicated region
        $region21: #{actor_net_forward.1} parent=11 // pred_check
          %p259 = pneg %p107
        $region22: #{actor_net_forward.1} parent=11 // pred_check_branch
          %261 = sbr.rel (%p259) target = $region24
        $region23: #{actor_net_forward.1} parent=11 // pred_region
          _
        $region24: #{actor_net_forward.1} parent=11 // pred_fallthru
          _
        // Predicated region
        $region25: #{actor_net_forward.1} parent=11 // pred_check
          %p262 = pneg %p128
        $region26: #{actor_net_forward.1} parent=11 // pred_check_branch
          %264 = sbr.rel (%p262) target = $region28
        $region27: #{actor_net_forward.1} parent=11 // pred_region
          _
        $region28: #{actor_net_forward.1} parent=11 // pred_fallthru
          _
        // Predicated region
        $region29: #{actor_net_forward.1} parent=11 // pred_check
          %p265 = pneg %p149
        $region30: #{actor_net_forward.1} parent=11 // pred_check_branch
          %267 = sbr.rel (%p265) target = $region32
        $region31: #{actor_net_forward.1} parent=11 // pred_region
          _
        $region32: #{actor_net_forward.1} parent=11 // pred_fallthru
          _
        // Predicated region
        $region33: #{actor_net_forward.1} parent=11 // pred_check
          %p268 = pneg %p170
        $region34: #{actor_net_forward.1} parent=11 // pred_check_branch
          %270 = sbr.rel (%p268) target = $region36
        $region35: #{actor_net_forward.1} parent=11 // pred_region
          _
        $region36: #{actor_net_forward.1} parent=11 // pred_fallthru
          _
        // Predicated region
        $region37: #{actor_net_forward.1} parent=11 // pred_check
          %p271 = pneg %p191
        $region38: #{actor_net_forward.1} parent=11 // pred_check_branch
          %273 = sbr.rel (%p271) target = $region40
        $region39: #{actor_net_forward.1} parent=11 // pred_region
          _
        $region40: #{actor_net_forward.1} parent=11 // pred_fallthru
          _
        // Predicated region
        $region41: #{actor_net_forward.1} parent=11 // pred_check
          %p274 = pneg %p212
        $region42: #{actor_net_forward.1} parent=11 // pred_check_branch
          %276 = sbr.rel (%p274) target = $region44
        $region43: #{actor_net_forward.1} parent=11 // pred_region
          _
        $region44: #{actor_net_forward.1} parent=11 // pred_fallthru
          _
      $region12: #{actor_net_forward.1} parent=5 // pred_fallthru
        _
      %p277 = scmp.lt.s32.totalorder %s18, 2
      // Predicated region
      $region45: #{actor_net_forward.1} parent=5 // pred_check
        %p278 = pneg %p277
      $region46: #{actor_net_forward.1} parent=5 // pred_check_branch
        %280 = sbr.rel (%p278) target = $region48
      $region47: #{actor_net_forward.1} parent=5 // pred_region
        // Predicated region
        $region49: #{actor_net_forward.1} parent=47 // pred_check
          %p281 = pneg %p38
        $region50: #{actor_net_forward.1} parent=47 // pred_check_branch
          %283 = sbr.rel (%p281) target = $region52
        $region51: #{actor_net_forward.1} parent=47 // pred_region
          %p284 = scmp.lt.s32.totalorder %s18, 1
          %s285 = scalar_select %p284, %s18, 1
          %s286 = smul.addr %s285, 32
          %s287 = smul.addr %s286, 8
          %s288 = scalar_lea.vmem %s0, %s287
        $region52: #{actor_net_forward.1} parent=47 // pred_fallthru
          _
      $region48: #{actor_net_forward.1} parent=5 // pred_fallthru
        _
      %p289 = scmp.le.s32.totalorder 1, %s18
      %p290 = scmp.lt.s32.totalorder %s18, 3
      %p291 = pnand %p289, %p290
      %p292 = pneg %p291
      // Predicated region
      $region53: #{actor_net_forward.1} parent=5 // pred_check
        _
      $region54: #{actor_net_forward.1} parent=5 // pred_check_branch
        %294 = sbr.rel (%p291) target = $region56
      $region55: #{actor_net_forward.1} parent=5 // pred_region
        %s295 = ssub.s32 %s18, 1
        %p296 = scmp.lt.s32.totalorder %s23, 1
        %s297 = scalar_select %p296, %s23, 1
        %s298 = smul.addr %s297, 32
        %s299 = smul.addr %s298, 8
        %s300 = scalar_lea.vmem %s0, %s299
        %p301 = pneg %p44
        %p302 = pneg %p41
        %p303 = pneg %p65
        %p304 = pneg %p62
        %p305 = pneg %p86
        %p306 = pneg %p83
        %p307 = pneg %p107
        %p308 = pneg %p104
        %p309 = pneg %p128
        %p310 = pneg %p125
        %p311 = pneg %p149
        %p312 = pneg %p146
        %p313 = pneg %p170
        %p314 = pneg %p167
        %p315 = pneg %p191
        %p316 = pneg %p188
        %p317 = pneg %p212
        %p318 = pneg %p209
        %p319 = pneg %p238
        %p320 = pneg %p235
        %s321 = sand.u32 %s225, 1
        %s322 = scalar_lea.sflag [#allocation4], %s321
        %s323 = sand.u32 %s225, 1
        %s324 = scalar_lea.vmem [#allocation3], %s323
        %p325 = scmp.lt.s32.totalorder %s23, 1
        %s326 = scalar_select %p325, %s23, 1
        %s327 = smul.addr %s326, 32
        %s328 = smul.addr %s327, 8
        %s329 = scalar_lea.vmem %s0, %s328
        %v330 = vld [vmem:[%s1] sm:$0xff]
        %v331 = vld [vmem:[%s1 + $0x8] sm:$0xff]
        %v332 = vld [vmem:[%s1 + $0x10] sm:$0xff]
        %v333 = vld [vmem:[%s1 + $0x18] sm:$0xff]
        %v334 = vld [vmem:[%s329] sm:$0xff]
        %v335 = vld [vmem:[%s329 + $0x8] sm:$0xff]
        %v336 = vld [vmem:[%s329 + $0x10] sm:$0xff]
        %v337 = vld [vmem:[%s329 + $0x18] sm:$0xff]
        %v338 = vld [vmem:[%s329 + $0x20] sm:$0xff]
        %v339 = vld [vmem:[%s329 + $0x28] sm:$0xff]
        %v340 = vld [vmem:[%s329 + $0x30] sm:$0xff]
        %v341 = vld [vmem:[%s329 + $0x38] sm:$0xff]
        %v342 = vld [vmem:[%s329 + $0x40] sm:$0xff]
        %v343 = vld [vmem:[%s329 + $0x48] sm:$0xff]
        %v344 = vld [vmem:[%s329 + $0x50] sm:$0xff]
        %v345 = vld [vmem:[%s329 + $0x58] sm:$0xff]
        %v346 = vld [vmem:[%s329 + $0x60] sm:$0xff]
        %v347 = vld [vmem:[%s329 + $0x68] sm:$0xff]
        %v348 = vld [vmem:[%s329 + $0x70] sm:$0xff]
        %v349 = vld [vmem:[%s329 + $0x78] sm:$0xff]
        %v350 = vld [vmem:[%s329 + $0x80] sm:$0xff]
        %v351 = vld [vmem:[%s329 + $0x88] sm:$0xff]
        %v352 = vld [vmem:[%s329 + $0x90] sm:$0xff]
        %v353 = vld [vmem:[%s329 + $0x98] sm:$0xff]
        %v354 = vld [vmem:[%s329 + $0xa0] sm:$0xff]
        %v355 = vld [vmem:[%s329 + $0xa8] sm:$0xff]
        %v356 = vld [vmem:[%s329 + $0xb0] sm:$0xff]
        %v357 = vld [vmem:[%s329 + $0xb8] sm:$0xff]
        %v358 = vld [vmem:[%s329 + $0xc0] sm:$0xff]
        %v359 = vld [vmem:[%s329 + $0xc8] sm:$0xff]
        %v360 = vld [vmem:[%s329 + $0xd0] sm:$0xff]
        %v361 = vld [vmem:[%s329 + $0xd8] sm:$0xff]
        %v362 = vld [vmem:[%s329 + $0xe0] sm:$0xff]
        %v363 = vld [vmem:[%s329 + $0xe8] sm:$0xff]
        %v364 = vld [vmem:[%s329 + $0xf0] sm:$0xff]
        %v365 = vld [vmem:[%s329 + $0xf8] sm:$0xff]
        %v366 = vld [vmem:[%s2] sm:$0xff]
        %v367 = vld [vmem:[%s2 + $0x8] sm:$0xff]
        %v368 = vld [vmem:[%s2 + $0x10] sm:$0xff]
        %v369 = vld [vmem:[%s2 + $0x18] sm:$0xff]
        %371 = vset.pattern.permute.xlu0 0
        %372 = vperm.xlu0 %371, %v366
        %v373 = vpop.permute.xlu0 %372
        %376 = vset.pattern.permute.xlu0 0
        %377 = vperm.xlu0 %376, %v367
        %v378 = vpop.permute.xlu0 %377
        %381 = vset.pattern.permute.xlu0 0
        %382 = vperm.xlu0 %381, %v368
        %v383 = vpop.permute.xlu0 %382
        %386 = vset.pattern.permute.xlu0 0
        %387 = vperm.xlu0 %386, %v369
        %v388 = vpop.permute.xlu0 %387
        %390 = vmatprep.subr.mxu0 %v335
        %391 = vmatpush1.msra.mxu0 %v334
        %392 = vmatprep.subr.mxu0 %v337
        %393 = vmatpush1.msra.mxu0 %v336
        %394 = vmatprep.subr.mxu0 %v339
        %395 = vmatpush1.msra.mxu0 %v338
        %396 = vmatprep.subr.mxu0 %v341
        %397 = vmatpush1.msra.mxu0 %v340
        %398 = vmatprep.subr.mxu0 %v343
        %399 = vmatpush1.msra.mxu0 %v342
        %400 = vmatprep.subr.mxu0 %v345
        %401 = vmatpush1.msra.mxu0 %v344
        %402 = vmatprep.subr.mxu0 %v347
        %403 = vmatpush1.msra.mxu0 %v346
        %404 = vmatprep.subr.mxu0 %v349
        %405 = vmatpush1.msra.mxu0 %v348
        %406 = vmatprep.subr.mxu0 %v351
        %407 = vmatpush1.msra.mxu0 %v350
        %408 = vmatprep.subr.mxu0 %v353
        %409 = vmatpush1.msra.mxu0 %v352
        %410 = vmatprep.subr.mxu0 %v355
        %411 = vmatpush1.msra.mxu0 %v354
        %412 = vmatprep.subr.mxu0 %v357
        %413 = vmatpush1.msra.mxu0 %v356
        %414 = vmatprep.subr.mxu0 %v359
        %415 = vmatpush1.msra.mxu0 %v358
        %416 = vmatprep.subr.mxu0 %v361
        %417 = vmatpush1.msra.mxu0 %v360
        %418 = vmatprep.subr.mxu0 %v363
        %419 = vmatpush1.msra.mxu0 %v362
        %420 = vmatprep.subr.mxu0 %v365
        %421 = vmatpush1.msra.mxu0 %v364
        %422 = vmatprep.subr.mxu0 0.0
        %423 = vmatpush1.msra.mxu0 0.0
        %424 = vmatprep.subr.mxu0 0.0
        %425 = vmatpush1.msra.mxu0 0.0
        %426 = vmatprep.subr.mxu0 0.0
        %427 = vmatpush1.msra.mxu0 0.0
        %428 = vmatprep.subr.mxu0 0.0
        %429 = vmatpush1.msra.mxu0 0.0
        %430 = vmatprep.subr.mxu0 0.0
        %431 = vmatpush1.msra.mxu0 0.0
        %432 = vmatprep.subr.mxu0 0.0
        %433 = vmatpush1.msra.mxu0 0.0
        %434 = vmatprep.subr.mxu0 0.0
        %435 = vmatpush1.msra.mxu0 0.0
        %436 = vmatprep.subr.mxu0 0.0
        %437 = vmatpush1.msra.mxu0 0.0
        %438 = vmatprep.subr.mxu0 0.0
        %439 = vmatpush1.msra.mxu0 0.0
        %440 = vmatprep.subr.mxu0 0.0
        %441 = vmatpush1.msra.mxu0 0.0
        %442 = vmatprep.subr.mxu0 0.0
        %443 = vmatpush1.msra.mxu0 0.0
        %444 = vmatprep.subr.mxu0 0.0
        %445 = vmatpush1.msra.mxu0 0.0
        %446 = vmatprep.subr.mxu0 0.0
        %447 = vmatpush1.msra.mxu0 0.0
        %448 = vmatprep.subr.mxu0 0.0
        %449 = vmatpush1.msra.mxu0 0.0
        %450 = vmatprep.subr.mxu0 0.0
        %451 = vmatpush1.msra.mxu0 0.0
        %452 = vmatprep.subr.mxu0 0.0
        %453 = vmatpush1.msra.mxu0 0.0
        %454 = vmatprep.mubr.f32.mxu0 0.0
        %455 = vmatmul.mubr.f32.gmra.mrb[0].mxu0 %v330
        %v456 = vpop.f32.mrb[0].mxu0
        %v457 = vadd.f32 %v373, %v456
        %v458 = vpop.f32.mrb[0].mxu0
        %v459 = vadd.f32 %v373, %v458
        %460 = vmatprep.mubr.f32.mxu0 0.0
        %461 = vmatmul.mubr.f32.gmra.mrb[0].mxu0 %v331
        %v462 = vpop.f32.mrb[0].mxu0
        %v463 = vadd.f32 %v378, %v462
        %v464 = vpop.f32.mrb[0].mxu0
        %v465 = vadd.f32 %v378, %v464
        %466 = vmatprep.mubr.f32.mxu0 0.0
        %467 = vmatmul.mubr.f32.gmra.mrb[0].mxu0 %v332
        %v468 = vpop.f32.mrb[0].mxu0
        %v469 = vadd.f32 %v383, %v468
        %v470 = vpop.f32.mrb[0].mxu0
        %v471 = vadd.f32 %v383, %v470
        %472 = vmatprep.mubr.f32.mxu0 0.0
        %473 = vmatmul.mubr.f32.gmra.mrb[0].mxu0 %v333
        %v474 = vpop.f32.mrb[0].mxu0
        %v475 = vadd.f32 %v388, %v474
        %v476 = vpop.f32.mrb[0].mxu0
        %v477 = vadd.f32 %v388, %v476
        %478 = vdwg.mxu0
        %v479 = vmax.f32 %v457, 0.0
        %v480 = vmax.f32 %v459, 0.0
        %v481 = vmax.f32 %v463, 0.0
        %v482 = vmax.f32 %v465, 0.0
        %v483 = vmax.f32 %v469, 0.0
        %v484 = vmax.f32 %v471, 0.0
        %v485 = vmax.f32 %v475, 0.0
        %v486 = vmax.f32 %v477, 0.0
        %487 = vst [vmem:[#allocation2] sm:$0xff] %v479
        %vm488 = vcmask 130048
        %489 = vst.msk [vmem:[#allocation2 + $0x8] sm:$0xff] %vm488, %v480
        %490 = vst [vmem:[#allocation2 + $0x10] sm:$0xff] %v481
        %491 = vst.msk [vmem:[#allocation2 + $0x18] sm:$0xff] %vm488, %v482
        %492 = vst [vmem:[#allocation2 + $0x20] sm:$0xff] %v483
        %493 = vst.msk [vmem:[#allocation2 + $0x28] sm:$0xff] %vm488, %v484
        %494 = vst [vmem:[#allocation2 + $0x30] sm:$0xff] %v485
        %495 = vst.msk [vmem:[#allocation2 + $0x38] sm:$0xff] %vm488, %v486
        %v496 = vld [vmem:[#allocation2] ss:$8 sm:$0x3]
        %v497 = vld [vmem:[%s3] sm:$0xff]
        %v498 = vld [vmem:[%s3 + $0x8] sm:$0xff]
        %v499 = vld [vmem:[%s3 + $0x10] sm:$0xff]
        %v500 = vld [vmem:[%s3 + $0x18] sm:$0xff]
        %v501 = vld [vmem:[%s3 + $0x20] sm:$0xff]
        %v502 = vld [vmem:[%s3 + $0x28] sm:$0xff]
        %v503 = vld [vmem:[%s3 + $0x30] sm:$0xff]
        %v504 = vld [vmem:[%s3 + $0x38] sm:$0xff]
        %v505 = vld [vmem:[%s3 + $0x40] sm:$0xff]
        %v506 = vld [vmem:[%s3 + $0x48] sm:$0xff]
        %v507 = vld [vmem:[%s3 + $0x50] sm:$0xff]
        %v508 = vld [vmem:[%s3 + $0x58] sm:$0xff]
        %v509 = vld [vmem:[%s3 + $0x60] sm:$0xff]
        %v510 = vld [vmem:[%s3 + $0x68] sm:$0xff]
        %v511 = vld [vmem:[%s3 + $0x70] sm:$0xff]
        %v512 = vld [vmem:[%s3 + $0x78] sm:$0xff]
        %v513 = vld [vmem:[%s3 + $0x80] sm:$0xff]
        %v514 = vld [vmem:[%s3 + $0x88] sm:$0xff]
        %s515 = scalar_lea.vmem [#allocation2], 1
        %v516 = vld [vmem:[%s515] ss:$8 sm:$0x3]
        %s517 = scalar_lea.vmem %s3, 144
        %v518 = vld [vmem:[%s517] sm:$0xff]
        %v519 = vld [vmem:[%s517 + $0x8] sm:$0xff]
        %v520 = vld [vmem:[%s517 + $0x10] sm:$0xff]
        %v521 = vld [vmem:[%s517 + $0x18] sm:$0xff]
        %v522 = vld [vmem:[%s517 + $0x20] sm:$0xff]
        %v523 = vld [vmem:[%s517 + $0x28] sm:$0xff]
        %v524 = vld [vmem:[%s517 + $0x30] sm:$0xff]
        %v525 = vld [vmem:[%s517 + $0x38] sm:$0xff]
        %v526 = vld [vmem:[%s517 + $0x40] sm:$0xff]
        %v527 = vld [vmem:[%s517 + $0x48] sm:$0xff]
        %v528 = vld [vmem:[%s517 + $0x50] sm:$0xff]
        %v529 = vld [vmem:[%s517 + $0x58] sm:$0xff]
        %v530 = vld [vmem:[%s517 + $0x60] sm:$0xff]
        %v531 = vld [vmem:[%s517 + $0x68] sm:$0xff]
        %v532 = vld [vmem:[%s517 + $0x70] sm:$0xff]
        %v533 = vld [vmem:[%s517 + $0x78] sm:$0xff]
        %v534 = vld [vmem:[%s517 + $0x80] sm:$0xff]
        %v535 = vld [vmem:[%s517 + $0x88] sm:$0xff]
        %v537 = vlaneseq
        %v538 = vshrl.u32 %v537, 7
        %v539 = vsub.s32 0, %v538
        %v540 = vrot.slane %v516, %v539
        %v541 = vlaneseq
        %v542 = vshrl.u32 %v541, 7
        %v543 = vsub.s32 1, %v542
        %v544 = vrot.slane %v516, %v543
        %v546 = vsel %vm488, %v544, 0
        %548 = vmatprep.subr.mxu0 0.0
        %549 = vmatpush1.msra.mxu0 %v518
        %550 = vmatprep.subr.mxu0 0.0
        %551 = vmatpush1.msra.mxu0 %v519
        %552 = vmatprep.subr.mxu0 0.0
        %553 = vmatpush1.msra.mxu0 %v520
        %554 = vmatprep.subr.mxu0 0.0
        %555 = vmatpush1.msra.mxu0 %v521
        %556 = vmatprep.subr.mxu0 0.0
        %557 = vmatpush1.msra.mxu0 %v522
        %558 = vmatprep.subr.mxu0 0.0
        %559 = vmatpush1.msra.mxu0 %v523
        %560 = vmatprep.subr.mxu0 0.0
        %561 = vmatpush1.msra.mxu0 %v524
        %562 = vmatprep.subr.mxu0 0.0
        %563 = vmatpush1.msra.mxu0 %v525
        %564 = vmatprep.subr.mxu0 0.0
        %565 = vmatpush1.msra.mxu0 %v526
        %566 = vmatprep.subr.mxu0 0.0
        %567 = vmatpush1.msra.mxu0 %v527
        %568 = vmatprep.subr.mxu0 0.0
        %569 = vmatpush1.msra.mxu0 %v528
        %570 = vmatprep.subr.mxu0 0.0
        %571 = vmatpush1.msra.mxu0 %v529
        %572 = vmatprep.subr.mxu0 0.0
        %573 = vmatpush1.msra.mxu0 %v530
        %574 = vmatprep.subr.mxu0 0.0
        %575 = vmatpush1.msra.mxu0 %v531
        %576 = vmatprep.subr.mxu0 0.0
        %577 = vmatpush1.msra.mxu0 %v532
        %578 = vmatprep.subr.mxu0 0.0
        %579 = vmatpush1.msra.mxu0 %v533
        %580 = vmatprep.subr.mxu0 0.0
        %581 = vmatpush1.msra.mxu0 %v534
        %582 = vmatprep.subr.mxu0 0.0
        %583 = vmatpush1.msra.mxu0 %v535
        %584 = vmatprep.subr.mxu0 0.0
        %585 = vmatpush1.msra.mxu0 0.0
        %586 = vmatprep.subr.mxu0 0.0
        %587 = vmatpush1.msra.mxu0 0.0
        %588 = vmatprep.subr.mxu0 0.0
        %589 = vmatpush1.msra.mxu0 0.0
        %590 = vmatprep.subr.mxu0 0.0
        %591 = vmatpush1.msra.mxu0 0.0
        %592 = vmatprep.subr.mxu0 0.0
        %593 = vmatpush1.msra.mxu0 0.0
        %594 = vmatprep.subr.mxu0 0.0
        %595 = vmatpush1.msra.mxu0 0.0
        %596 = vmatprep.subr.mxu0 0.0
        %597 = vmatpush1.msra.mxu0 0.0
        %598 = vmatprep.subr.mxu0 0.0
        %599 = vmatpush1.msra.mxu0 0.0
        %600 = vmatprep.subr.mxu0 0.0
        %601 = vmatpush1.msra.mxu0 0.0
        %602 = vmatprep.subr.mxu0 0.0
        %603 = vmatpush1.msra.mxu0 0.0
        %604 = vmatprep.subr.mxu0 0.0
        %605 = vmatpush1.msra.mxu0 0.0
        %606 = vmatprep.subr.mxu0 0.0
        %607 = vmatpush1.msra.mxu0 0.0
        %608 = vmatprep.subr.mxu0 0.0
        %609 = vmatpush1.msra.mxu0 0.0
        %610 = vmatprep.subr.mxu0 0.0
        %611 = vmatpush1.msra.mxu0 0.0
        %612 = vmatprep.mubr.f32.mxu0 %v546
        %613 = vmatmul.mubr.f32.gmra.mrb[0].mxu0 %v540
        %v614 = vpop.f32.mrb[0].mxu0
        %v615 = vadd.f32 0.0, %v614
        %v616 = vpop.f32.mrb[0].mxu0
        %617 = vdwg.mxu0
        %v619 = vlaneseq
        %v620 = vshrl.u32 %v619, 7
        %v621 = vsub.s32 0, %v620
        %v622 = vrot.slane %v496, %v621
        %v623 = vlaneseq
        %v624 = vshrl.u32 %v623, 7
        %v625 = vsub.s32 1, %v624
        %v626 = vrot.slane %v496, %v625
        %v628 = vsel %vm488, %v626, 0
        %630 = vmatprep.subr.mxu0 0.0
        %631 = vmatpush1.msra.mxu0 %v497
        %632 = vmatprep.subr.mxu0 0.0
        %633 = vmatpush1.msra.mxu0 %v498
        %634 = vmatprep.subr.mxu0 0.0
        %635 = vmatpush1.msra.mxu0 %v499
        %636 = vmatprep.subr.mxu0 0.0
        %637 = vmatpush1.msra.mxu0 %v500
        %638 = vmatprep.subr.mxu0 0.0
        %639 = vmatpush1.msra.mxu0 %v501
        %640 = vmatprep.subr.mxu0 0.0
        %641 = vmatpush1.msra.mxu0 %v502
        %642 = vmatprep.subr.mxu0 0.0
        %643 = vmatpush1.msra.mxu0 %v503
        %644 = vmatprep.subr.mxu0 0.0
        %645 = vmatpush1.msra.mxu0 %v504
        %646 = vmatprep.subr.mxu0 0.0
        %647 = vmatpush1.msra.mxu0 %v505
        %648 = vmatprep.subr.mxu0 0.0
        %649 = vmatpush1.msra.mxu0 %v506
        %650 = vmatprep.subr.mxu0 0.0
        %651 = vmatpush1.msra.mxu0 %v507
        %652 = vmatprep.subr.mxu0 0.0
        %653 = vmatpush1.msra.mxu0 %v508
        %654 = vmatprep.subr.mxu0 0.0
        %655 = vmatpush1.msra.mxu0 %v509
        %656 = vmatprep.subr.mxu0 0.0
        %657 = vmatpush1.msra.mxu0 %v510
        %658 = vmatprep.subr.mxu0 0.0
        %659 = vmatpush1.msra.mxu0 %v511
        %660 = vmatprep.subr.mxu0 0.0
        %661 = vmatpush1.msra.mxu0 %v512
        %662 = vmatprep.subr.mxu0 0.0
        %663 = vmatpush1.msra.mxu0 %v513
        %664 = vmatprep.subr.mxu0 0.0
        %665 = vmatpush1.msra.mxu0 %v514
        %666 = vmatprep.subr.mxu0 0.0
        %667 = vmatpush1.msra.mxu0 0.0
        %668 = vmatprep.subr.mxu0 0.0
        %669 = vmatpush1.msra.mxu0 0.0
        %670 = vmatprep.subr.mxu0 0.0
        %671 = vmatpush1.msra.mxu0 0.0
        %672 = vmatprep.subr.mxu0 0.0
        %673 = vmatpush1.msra.mxu0 0.0
        %674 = vmatprep.subr.mxu0 0.0
        %675 = vmatpush1.msra.mxu0 0.0
        %676 = vmatprep.subr.mxu0 0.0
        %677 = vmatpush1.msra.mxu0 0.0
        %678 = vmatprep.subr.mxu0 0.0
        %679 = vmatpush1.msra.mxu0 0.0
        %680 = vmatprep.subr.mxu0 0.0
        %681 = vmatpush1.msra.mxu0 0.0
        %682 = vmatprep.subr.mxu0 0.0
        %683 = vmatpush1.msra.mxu0 0.0
        %684 = vmatprep.subr.mxu0 0.0
        %685 = vmatpush1.msra.mxu0 0.0
        %686 = vmatprep.subr.mxu0 0.0
        %687 = vmatpush1.msra.mxu0 0.0
        %688 = vmatprep.subr.mxu0 0.0
        %689 = vmatpush1.msra.mxu0 0.0
        %690 = vmatprep.subr.mxu0 0.0
        %691 = vmatpush1.msra.mxu0 0.0
        %692 = vmatprep.subr.mxu0 0.0
        %693 = vmatpush1.msra.mxu0 0.0
        %694 = vmatprep.mubr.f32.mxu0 %v628
        %695 = vmatmul.mubr.f32.gmra.mrb[0].mxu0 %v622
        %v696 = vpop.f32.mrb[0].mxu0
        %v697 = vadd.f32 %v615, %v696
        %v698 = vpop.f32.mrb[0].mxu0
        %699 = vdwg.mxu0
        %s700 = scalar_lea.vmem [#allocation2], 2
        %v701 = vld [vmem:[%s700] ss:$8 sm:$0x3]
        %s702 = scalar_lea.vmem %s3, 288
        %v703 = vld [vmem:[%s702] sm:$0xff]
        %v704 = vld [vmem:[%s702 + $0x8] sm:$0xff]
        %v705 = vld [vmem:[%s702 + $0x10] sm:$0xff]
        %v706 = vld [vmem:[%s702 + $0x18] sm:$0xff]
        %v707 = vld [vmem:[%s702 + $0x20] sm:$0xff]
        %v708 = vld [vmem:[%s702 + $0x28] sm:$0xff]
        %v709 = vld [vmem:[%s702 + $0x30] sm:$0xff]
        %v710 = vld [vmem:[%s702 + $0x38] sm:$0xff]
        %v711 = vld [vmem:[%s702 + $0x40] sm:$0xff]
        %v712 = vld [vmem:[%s702 + $0x48] sm:$0xff]
        %v713 = vld [vmem:[%s702 + $0x50] sm:$0xff]
        %v714 = vld [vmem:[%s702 + $0x58] sm:$0xff]
        %v715 = vld [vmem:[%s702 + $0x60] sm:$0xff]
        %v716 = vld [vmem:[%s702 + $0x68] sm:$0xff]
        %v717 = vld [vmem:[%s702 + $0x70] sm:$0xff]
        %v718 = vld [vmem:[%s702 + $0x78] sm:$0xff]
        %v719 = vld [vmem:[%s702 + $0x80] sm:$0xff]
        %v720 = vld [vmem:[%s702 + $0x88] sm:$0xff]
        %v722 = vlaneseq
        %v723 = vshrl.u32 %v722, 7
        %v724 = vsub.s32 0, %v723
        %v725 = vrot.slane %v701, %v724
        %v726 = vlaneseq
        %v727 = vshrl.u32 %v726, 7
        %v728 = vsub.s32 1, %v727
        %v729 = vrot.slane %v701, %v728
        %v731 = vsel %vm488, %v729, 0
        %733 = vmatprep.subr.mxu0 0.0
        %734 = vmatpush1.msra.mxu0 %v703
        %735 = vmatprep.subr.mxu0 0.0
        %736 = vmatpush1.msra.mxu0 %v704
        %737 = vmatprep.subr.mxu0 0.0
        %738 = vmatpush1.msra.mxu0 %v705
        %739 = vmatprep.subr.mxu0 0.0
        %740 = vmatpush1.msra.mxu0 %v706
        %741 = vmatprep.subr.mxu0 0.0
        %742 = vmatpush1.msra.mxu0 %v707
        %743 = vmatprep.subr.mxu0 0.0
        %744 = vmatpush1.msra.mxu0 %v708
        %745 = vmatprep.subr.mxu0 0.0
        %746 = vmatpush1.msra.mxu0 %v709
        %747 = vmatprep.subr.mxu0 0.0
        %748 = vmatpush1.msra.mxu0 %v710
        %749 = vmatprep.subr.mxu0 0.0
        %750 = vmatpush1.msra.mxu0 %v711
        %751 = vmatprep.subr.mxu0 0.0
        %752 = vmatpush1.msra.mxu0 %v712
        %753 = vmatprep.subr.mxu0 0.0
        %754 = vmatpush1.msra.mxu0 %v713
        %755 = vmatprep.subr.mxu0 0.0
        %756 = vmatpush1.msra.mxu0 %v714
        %757 = vmatprep.subr.mxu0 0.0
        %758 = vmatpush1.msra.mxu0 %v715
        %759 = vmatprep.subr.mxu0 0.0
        %760 = vmatpush1.msra.mxu0 %v716
        %761 = vmatprep.subr.mxu0 0.0
        %762 = vmatpush1.msra.mxu0 %v717
        %763 = vmatprep.subr.mxu0 0.0
        %764 = vmatpush1.msra.mxu0 %v718
        %765 = vmatprep.subr.mxu0 0.0
        %766 = vmatpush1.msra.mxu0 %v719
        %767 = vmatprep.subr.mxu0 0.0
        %768 = vmatpush1.msra.mxu0 %v720
        %769 = vmatprep.subr.mxu0 0.0
        %770 = vmatpush1.msra.mxu0 0.0
        %771 = vmatprep.subr.mxu0 0.0
        %772 = vmatpush1.msra.mxu0 0.0
        %773 = vmatprep.subr.mxu0 0.0
        %774 = vmatpush1.msra.mxu0 0.0
        %775 = vmatprep.subr.mxu0 0.0
        %776 = vmatpush1.msra.mxu0 0.0
        %777 = vmatprep.subr.mxu0 0.0
        %778 = vmatpush1.msra.mxu0 0.0
        %779 = vmatprep.subr.mxu0 0.0
        %780 = vmatpush1.msra.mxu0 0.0
        %781 = vmatprep.subr.mxu0 0.0
        %782 = vmatpush1.msra.mxu0 0.0
        %783 = vmatprep.subr.mxu0 0.0
        %784 = vmatpush1.msra.mxu0 0.0
        %785 = vmatprep.subr.mxu0 0.0
        %786 = vmatpush1.msra.mxu0 0.0
        %787 = vmatprep.subr.mxu0 0.0
        %788 = vmatpush1.msra.mxu0 0.0
        %789 = vmatprep.subr.mxu0 0.0
        %790 = vmatpush1.msra.mxu0 0.0
        %791 = vmatprep.subr.mxu0 0.0
        %792 = vmatpush1.msra.mxu0 0.0
        %793 = vmatprep.subr.mxu0 0.0
        %794 = vmatpush1.msra.mxu0 0.0
        %795 = vmatprep.subr.mxu0 0.0
        %796 = vmatpush1.msra.mxu0 0.0
        %797 = vmatprep.mubr.f32.mxu0 %v731
        %798 = vmatmul.mubr.f32.gmra.mrb[0].mxu0 %v725
        %v799 = vpop.f32.mrb[0].mxu0
        %v800 = vadd.f32 0.0, %v799
        %v801 = vpop.f32.mrb[0].mxu0
        %802 = vdwg.mxu0
        %v803 = vadd.f32 %v697, %v800
        %s804 = scalar_lea.vmem [#allocation2], 3
        %v805 = vld [vmem:[%s804] ss:$8 sm:$0x3]
        %s806 = scalar_lea.vmem %s3, 432
        %v807 = vld [vmem:[%s806] sm:$0xff]
        %v808 = vld [vmem:[%s806 + $0x8] sm:$0xff]
        %v809 = vld [vmem:[%s806 + $0x10] sm:$0xff]
        %v810 = vld [vmem:[%s806 + $0x18] sm:$0xff]
        %v811 = vld [vmem:[%s806 + $0x20] sm:$0xff]
        %v812 = vld [vmem:[%s806 + $0x28] sm:$0xff]
        %v813 = vld [vmem:[%s806 + $0x30] sm:$0xff]
        %v814 = vld [vmem:[%s806 + $0x38] sm:$0xff]
        %v815 = vld [vmem:[%s806 + $0x40] sm:$0xff]
        %v816 = vld [vmem:[%s806 + $0x48] sm:$0xff]
        %v817 = vld [vmem:[%s806 + $0x50] sm:$0xff]
        %v818 = vld [vmem:[%s806 + $0x58] sm:$0xff]
        %v819 = vld [vmem:[%s806 + $0x60] sm:$0xff]
        %v820 = vld [vmem:[%s806 + $0x68] sm:$0xff]
        %v821 = vld [vmem:[%s806 + $0x70] sm:$0xff]
        %v822 = vld [vmem:[%s806 + $0x78] sm:$0xff]
        %v823 = vld [vmem:[%s806 + $0x80] sm:$0xff]
        %v824 = vld [vmem:[%s806 + $0x88] sm:$0xff]
        %v826 = vlaneseq
        %v827 = vshrl.u32 %v826, 7
        %v828 = vsub.s32 0, %v827
        %v829 = vrot.slane %v805, %v828
        %v830 = vlaneseq
        %v831 = vshrl.u32 %v830, 7
        %v832 = vsub.s32 1, %v831
        %v833 = vrot.slane %v805, %v832
        %v835 = vsel %vm488, %v833, 0
        %837 = vmatprep.subr.mxu0 0.0
        %838 = vmatpush1.msra.mxu0 %v807
        %839 = vmatprep.subr.mxu0 0.0
        %840 = vmatpush1.msra.mxu0 %v808
        %841 = vmatprep.subr.mxu0 0.0
        %842 = vmatpush1.msra.mxu0 %v809
        %843 = vmatprep.subr.mxu0 0.0
        %844 = vmatpush1.msra.mxu0 %v810
        %845 = vmatprep.subr.mxu0 0.0
        %846 = vmatpush1.msra.mxu0 %v811
        %847 = vmatprep.subr.mxu0 0.0
        %848 = vmatpush1.msra.mxu0 %v812
        %849 = vmatprep.subr.mxu0 0.0
        %850 = vmatpush1.msra.mxu0 %v813
        %851 = vmatprep.subr.mxu0 0.0
        %852 = vmatpush1.msra.mxu0 %v814
        %853 = vmatprep.subr.mxu0 0.0
        %854 = vmatpush1.msra.mxu0 %v815
        %855 = vmatprep.subr.mxu0 0.0
        %856 = vmatpush1.msra.mxu0 %v816
        %857 = vmatprep.subr.mxu0 0.0
        %858 = vmatpush1.msra.mxu0 %v817
        %859 = vmatprep.subr.mxu0 0.0
        %860 = vmatpush1.msra.mxu0 %v818
        %861 = vmatprep.subr.mxu0 0.0
        %862 = vmatpush1.msra.mxu0 %v819
        %863 = vmatprep.subr.mxu0 0.0
        %864 = vmatpush1.msra.mxu0 %v820
        %865 = vmatprep.subr.mxu0 0.0
        %866 = vmatpush1.msra.mxu0 %v821
        %867 = vmatprep.subr.mxu0 0.0
        %868 = vmatpush1.msra.mxu0 %v822
        %869 = vmatprep.subr.mxu0 0.0
        %870 = vmatpush1.msra.mxu0 %v823
        %871 = vmatprep.subr.mxu0 0.0
        %872 = vmatpush1.msra.mxu0 %v824
        %873 = vmatprep.subr.mxu0 0.0
        %874 = vmatpush1.msra.mxu0 0.0
        %875 = vmatprep.subr.mxu0 0.0
        %876 = vmatpush1.msra.mxu0 0.0
        %877 = vmatprep.subr.mxu0 0.0
        %878 = vmatpush1.msra.mxu0 0.0
        %879 = vmatprep.subr.mxu0 0.0
        %880 = vmatpush1.msra.mxu0 0.0
        %881 = vmatprep.subr.mxu0 0.0
        %882 = vmatpush1.msra.mxu0 0.0
        %883 = vmatprep.subr.mxu0 0.0
        %884 = vmatpush1.msra.mxu0 0.0
        %885 = vmatprep.subr.mxu0 0.0
        %886 = vmatpush1.msra.mxu0 0.0
        %887 = vmatprep.subr.mxu0 0.0
        %888 = vmatpush1.msra.mxu0 0.0
        %889 = vmatprep.subr.mxu0 0.0
        %890 = vmatpush1.msra.mxu0 0.0
        %891 = vmatprep.subr.mxu0 0.0
        %892 = vmatpush1.msra.mxu0 0.0
        %893 = vmatprep.subr.mxu0 0.0
        %894 = vmatpush1.msra.mxu0 0.0
        %895 = vmatprep.subr.mxu0 0.0
        %896 = vmatpush1.msra.mxu0 0.0
        %897 = vmatprep.subr.mxu0 0.0
        %898 = vmatpush1.msra.mxu0 0.0
        %899 = vmatprep.subr.mxu0 0.0
        %900 = vmatpush1.msra.mxu0 0.0
        %901 = vmatprep.mubr.f32.mxu0 %v835
        %902 = vmatmul.mubr.f32.gmra.mrb[0].mxu0 %v829
        %v903 = vpop.f32.mrb[0].mxu0
        %v904 = vadd.f32 0.0, %v903
        %v905 = vpop.f32.mrb[0].mxu0
        %906 = vdwg.mxu0
        %v907 = vadd.f32 %v803, %v904
        %s908 = scalar_lea.vmem [#allocation2], 4
        %v909 = vld [vmem:[%s908] ss:$8 sm:$0x3]
        %s910 = scalar_lea.vmem %s3, 576
        %v911 = vld [vmem:[%s910] sm:$0xff]
        %v912 = vld [vmem:[%s910 + $0x8] sm:$0xff]
        %v913 = vld [vmem:[%s910 + $0x10] sm:$0xff]
        %v914 = vld [vmem:[%s910 + $0x18] sm:$0xff]
        %v915 = vld [vmem:[%s910 + $0x20] sm:$0xff]
        %v916 = vld [vmem:[%s910 + $0x28] sm:$0xff]
        %v917 = vld [vmem:[%s910 + $0x30] sm:$0xff]
        %v918 = vld [vmem:[%s910 + $0x38] sm:$0xff]
        %v919 = vld [vmem:[%s910 + $0x40] sm:$0xff]
        %v920 = vld [vmem:[%s910 + $0x48] sm:$0xff]
        %v921 = vld [vmem:[%s910 + $0x50] sm:$0xff]
        %v922 = vld [vmem:[%s910 + $0x58] sm:$0xff]
        %v923 = vld [vmem:[%s910 + $0x60] sm:$0xff]
        %v924 = vld [vmem:[%s910 + $0x68] sm:$0xff]
        %v925 = vld [vmem:[%s910 + $0x70] sm:$0xff]
        %v926 = vld [vmem:[%s910 + $0x78] sm:$0xff]
        %v927 = vld [vmem:[%s910 + $0x80] sm:$0xff]
        %v928 = vld [vmem:[%s910 + $0x88] sm:$0xff]
        %v930 = vlaneseq
        %v931 = vshrl.u32 %v930, 7
        %v932 = vsub.s32 0, %v931
        %v933 = vrot.slane %v909, %v932
        %v934 = vlaneseq
        %v935 = vshrl.u32 %v934, 7
        %v936 = vsub.s32 1, %v935
        %v937 = vrot.slane %v909, %v936
        %v939 = vsel %vm488, %v937, 0
        %941 = vmatprep.subr.mxu0 0.0
        %942 = vmatpush1.msra.mxu0 %v911
        %943 = vmatprep.subr.mxu0 0.0
        %944 = vmatpush1.msra.mxu0 %v912
        %945 = vmatprep.subr.mxu0 0.0
        %946 = vmatpush1.msra.mxu0 %v913
        %947 = vmatprep.subr.mxu0 0.0
        %948 = vmatpush1.msra.mxu0 %v914
        %949 = vmatprep.subr.mxu0 0.0
        %950 = vmatpush1.msra.mxu0 %v915
        %951 = vmatprep.subr.mxu0 0.0
        %952 = vmatpush1.msra.mxu0 %v916
        %953 = vmatprep.subr.mxu0 0.0
        %954 = vmatpush1.msra.mxu0 %v917
        %955 = vmatprep.subr.mxu0 0.0
        %956 = vmatpush1.msra.mxu0 %v918
        %957 = vmatprep.subr.mxu0 0.0
        %958 = vmatpush1.msra.mxu0 %v919
        %959 = vmatprep.subr.mxu0 0.0
        %960 = vmatpush1.msra.mxu0 %v920
        %961 = vmatprep.subr.mxu0 0.0
        %962 = vmatpush1.msra.mxu0 %v921
        %963 = vmatprep.subr.mxu0 0.0
        %964 = vmatpush1.msra.mxu0 %v922
        %965 = vmatprep.subr.mxu0 0.0
        %966 = vmatpush1.msra.mxu0 %v923
        %967 = vmatprep.subr.mxu0 0.0
        %968 = vmatpush1.msra.mxu0 %v924
        %969 = vmatprep.subr.mxu0 0.0
        %970 = vmatpush1.msra.mxu0 %v925
        %971 = vmatprep.subr.mxu0 0.0
        %972 = vmatpush1.msra.mxu0 %v926
        %973 = vmatprep.subr.mxu0 0.0
        %974 = vmatpush1.msra.mxu0 %v927
        %975 = vmatprep.subr.mxu0 0.0
        %976 = vmatpush1.msra.mxu0 %v928
        %977 = vmatprep.subr.mxu0 0.0
        %978 = vmatpush1.msra.mxu0 0.0
        %979 = vmatprep.subr.mxu0 0.0
        %980 = vmatpush1.msra.mxu0 0.0
        %981 = vmatprep.subr.mxu0 0.0
        %982 = vmatpush1.msra.mxu0 0.0
        %983 = vmatprep.subr.mxu0 0.0
        %984 = vmatpush1.msra.mxu0 0.0
        %985 = vmatprep.subr.mxu0 0.0
        %986 = vmatpush1.msra.mxu0 0.0
        %987 = vmatprep.subr.mxu0 0.0
        %988 = vmatpush1.msra.mxu0 0.0
        %989 = vmatprep.subr.mxu0 0.0
        %990 = vmatpush1.msra.mxu0 0.0
        %991 = vmatprep.subr.mxu0 0.0
        %992 = vmatpush1.msra.mxu0 0.0
        %993 = vmatprep.subr.mxu0 0.0
        %994 = vmatpush1.msra.mxu0 0.0
        %995 = vmatprep.subr.mxu0 0.0
        %996 = vmatpush1.msra.mxu0 0.0
        %997 = vmatprep.subr.mxu0 0.0
        %998 = vmatpush1.msra.mxu0 0.0
        %999 = vmatprep.subr.mxu0 0.0
        %1000 = vmatpush1.msra.mxu0 0.0
        %1001 = vmatprep.subr.mxu0 0.0
        %1002 = vmatpush1.msra.mxu0 0.0
        %1003 = vmatprep.subr.mxu0 0.0
        %1004 = vmatpush1.msra.mxu0 0.0
        %1005 = vmatprep.mubr.f32.mxu0 %v939
        %1006 = vmatmul.mubr.f32.gmra.mrb[0].mxu0 %v933
        %v1007 = vpop.f32.mrb[0].mxu0
        %v1008 = vadd.f32 0.0, %v1007
        %v1009 = vpop.f32.mrb[0].mxu0
        %1010 = vdwg.mxu0
        %v1011 = vadd.f32 %v907, %v1008
        %s1012 = scalar_lea.vmem [#allocation2], 5
        %v1013 = vld [vmem:[%s1012] ss:$8 sm:$0x3]
        %s1014 = scalar_lea.vmem %s3, 720
        %v1015 = vld [vmem:[%s1014] sm:$0xff]
        %v1016 = vld [vmem:[%s1014 + $0x8] sm:$0xff]
        %v1017 = vld [vmem:[%s1014 + $0x10] sm:$0xff]
        %v1018 = vld [vmem:[%s1014 + $0x18] sm:$0xff]
        %v1019 = vld [vmem:[%s1014 + $0x20] sm:$0xff]
        %v1020 = vld [vmem:[%s1014 + $0x28] sm:$0xff]
        %v1021 = vld [vmem:[%s1014 + $0x30] sm:$0xff]
        %v1022 = vld [vmem:[%s1014 + $0x38] sm:$0xff]
        %v1023 = vld [vmem:[%s1014 + $0x40] sm:$0xff]
        %v1024 = vld [vmem:[%s1014 + $0x48] sm:$0xff]
        %v1025 = vld [vmem:[%s1014 + $0x50] sm:$0xff]
        %v1026 = vld [vmem:[%s1014 + $0x58] sm:$0xff]
        %v1027 = vld [vmem:[%s1014 + $0x60] sm:$0xff]
        %v1028 = vld [vmem:[%s1014 + $0x68] sm:$0xff]
        %v1029 = vld [vmem:[%s1014 + $0x70] sm:$0xff]
        %v1030 = vld [vmem:[%s1014 + $0x78] sm:$0xff]
        %v1031 = vld [vmem:[%s1014 + $0x80] sm:$0xff]
        %v1032 = vld [vmem:[%s1014 + $0x88] sm:$0xff]
        %v1034 = vlaneseq
        %v1035 = vshrl.u32 %v1034, 7
        %v1036 = vsub.s32 0, %v1035
        %v1037 = vrot.slane %v1013, %v1036
        %v1038 = vlaneseq
        %v1039 = vshrl.u32 %v1038, 7
        %v1040 = vsub.s32 1, %v1039
        %v1041 = vrot.slane %v1013, %v1040
        %v1043 = vsel %vm488, %v1041, 0
        %1045 = vmatprep.subr.mxu0 0.0
        %1046 = vmatpush1.msra.mxu0 %v1015
        %1047 = vmatprep.subr.mxu0 0.0
        %1048 = vmatpush1.msra.mxu0 %v1016
        %1049 = vmatprep.subr.mxu0 0.0
        %1050 = vmatpush1.msra.mxu0 %v1017
        %1051 = vmatprep.subr.mxu0 0.0
        %1052 = vmatpush1.msra.mxu0 %v1018
        %1053 = vmatprep.subr.mxu0 0.0
        %1054 = vmatpush1.msra.mxu0 %v1019
        %1055 = vmatprep.subr.mxu0 0.0
        %1056 = vmatpush1.msra.mxu0 %v1020
        %1057 = vmatprep.subr.mxu0 0.0
        %1058 = vmatpush1.msra.mxu0 %v1021
        %1059 = vmatprep.subr.mxu0 0.0
        %1060 = vmatpush1.msra.mxu0 %v1022
        %1061 = vmatprep.subr.mxu0 0.0
        %1062 = vmatpush1.msra.mxu0 %v1023
        %1063 = vmatprep.subr.mxu0 0.0
        %1064 = vmatpush1.msra.mxu0 %v1024
        %1065 = vmatprep.subr.mxu0 0.0
        %1066 = vmatpush1.msra.mxu0 %v1025
        %1067 = vmatprep.subr.mxu0 0.0
        %1068 = vmatpush1.msra.mxu0 %v1026
        %1069 = vmatprep.subr.mxu0 0.0
        %1070 = vmatpush1.msra.mxu0 %v1027
        %1071 = vmatprep.subr.mxu0 0.0
        %1072 = vmatpush1.msra.mxu0 %v1028
        %1073 = vmatprep.subr.mxu0 0.0
        %1074 = vmatpush1.msra.mxu0 %v1029
        %1075 = vmatprep.subr.mxu0 0.0
        %1076 = vmatpush1.msra.mxu0 %v1030
        %1077 = vmatprep.subr.mxu0 0.0
        %1078 = vmatpush1.msra.mxu0 %v1031
        %1079 = vmatprep.subr.mxu0 0.0
        %1080 = vmatpush1.msra.mxu0 %v1032
        %1081 = vmatprep.subr.mxu0 0.0
        %1082 = vmatpush1.msra.mxu0 0.0
        %1083 = vmatprep.subr.mxu0 0.0
        %1084 = vmatpush1.msra.mxu0 0.0
        %1085 = vmatprep.subr.mxu0 0.0
        %1086 = vmatpush1.msra.mxu0 0.0
        %1087 = vmatprep.subr.mxu0 0.0
        %1088 = vmatpush1.msra.mxu0 0.0
        %1089 = vmatprep.subr.mxu0 0.0
        %1090 = vmatpush1.msra.mxu0 0.0
        %1091 = vmatprep.subr.mxu0 0.0
        %1092 = vmatpush1.msra.mxu0 0.0
        %1093 = vmatprep.subr.mxu0 0.0
        %1094 = vmatpush1.msra.mxu0 0.0
        %1095 = vmatprep.subr.mxu0 0.0
        %1096 = vmatpush1.msra.mxu0 0.0
        %1097 = vmatprep.subr.mxu0 0.0
        %1098 = vmatpush1.msra.mxu0 0.0
        %1099 = vmatprep.subr.mxu0 0.0
        %1100 = vmatpush1.msra.mxu0 0.0
        %1101 = vmatprep.subr.mxu0 0.0
        %1102 = vmatpush1.msra.mxu0 0.0
        %1103 = vmatprep.subr.mxu0 0.0
        %1104 = vmatpush1.msra.mxu0 0.0
        %1105 = vmatprep.subr.mxu0 0.0
        %1106 = vmatpush1.msra.mxu0 0.0
        %1107 = vmatprep.subr.mxu0 0.0
        %1108 = vmatpush1.msra.mxu0 0.0
        %1109 = vmatprep.mubr.f32.mxu0 %v1043
        %1110 = vmatmul.mubr.f32.gmra.mrb[0].mxu0 %v1037
        %v1111 = vpop.f32.mrb[0].mxu0
        %v1112 = vadd.f32 0.0, %v1111
        %v1113 = vpop.f32.mrb[0].mxu0
        %1114 = vdwg.mxu0
        %v1115 = vadd.f32 %v1011, %v1112
        %s1116 = scalar_lea.vmem [#allocation2], 6
        %v1117 = vld [vmem:[%s1116] ss:$8 sm:$0x3]
        %s1118 = scalar_lea.vmem %s3, 864
        %v1119 = vld [vmem:[%s1118] sm:$0xff]
        %v1120 = vld [vmem:[%s1118 + $0x8] sm:$0xff]
        %v1121 = vld [vmem:[%s1118 + $0x10] sm:$0xff]
        %v1122 = vld [vmem:[%s1118 + $0x18] sm:$0xff]
        %v1123 = vld [vmem:[%s1118 + $0x20] sm:$0xff]
        %v1124 = vld [vmem:[%s1118 + $0x28] sm:$0xff]
        %v1125 = vld [vmem:[%s1118 + $0x30] sm:$0xff]
        %v1126 = vld [vmem:[%s1118 + $0x38] sm:$0xff]
        %v1127 = vld [vmem:[%s1118 + $0x40] sm:$0xff]
        %v1128 = vld [vmem:[%s1118 + $0x48] sm:$0xff]
        %v1129 = vld [vmem:[%s1118 + $0x50] sm:$0xff]
        %v1130 = vld [vmem:[%s1118 + $0x58] sm:$0xff]
        %v1131 = vld [vmem:[%s1118 + $0x60] sm:$0xff]
        %v1132 = vld [vmem:[%s1118 + $0x68] sm:$0xff]
        %v1133 = vld [vmem:[%s1118 + $0x70] sm:$0xff]
        %v1134 = vld [vmem:[%s1118 + $0x78] sm:$0xff]
        %v1135 = vld [vmem:[%s1118 + $0x80] sm:$0xff]
        %v1136 = vld [vmem:[%s1118 + $0x88] sm:$0xff]
        %v1138 = vlaneseq
        %v1139 = vshrl.u32 %v1138, 7
        %v1140 = vsub.s32 0, %v1139
        %v1141 = vrot.slane %v1117, %v1140
        %v1142 = vlaneseq
        %v1143 = vshrl.u32 %v1142, 7
        %v1144 = vsub.s32 1, %v1143
        %v1145 = vrot.slane %v1117, %v1144
        %v1147 = vsel %vm488, %v1145, 0
        %1149 = vmatprep.subr.mxu0 0.0
        %1150 = vmatpush1.msra.mxu0 %v1119
        %1151 = vmatprep.subr.mxu0 0.0
        %1152 = vmatpush1.msra.mxu0 %v1120
        %1153 = vmatprep.subr.mxu0 0.0
        %1154 = vmatpush1.msra.mxu0 %v1121
        %1155 = vmatprep.subr.mxu0 0.0
        %1156 = vmatpush1.msra.mxu0 %v1122
        %1157 = vmatprep.subr.mxu0 0.0
        %1158 = vmatpush1.msra.mxu0 %v1123
        %1159 = vmatprep.subr.mxu0 0.0
        %1160 = vmatpush1.msra.mxu0 %v1124
        %1161 = vmatprep.subr.mxu0 0.0
        %1162 = vmatpush1.msra.mxu0 %v1125
        %1163 = vmatprep.subr.mxu0 0.0
        %1164 = vmatpush1.msra.mxu0 %v1126
        %1165 = vmatprep.subr.mxu0 0.0
        %1166 = vmatpush1.msra.mxu0 %v1127
        %1167 = vmatprep.subr.mxu0 0.0
        %1168 = vmatpush1.msra.mxu0 %v1128
        %1169 = vmatprep.subr.mxu0 0.0
        %1170 = vmatpush1.msra.mxu0 %v1129
        %1171 = vmatprep.subr.mxu0 0.0
        %1172 = vmatpush1.msra.mxu0 %v1130
        %1173 = vmatprep.subr.mxu0 0.0
        %1174 = vmatpush1.msra.mxu0 %v1131
        %1175 = vmatprep.subr.mxu0 0.0
        %1176 = vmatpush1.msra.mxu0 %v1132
        %1177 = vmatprep.subr.mxu0 0.0
        %1178 = vmatpush1.msra.mxu0 %v1133
        %1179 = vmatprep.subr.mxu0 0.0
        %1180 = vmatpush1.msra.mxu0 %v1134
        %1181 = vmatprep.subr.mxu0 0.0
        %1182 = vmatpush1.msra.mxu0 %v1135
        %1183 = vmatprep.subr.mxu0 0.0
        %1184 = vmatpush1.msra.mxu0 %v1136
        %1185 = vmatprep.subr.mxu0 0.0
        %1186 = vmatpush1.msra.mxu0 0.0
        %1187 = vmatprep.subr.mxu0 0.0
        %1188 = vmatpush1.msra.mxu0 0.0
        %1189 = vmatprep.subr.mxu0 0.0
        %1190 = vmatpush1.msra.mxu0 0.0
        %1191 = vmatprep.subr.mxu0 0.0
        %1192 = vmatpush1.msra.mxu0 0.0
        %1193 = vmatprep.subr.mxu0 0.0
        %1194 = vmatpush1.msra.mxu0 0.0
        %1195 = vmatprep.subr.mxu0 0.0
        %1196 = vmatpush1.msra.mxu0 0.0
        %1197 = vmatprep.subr.mxu0 0.0
        %1198 = vmatpush1.msra.mxu0 0.0
        %1199 = vmatprep.subr.mxu0 0.0
        %1200 = vmatpush1.msra.mxu0 0.0
        %1201 = vmatprep.subr.mxu0 0.0
        %1202 = vmatpush1.msra.mxu0 0.0
        %1203 = vmatprep.subr.mxu0 0.0
        %1204 = vmatpush1.msra.mxu0 0.0
        %1205 = vmatprep.subr.mxu0 0.0
        %1206 = vmatpush1.msra.mxu0 0.0
        %1207 = vmatprep.subr.mxu0 0.0
        %1208 = vmatpush1.msra.mxu0 0.0
        %1209 = vmatprep.subr.mxu0 0.0
        %1210 = vmatpush1.msra.mxu0 0.0
        %1211 = vmatprep.subr.mxu0 0.0
        %1212 = vmatpush1.msra.mxu0 0.0
        %1213 = vmatprep.mubr.f32.mxu0 %v1147
        %1214 = vmatmul.mubr.f32.gmra.mrb[0].mxu0 %v1141
        %v1215 = vpop.f32.mrb[0].mxu0
        %v1216 = vadd.f32 0.0, %v1215
        %v1217 = vpop.f32.mrb[0].mxu0
        %1218 = vdwg.mxu0
        %v1219 = vadd.f32 %v1115, %v1216
        %s1220 = scalar_lea.vmem [#allocation2], 7
        %v1221 = vld [vmem:[%s1220] ss:$8 sm:$0x3]
        %s1222 = scalar_lea.vmem %s3, 1008
        %v1223 = vld [vmem:[%s1222] sm:$0xff]
        %v1224 = vld [vmem:[%s1222 + $0x8] sm:$0xff]
        %v1225 = vld [vmem:[%s1222 + $0x10] sm:$0xff]
        %v1226 = vld [vmem:[%s1222 + $0x18] sm:$0xff]
        %v1227 = vld [vmem:[%s1222 + $0x20] sm:$0xff]
        %v1228 = vld [vmem:[%s1222 + $0x28] sm:$0xff]
        %v1229 = vld [vmem:[%s1222 + $0x30] sm:$0xff]
        %v1230 = vld [vmem:[%s1222 + $0x38] sm:$0xff]
        %v1231 = vld [vmem:[%s1222 + $0x40] sm:$0xff]
        %v1232 = vld [vmem:[%s1222 + $0x48] sm:$0xff]
        %v1233 = vld [vmem:[%s1222 + $0x50] sm:$0xff]
        %v1234 = vld [vmem:[%s1222 + $0x58] sm:$0xff]
        %v1235 = vld [vmem:[%s1222 + $0x60] sm:$0xff]
        %v1236 = vld [vmem:[%s1222 + $0x68] sm:$0xff]
        %v1237 = vld [vmem:[%s1222 + $0x70] sm:$0xff]
        %v1238 = vld [vmem:[%s1222 + $0x78] sm:$0xff]
        %v1239 = vld [vmem:[%s1222 + $0x80] sm:$0xff]
        %v1240 = vld [vmem:[%s1222 + $0x88] sm:$0xff]
        %v1242 = vlaneseq
        %v1243 = vshrl.u32 %v1242, 7
        %v1244 = vsub.s32 0, %v1243
        %v1245 = vrot.slane %v1221, %v1244
        %v1246 = vlaneseq
        %v1247 = vshrl.u32 %v1246, 7
        %v1248 = vsub.s32 1, %v1247
        %v1249 = vrot.slane %v1221, %v1248
        %v1251 = vsel %vm488, %v1249, 0
        %1253 = vmatprep.subr.mxu0 0.0
        %1254 = vmatpush1.msra.mxu0 %v1223
        %1255 = vmatprep.subr.mxu0 0.0
        %1256 = vmatpush1.msra.mxu0 %v1224
        %1257 = vmatprep.subr.mxu0 0.0
        %1258 = vmatpush1.msra.mxu0 %v1225
        %1259 = vmatprep.subr.mxu0 0.0
        %1260 = vmatpush1.msra.mxu0 %v1226
        %1261 = vmatprep.subr.mxu0 0.0
        %1262 = vmatpush1.msra.mxu0 %v1227
        %1263 = vmatprep.subr.mxu0 0.0
        %1264 = vmatpush1.msra.mxu0 %v1228
        %1265 = vmatprep.subr.mxu0 0.0
        %1266 = vmatpush1.msra.mxu0 %v1229
        %1267 = vmatprep.subr.mxu0 0.0
        %1268 = vmatpush1.msra.mxu0 %v1230
        %1269 = vmatprep.subr.mxu0 0.0
        %1270 = vmatpush1.msra.mxu0 %v1231
        %1271 = vmatprep.subr.mxu0 0.0
        %1272 = vmatpush1.msra.mxu0 %v1232
        %1273 = vmatprep.subr.mxu0 0.0
        %1274 = vmatpush1.msra.mxu0 %v1233
        %1275 = vmatprep.subr.mxu0 0.0
        %1276 = vmatpush1.msra.mxu0 %v1234
        %1277 = vmatprep.subr.mxu0 0.0
        %1278 = vmatpush1.msra.mxu0 %v1235
        %1279 = vmatprep.subr.mxu0 0.0
        %1280 = vmatpush1.msra.mxu0 %v1236
        %1281 = vmatprep.subr.mxu0 0.0
        %1282 = vmatpush1.msra.mxu0 %v1237
        %1283 = vmatprep.subr.mxu0 0.0
        %1284 = vmatpush1.msra.mxu0 %v1238
        %1285 = vmatprep.subr.mxu0 0.0
        %1286 = vmatpush1.msra.mxu0 %v1239
        %1287 = vmatprep.subr.mxu0 0.0
        %1288 = vmatpush1.msra.mxu0 %v1240
        %1289 = vmatprep.subr.mxu0 0.0
        %1290 = vmatpush1.msra.mxu0 0.0
        %1291 = vmatprep.subr.mxu0 0.0
        %1292 = vmatpush1.msra.mxu0 0.0
        %1293 = vmatprep.subr.mxu0 0.0
        %1294 = vmatpush1.msra.mxu0 0.0
        %1295 = vmatprep.subr.mxu0 0.0
        %1296 = vmatpush1.msra.mxu0 0.0
        %1297 = vmatprep.subr.mxu0 0.0
        %1298 = vmatpush1.msra.mxu0 0.0
        %1299 = vmatprep.subr.mxu0 0.0
        %1300 = vmatpush1.msra.mxu0 0.0
        %1301 = vmatprep.subr.mxu0 0.0
        %1302 = vmatpush1.msra.mxu0 0.0
        %1303 = vmatprep.subr.mxu0 0.0
        %1304 = vmatpush1.msra.mxu0 0.0
        %1305 = vmatprep.subr.mxu0 0.0
        %1306 = vmatpush1.msra.mxu0 0.0
        %1307 = vmatprep.subr.mxu0 0.0
        %1308 = vmatpush1.msra.mxu0 0.0
        %1309 = vmatprep.subr.mxu0 0.0
        %1310 = vmatpush1.msra.mxu0 0.0
        %1311 = vmatprep.subr.mxu0 0.0
        %1312 = vmatpush1.msra.mxu0 0.0
        %1313 = vmatprep.subr.mxu0 0.0
        %1314 = vmatpush1.msra.mxu0 0.0
        %1315 = vmatprep.subr.mxu0 0.0
        %1316 = vmatpush1.msra.mxu0 0.0
        %1317 = vmatprep.mubr.f32.mxu0 %v1251
        %1318 = vmatmul.mubr.f32.gmra.mrb[0].mxu0 %v1245
        %v1319 = vpop.f32.mrb[0].mxu0
        %v1320 = vadd.f32 0.0, %v1319
        %v1321 = vpop.f32.mrb[0].mxu0
        %1322 = vdwg.mxu0
        %v1323 = vadd.f32 %v1219, %v1320
        %s1324 = scalar_lea.vmem [#allocation2], 16
        %v1325 = vld [vmem:[%s1324] ss:$8 sm:$0x3]
        %s1326 = scalar_lea.vmem %s3, 1152
        %v1327 = vld [vmem:[%s1326] sm:$0xff]
        %v1328 = vld [vmem:[%s1326 + $0x8] sm:$0xff]
        %v1329 = vld [vmem:[%s1326 + $0x10] sm:$0xff]
        %v1330 = vld [vmem:[%s1326 + $0x18] sm:$0xff]
        %v1331 = vld [vmem:[%s1326 + $0x20] sm:$0xff]
        %v1332 = vld [vmem:[%s1326 + $0x28] sm:$0xff]
        %v1333 = vld [vmem:[%s1326 + $0x30] sm:$0xff]
        %v1334 = vld [vmem:[%s1326 + $0x38] sm:$0xff]
        %v1335 = vld [vmem:[%s1326 + $0x40] sm:$0xff]
        %v1336 = vld [vmem:[%s1326 + $0x48] sm:$0xff]
        %v1337 = vld [vmem:[%s1326 + $0x50] sm:$0xff]
        %v1338 = vld [vmem:[%s1326 + $0x58] sm:$0xff]
        %v1339 = vld [vmem:[%s1326 + $0x60] sm:$0xff]
        %v1340 = vld [vmem:[%s1326 + $0x68] sm:$0xff]
        %v1341 = vld [vmem:[%s1326 + $0x70] sm:$0xff]
        %v1342 = vld [vmem:[%s1326 + $0x78] sm:$0xff]
        %v1343 = vld [vmem:[%s1326 + $0x80] sm:$0xff]
        %v1344 = vld [vmem:[%s1326 + $0x88] sm:$0xff]
        %v1346 = vlaneseq
        %v1347 = vshrl.u32 %v1346, 7
        %v1348 = vsub.s32 0, %v1347
        %v1349 = vrot.slane %v1325, %v1348
        %v1350 = vlaneseq
        %v1351 = vshrl.u32 %v1350, 7
        %v1352 = vsub.s32 1, %v1351
        %v1353 = vrot.slane %v1325, %v1352
        %v1355 = vsel %vm488, %v1353, 0
        %1357 = vmatprep.subr.mxu0 0.0
        %1358 = vmatpush1.msra.mxu0 %v1327
        %1359 = vmatprep.subr.mxu0 0.0
        %1360 = vmatpush1.msra.mxu0 %v1328
        %1361 = vmatprep.subr.mxu0 0.0
        %1362 = vmatpush1.msra.mxu0 %v1329
        %1363 = vmatprep.subr.mxu0 0.0
        %1364 = vmatpush1.msra.mxu0 %v1330
        %1365 = vmatprep.subr.mxu0 0.0
        %1366 = vmatpush1.msra.mxu0 %v1331
        %1367 = vmatprep.subr.mxu0 0.0
        %1368 = vmatpush1.msra.mxu0 %v1332
        %1369 = vmatprep.subr.mxu0 0.0
        %1370 = vmatpush1.msra.mxu0 %v1333
        %1371 = vmatprep.subr.mxu0 0.0
        %1372 = vmatpush1.msra.mxu0 %v1334
        %1373 = vmatprep.subr.mxu0 0.0
        %1374 = vmatpush1.msra.mxu0 %v1335
        %1375 = vmatprep.subr.mxu0 0.0
        %1376 = vmatpush1.msra.mxu0 %v1336
        %1377 = vmatprep.subr.mxu0 0.0
        %1378 = vmatpush1.msra.mxu0 %v1337
        %1379 = vmatprep.subr.mxu0 0.0
        %1380 = vmatpush1.msra.mxu0 %v1338
        %1381 = vmatprep.subr.mxu0 0.0
        %1382 = vmatpush1.msra.mxu0 %v1339
        %1383 = vmatprep.subr.mxu0 0.0
        %1384 = vmatpush1.msra.mxu0 %v1340
        %1385 = vmatprep.subr.mxu0 0.0
        %1386 = vmatpush1.msra.mxu0 %v1341
        %1387 = vmatprep.subr.mxu0 0.0
        %1388 = vmatpush1.msra.mxu0 %v1342
        %1389 = vmatprep.subr.mxu0 0.0
        %1390 = vmatpush1.msra.mxu0 %v1343
        %1391 = vmatprep.subr.mxu0 0.0
        %1392 = vmatpush1.msra.mxu0 %v1344
        %1393 = vmatprep.subr.mxu0 0.0
        %1394 = vmatpush1.msra.mxu0 0.0
        %1395 = vmatprep.subr.mxu0 0.0
        %1396 = vmatpush1.msra.mxu0 0.0
        %1397 = vmatprep.subr.mxu0 0.0
        %1398 = vmatpush1.msra.mxu0 0.0
        %1399 = vmatprep.subr.mxu0 0.0
        %1400 = vmatpush1.msra.mxu0 0.0
        %1401 = vmatprep.subr.mxu0 0.0
        %1402 = vmatpush1.msra.mxu0 0.0
        %1403 = vmatprep.subr.mxu0 0.0
        %1404 = vmatpush1.msra.mxu0 0.0
        %1405 = vmatprep.subr.mxu0 0.0
        %1406 = vmatpush1.msra.mxu0 0.0
        %1407 = vmatprep.subr.mxu0 0.0
        %1408 = vmatpush1.msra.mxu0 0.0
        %1409 = vmatprep.subr.mxu0 0.0
        %1410 = vmatpush1.msra.mxu0 0.0
        %1411 = vmatprep.subr.mxu0 0.0
        %1412 = vmatpush1.msra.mxu0 0.0
        %1413 = vmatprep.subr.mxu0 0.0
        %1414 = vmatpush1.msra.mxu0 0.0
        %1415 = vmatprep.subr.mxu0 0.0
        %1416 = vmatpush1.msra.mxu0 0.0
        %1417 = vmatprep.subr.mxu0 0.0
        %1418 = vmatpush1.msra.mxu0 0.0
        %1419 = vmatprep.subr.mxu0 0.0
        %1420 = vmatpush1.msra.mxu0 0.0
        %1421 = vmatprep.mubr.f32.mxu0 %v1355
        %1422 = vmatmul.mubr.f32.gmra.mrb[0].mxu0 %v1349
        %v1423 = vpop.f32.mrb[0].mxu0
        %v1424 = vadd.f32 0.0, %v1423
        %v1425 = vpop.f32.mrb[0].mxu0
        %1426 = vdwg.mxu0
        %v1427 = vadd.f32 %v1323, %v1424
        %s1428 = scalar_lea.vmem [#allocation2], 17
        %v1429 = vld [vmem:[%s1428] ss:$8 sm:$0x3]
        %s1430 = scalar_lea.vmem %s3, 1296
        %v1431 = vld [vmem:[%s1430] sm:$0xff]
        %v1432 = vld [vmem:[%s1430 + $0x8] sm:$0xff]
        %v1433 = vld [vmem:[%s1430 + $0x10] sm:$0xff]
        %v1434 = vld [vmem:[%s1430 + $0x18] sm:$0xff]
        %v1435 = vld [vmem:[%s1430 + $0x20] sm:$0xff]
        %v1436 = vld [vmem:[%s1430 + $0x28] sm:$0xff]
        %v1437 = vld [vmem:[%s1430 + $0x30] sm:$0xff]
        %v1438 = vld [vmem:[%s1430 + $0x38] sm:$0xff]
        %v1439 = vld [vmem:[%s1430 + $0x40] sm:$0xff]
        %v1440 = vld [vmem:[%s1430 + $0x48] sm:$0xff]
        %v1441 = vld [vmem:[%s1430 + $0x50] sm:$0xff]
        %v1442 = vld [vmem:[%s1430 + $0x58] sm:$0xff]
        %v1443 = vld [vmem:[%s1430 + $0x60] sm:$0xff]
        %v1444 = vld [vmem:[%s1430 + $0x68] sm:$0xff]
        %v1445 = vld [vmem:[%s1430 + $0x70] sm:$0xff]
        %v1446 = vld [vmem:[%s1430 + $0x78] sm:$0xff]
        %v1447 = vld [vmem:[%s1430 + $0x80] sm:$0xff]
        %v1448 = vld [vmem:[%s1430 + $0x88] sm:$0xff]
        %v1450 = vlaneseq
        %v1451 = vshrl.u32 %v1450, 7
        %v1452 = vsub.s32 0, %v1451
        %v1453 = vrot.slane %v1429, %v1452
        %v1454 = vlaneseq
        %v1455 = vshrl.u32 %v1454, 7
        %v1456 = vsub.s32 1, %v1455
        %v1457 = vrot.slane %v1429, %v1456
        %v1459 = vsel %vm488, %v1457, 0
        %1461 = vmatprep.subr.mxu0 0.0
        %1462 = vmatpush1.msra.mxu0 %v1431
        %1463 = vmatprep.subr.mxu0 0.0
        %1464 = vmatpush1.msra.mxu0 %v1432
        %1465 = vmatprep.subr.mxu0 0.0
        %1466 = vmatpush1.msra.mxu0 %v1433
        %1467 = vmatprep.subr.mxu0 0.0
        %1468 = vmatpush1.msra.mxu0 %v1434
        %1469 = vmatprep.subr.mxu0 0.0
        %1470 = vmatpush1.msra.mxu0 %v1435
        %1471 = vmatprep.subr.mxu0 0.0
        %1472 = vmatpush1.msra.mxu0 %v1436
        %1473 = vmatprep.subr.mxu0 0.0
        %1474 = vmatpush1.msra.mxu0 %v1437
        %1475 = vmatprep.subr.mxu0 0.0
        %1476 = vmatpush1.msra.mxu0 %v1438
        %1477 = vmatprep.subr.mxu0 0.0
        %1478 = vmatpush1.msra.mxu0 %v1439
        %1479 = vmatprep.subr.mxu0 0.0
        %1480 = vmatpush1.msra.mxu0 %v1440
        %1481 = vmatprep.subr.mxu0 0.0
        %1482 = vmatpush1.msra.mxu0 %v1441
        %1483 = vmatprep.subr.mxu0 0.0
        %1484 = vmatpush1.msra.mxu0 %v1442
        %1485 = vmatprep.subr.mxu0 0.0
        %1486 = vmatpush1.msra.mxu0 %v1443
        %1487 = vmatprep.subr.mxu0 0.0
        %1488 = vmatpush1.msra.mxu0 %v1444
        %1489 = vmatprep.subr.mxu0 0.0
        %1490 = vmatpush1.msra.mxu0 %v1445
        %1491 = vmatprep.subr.mxu0 0.0
        %1492 = vmatpush1.msra.mxu0 %v1446
        %1493 = vmatprep.subr.mxu0 0.0
        %1494 = vmatpush1.msra.mxu0 %v1447
        %1495 = vmatprep.subr.mxu0 0.0
        %1496 = vmatpush1.msra.mxu0 %v1448
        %1497 = vmatprep.subr.mxu0 0.0
        %1498 = vmatpush1.msra.mxu0 0.0
        %1499 = vmatprep.subr.mxu0 0.0
        %1500 = vmatpush1.msra.mxu0 0.0
        %1501 = vmatprep.subr.mxu0 0.0
        %1502 = vmatpush1.msra.mxu0 0.0
        %1503 = vmatprep.subr.mxu0 0.0
        %1504 = vmatpush1.msra.mxu0 0.0
        %1505 = vmatprep.subr.mxu0 0.0
        %1506 = vmatpush1.msra.mxu0 0.0
        %1507 = vmatprep.subr.mxu0 0.0
        %1508 = vmatpush1.msra.mxu0 0.0
        %1509 = vmatprep.subr.mxu0 0.0
        %1510 = vmatpush1.msra.mxu0 0.0
        %1511 = vmatprep.subr.mxu0 0.0
        %1512 = vmatpush1.msra.mxu0 0.0
        %1513 = vmatprep.subr.mxu0 0.0
        %1514 = vmatpush1.msra.mxu0 0.0
        %1515 = vmatprep.subr.mxu0 0.0
        %1516 = vmatpush1.msra.mxu0 0.0
        %1517 = vmatprep.subr.mxu0 0.0
        %1518 = vmatpush1.msra.mxu0 0.0
        %1519 = vmatprep.subr.mxu0 0.0
        %1520 = vmatpush1.msra.mxu0 0.0
        %1521 = vmatprep.subr.mxu0 0.0
        %1522 = vmatpush1.msra.mxu0 0.0
        %1523 = vmatprep.subr.mxu0 0.0
        %1524 = vmatpush1.msra.mxu0 0.0
        %1525 = vmatprep.mubr.f32.mxu0 %v1459
        %1526 = vmatmul.mubr.f32.gmra.mrb[0].mxu0 %v1453
        %v1527 = vpop.f32.mrb[0].mxu0
        %v1528 = vadd.f32 0.0, %v1527
        %v1529 = vpop.f32.mrb[0].mxu0
        %1530 = vdwg.mxu0
        %v1531 = vadd.f32 %v1427, %v1528
        %s1532 = scalar_lea.vmem [#allocation2], 18
        %v1533 = vld [vmem:[%s1532] ss:$8 sm:$0x3]
        %s1534 = scalar_lea.vmem %s3, 1440
        %v1535 = vld [vmem:[%s1534] sm:$0xff]
        %v1536 = vld [vmem:[%s1534 + $0x8] sm:$0xff]
        %v1537 = vld [vmem:[%s1534 + $0x10] sm:$0xff]
        %v1538 = vld [vmem:[%s1534 + $0x18] sm:$0xff]
        %v1539 = vld [vmem:[%s1534 + $0x20] sm:$0xff]
        %v1540 = vld [vmem:[%s1534 + $0x28] sm:$0xff]
        %v1541 = vld [vmem:[%s1534 + $0x30] sm:$0xff]
        %v1542 = vld [vmem:[%s1534 + $0x38] sm:$0xff]
        %v1543 = vld [vmem:[%s1534 + $0x40] sm:$0xff]
        %v1544 = vld [vmem:[%s1534 + $0x48] sm:$0xff]
        %v1545 = vld [vmem:[%s1534 + $0x50] sm:$0xff]
        %v1546 = vld [vmem:[%s1534 + $0x58] sm:$0xff]
        %v1547 = vld [vmem:[%s1534 + $0x60] sm:$0xff]
        %v1548 = vld [vmem:[%s1534 + $0x68] sm:$0xff]
        %v1549 = vld [vmem:[%s1534 + $0x70] sm:$0xff]
        %v1550 = vld [vmem:[%s1534 + $0x78] sm:$0xff]
        %v1551 = vld [vmem:[%s1534 + $0x80] sm:$0xff]
        %v1552 = vld [vmem:[%s1534 + $0x88] sm:$0xff]
        %v1554 = vlaneseq
        %v1555 = vshrl.u32 %v1554, 7
        %v1556 = vsub.s32 0, %v1555
        %v1557 = vrot.slane %v1533, %v1556
        %v1558 = vlaneseq
        %v1559 = vshrl.u32 %v1558, 7
        %v1560 = vsub.s32 1, %v1559
        %v1561 = vrot.slane %v1533, %v1560
        %v1563 = vsel %vm488, %v1561, 0
        %1565 = vmatprep.subr.mxu0 0.0
        %1566 = vmatpush1.msra.mxu0 %v1535
        %1567 = vmatprep.subr.mxu0 0.0
        %1568 = vmatpush1.msra.mxu0 %v1536
        %1569 = vmatprep.subr.mxu0 0.0
        %1570 = vmatpush1.msra.mxu0 %v1537
        %1571 = vmatprep.subr.mxu0 0.0
        %1572 = vmatpush1.msra.mxu0 %v1538
        %1573 = vmatprep.subr.mxu0 0.0
        %1574 = vmatpush1.msra.mxu0 %v1539
        %1575 = vmatprep.subr.mxu0 0.0
        %1576 = vmatpush1.msra.mxu0 %v1540
        %1577 = vmatprep.subr.mxu0 0.0
        %1578 = vmatpush1.msra.mxu0 %v1541
        %1579 = vmatprep.subr.mxu0 0.0
        %1580 = vmatpush1.msra.mxu0 %v1542
        %1581 = vmatprep.subr.mxu0 0.0
        %1582 = vmatpush1.msra.mxu0 %v1543
        %1583 = vmatprep.subr.mxu0 0.0
        %1584 = vmatpush1.msra.mxu0 %v1544
        %1585 = vmatprep.subr.mxu0 0.0
        %1586 = vmatpush1.msra.mxu0 %v1545
        %1587 = vmatprep.subr.mxu0 0.0
        %1588 = vmatpush1.msra.mxu0 %v1546
        %1589 = vmatprep.subr.mxu0 0.0
        %1590 = vmatpush1.msra.mxu0 %v1547
        %1591 = vmatprep.subr.mxu0 0.0
        %1592 = vmatpush1.msra.mxu0 %v1548
        %1593 = vmatprep.subr.mxu0 0.0
        %1594 = vmatpush1.msra.mxu0 %v1549
        %1595 = vmatprep.subr.mxu0 0.0
        %1596 = vmatpush1.msra.mxu0 %v1550
        %1597 = vmatprep.subr.mxu0 0.0
        %1598 = vmatpush1.msra.mxu0 %v1551
        %1599 = vmatprep.subr.mxu0 0.0
        %1600 = vmatpush1.msra.mxu0 %v1552
        %1601 = vmatprep.subr.mxu0 0.0
        %1602 = vmatpush1.msra.mxu0 0.0
        %1603 = vmatprep.subr.mxu0 0.0
        %1604 = vmatpush1.msra.mxu0 0.0
        %1605 = vmatprep.subr.mxu0 0.0
        %1606 = vmatpush1.msra.mxu0 0.0
        %1607 = vmatprep.subr.mxu0 0.0
        %1608 = vmatpush1.msra.mxu0 0.0
        %1609 = vmatprep.subr.mxu0 0.0
        %1610 = vmatpush1.msra.mxu0 0.0
        %1611 = vmatprep.subr.mxu0 0.0
        %1612 = vmatpush1.msra.mxu0 0.0
        %1613 = vmatprep.subr.mxu0 0.0
        %1614 = vmatpush1.msra.mxu0 0.0
        %1615 = vmatprep.subr.mxu0 0.0
        %1616 = vmatpush1.msra.mxu0 0.0
        %1617 = vmatprep.subr.mxu0 0.0
        %1618 = vmatpush1.msra.mxu0 0.0
        %1619 = vmatprep.subr.mxu0 0.0
        %1620 = vmatpush1.msra.mxu0 0.0
        %1621 = vmatprep.subr.mxu0 0.0
        %1622 = vmatpush1.msra.mxu0 0.0
        %1623 = vmatprep.subr.mxu0 0.0
        %1624 = vmatpush1.msra.mxu0 0.0
        %1625 = vmatprep.subr.mxu0 0.0
        %1626 = vmatpush1.msra.mxu0 0.0
        %1627 = vmatprep.subr.mxu0 0.0
        %1628 = vmatpush1.msra.mxu0 0.0
        %1629 = vmatprep.mubr.f32.mxu0 %v1563
        %1630 = vmatmul.mubr.f32.gmra.mrb[0].mxu0 %v1557
        %v1631 = vpop.f32.mrb[0].mxu0
        %v1632 = vadd.f32 0.0, %v1631
        %v1633 = vpop.f32.mrb[0].mxu0
        %1634 = vdwg.mxu0
        %v1635 = vadd.f32 %v1531, %v1632
        %s1636 = scalar_lea.vmem [#allocation2], 19
        %v1637 = vld [vmem:[%s1636] ss:$8 sm:$0x3]
        %s1638 = scalar_lea.vmem %s3, 1584
        %v1639 = vld [vmem:[%s1638] sm:$0xff]
        %v1640 = vld [vmem:[%s1638 + $0x8] sm:$0xff]
        %v1641 = vld [vmem:[%s1638 + $0x10] sm:$0xff]
        %v1642 = vld [vmem:[%s1638 + $0x18] sm:$0xff]
        %v1643 = vld [vmem:[%s1638 + $0x20] sm:$0xff]
        %v1644 = vld [vmem:[%s1638 + $0x28] sm:$0xff]
        %v1645 = vld [vmem:[%s1638 + $0x30] sm:$0xff]
        %v1646 = vld [vmem:[%s1638 + $0x38] sm:$0xff]
        %v1647 = vld [vmem:[%s1638 + $0x40] sm:$0xff]
        %v1648 = vld [vmem:[%s1638 + $0x48] sm:$0xff]
        %v1649 = vld [vmem:[%s1638 + $0x50] sm:$0xff]
        %v1650 = vld [vmem:[%s1638 + $0x58] sm:$0xff]
        %v1651 = vld [vmem:[%s1638 + $0x60] sm:$0xff]
        %v1652 = vld [vmem:[%s1638 + $0x68] sm:$0xff]
        %v1653 = vld [vmem:[%s1638 + $0x70] sm:$0xff]
        %v1654 = vld [vmem:[%s1638 + $0x78] sm:$0xff]
        %v1655 = vld [vmem:[%s1638 + $0x80] sm:$0xff]
        %v1656 = vld [vmem:[%s1638 + $0x88] sm:$0xff]
        %v1658 = vlaneseq
        %v1659 = vshrl.u32 %v1658, 7
        %v1660 = vsub.s32 0, %v1659
        %v1661 = vrot.slane %v1637, %v1660
        %v1662 = vlaneseq
        %v1663 = vshrl.u32 %v1662, 7
        %v1664 = vsub.s32 1, %v1663
        %v1665 = vrot.slane %v1637, %v1664
        %v1667 = vsel %vm488, %v1665, 0
        %1669 = vmatprep.subr.mxu0 0.0
        %1670 = vmatpush1.msra.mxu0 %v1639
        %1671 = vmatprep.subr.mxu0 0.0
        %1672 = vmatpush1.msra.mxu0 %v1640
        %1673 = vmatprep.subr.mxu0 0.0
        %1674 = vmatpush1.msra.mxu0 %v1641
        %1675 = vmatprep.subr.mxu0 0.0
        %1676 = vmatpush1.msra.mxu0 %v1642
        %1677 = vmatprep.subr.mxu0 0.0
        %1678 = vmatpush1.msra.mxu0 %v1643
        %1679 = vmatprep.subr.mxu0 0.0
        %1680 = vmatpush1.msra.mxu0 %v1644
        %1681 = vmatprep.subr.mxu0 0.0
        %1682 = vmatpush1.msra.mxu0 %v1645
        %1683 = vmatprep.subr.mxu0 0.0
        %1684 = vmatpush1.msra.mxu0 %v1646
        %1685 = vmatprep.subr.mxu0 0.0
        %1686 = vmatpush1.msra.mxu0 %v1647
        %1687 = vmatprep.subr.mxu0 0.0
        %1688 = vmatpush1.msra.mxu0 %v1648
        %1689 = vmatprep.subr.mxu0 0.0
        %1690 = vmatpush1.msra.mxu0 %v1649
        %1691 = vmatprep.subr.mxu0 0.0
        %1692 = vmatpush1.msra.mxu0 %v1650
        %1693 = vmatprep.subr.mxu0 0.0
        %1694 = vmatpush1.msra.mxu0 %v1651
        %1695 = vmatprep.subr.mxu0 0.0
        %1696 = vmatpush1.msra.mxu0 %v1652
        %1697 = vmatprep.subr.mxu0 0.0
        %1698 = vmatpush1.msra.mxu0 %v1653
        %1699 = vmatprep.subr.mxu0 0.0
        %1700 = vmatpush1.msra.mxu0 %v1654
        %1701 = vmatprep.subr.mxu0 0.0
        %1702 = vmatpush1.msra.mxu0 %v1655
        %1703 = vmatprep.subr.mxu0 0.0
        %1704 = vmatpush1.msra.mxu0 %v1656
        %1705 = vmatprep.subr.mxu0 0.0
        %1706 = vmatpush1.msra.mxu0 0.0
        %1707 = vmatprep.subr.mxu0 0.0
        %1708 = vmatpush1.msra.mxu0 0.0
        %1709 = vmatprep.subr.mxu0 0.0
        %1710 = vmatpush1.msra.mxu0 0.0
        %1711 = vmatprep.subr.mxu0 0.0
        %1712 = vmatpush1.msra.mxu0 0.0
        %1713 = vmatprep.subr.mxu0 0.0
        %1714 = vmatpush1.msra.mxu0 0.0
        %1715 = vmatprep.subr.mxu0 0.0
        %1716 = vmatpush1.msra.mxu0 0.0
        %1717 = vmatprep.subr.mxu0 0.0
        %1718 = vmatpush1.msra.mxu0 0.0
        %1719 = vmatprep.subr.mxu0 0.0
        %1720 = vmatpush1.msra.mxu0 0.0
        %1721 = vmatprep.subr.mxu0 0.0
        %1722 = vmatpush1.msra.mxu0 0.0
        %1723 = vmatprep.subr.mxu0 0.0
        %1724 = vmatpush1.msra.mxu0 0.0
        %1725 = vmatprep.subr.mxu0 0.0
        %1726 = vmatpush1.msra.mxu0 0.0
        %1727 = vmatprep.subr.mxu0 0.0
        %1728 = vmatpush1.msra.mxu0 0.0
        %1729 = vmatprep.subr.mxu0 0.0
        %1730 = vmatpush1.msra.mxu0 0.0
        %1731 = vmatprep.subr.mxu0 0.0
        %1732 = vmatpush1.msra.mxu0 0.0
        %1733 = vmatprep.mubr.f32.mxu0 %v1667
        %1734 = vmatmul.mubr.f32.gmra.mrb[0].mxu0 %v1661
        %v1735 = vpop.f32.mrb[0].mxu0
        %v1736 = vadd.f32 0.0, %v1735
        %v1737 = vpop.f32.mrb[0].mxu0
        %1738 = vdwg.mxu0
        %v1739 = vadd.f32 %v1635, %v1736
        %s1740 = scalar_lea.vmem [#allocation2], 20
        %v1741 = vld [vmem:[%s1740] ss:$8 sm:$0x3]
        %s1742 = scalar_lea.vmem %s3, 1728
        %v1743 = vld [vmem:[%s1742] sm:$0xff]
        %v1744 = vld [vmem:[%s1742 + $0x8] sm:$0xff]
        %v1745 = vld [vmem:[%s1742 + $0x10] sm:$0xff]
        %v1746 = vld [vmem:[%s1742 + $0x18] sm:$0xff]
        %v1747 = vld [vmem:[%s1742 + $0x20] sm:$0xff]
        %v1748 = vld [vmem:[%s1742 + $0x28] sm:$0xff]
        %v1749 = vld [vmem:[%s1742 + $0x30] sm:$0xff]
        %v1750 = vld [vmem:[%s1742 + $0x38] sm:$0xff]
        %v1751 = vld [vmem:[%s1742 + $0x40] sm:$0xff]
        %v1752 = vld [vmem:[%s1742 + $0x48] sm:$0xff]
        %v1753 = vld [vmem:[%s1742 + $0x50] sm:$0xff]
        %v1754 = vld [vmem:[%s1742 + $0x58] sm:$0xff]
        %v1755 = vld [vmem:[%s1742 + $0x60] sm:$0xff]
        %v1756 = vld [vmem:[%s1742 + $0x68] sm:$0xff]
        %v1757 = vld [vmem:[%s1742 + $0x70] sm:$0xff]
        %v1758 = vld [vmem:[%s1742 + $0x78] sm:$0xff]
        %v1759 = vld [vmem:[%s1742 + $0x80] sm:$0xff]
        %v1760 = vld [vmem:[%s1742 + $0x88] sm:$0xff]
        %v1762 = vlaneseq
        %v1763 = vshrl.u32 %v1762, 7
        %v1764 = vsub.s32 0, %v1763
        %v1765 = vrot.slane %v1741, %v1764
        %v1766 = vlaneseq
        %v1767 = vshrl.u32 %v1766, 7
        %v1768 = vsub.s32 1, %v1767
        %v1769 = vrot.slane %v1741, %v1768
        %v1771 = vsel %vm488, %v1769, 0
        %1773 = vmatprep.subr.mxu0 0.0
        %1774 = vmatpush1.msra.mxu0 %v1743
        %1775 = vmatprep.subr.mxu0 0.0
        %1776 = vmatpush1.msra.mxu0 %v1744
        %1777 = vmatprep.subr.mxu0 0.0
        %1778 = vmatpush1.msra.mxu0 %v1745
        %1779 = vmatprep.subr.mxu0 0.0
        %1780 = vmatpush1.msra.mxu0 %v1746
        %1781 = vmatprep.subr.mxu0 0.0
        %1782 = vmatpush1.msra.mxu0 %v1747
        %1783 = vmatprep.subr.mxu0 0.0
        %1784 = vmatpush1.msra.mxu0 %v1748
        %1785 = vmatprep.subr.mxu0 0.0
        %1786 = vmatpush1.msra.mxu0 %v1749
        %1787 = vmatprep.subr.mxu0 0.0
        %1788 = vmatpush1.msra.mxu0 %v1750
        %1789 = vmatprep.subr.mxu0 0.0
        %1790 = vmatpush1.msra.mxu0 %v1751
        %1791 = vmatprep.subr.mxu0 0.0
        %1792 = vmatpush1.msra.mxu0 %v1752
        %1793 = vmatprep.subr.mxu0 0.0
        %1794 = vmatpush1.msra.mxu0 %v1753
        %1795 = vmatprep.subr.mxu0 0.0
        %1796 = vmatpush1.msra.mxu0 %v1754
        %1797 = vmatprep.subr.mxu0 0.0
        %1798 = vmatpush1.msra.mxu0 %v1755
        %1799 = vmatprep.subr.mxu0 0.0
        %1800 = vmatpush1.msra.mxu0 %v1756
        %1801 = vmatprep.subr.mxu0 0.0
        %1802 = vmatpush1.msra.mxu0 %v1757
        %1803 = vmatprep.subr.mxu0 0.0
        %1804 = vmatpush1.msra.mxu0 %v1758
        %1805 = vmatprep.subr.mxu0 0.0
        %1806 = vmatpush1.msra.mxu0 %v1759
        %1807 = vmatprep.subr.mxu0 0.0
        %1808 = vmatpush1.msra.mxu0 %v1760
        %1809 = vmatprep.subr.mxu0 0.0
        %1810 = vmatpush1.msra.mxu0 0.0
        %1811 = vmatprep.subr.mxu0 0.0
        %1812 = vmatpush1.msra.mxu0 0.0
        %1813 = vmatprep.subr.mxu0 0.0
        %1814 = vmatpush1.msra.mxu0 0.0
        %1815 = vmatprep.subr.mxu0 0.0
        %1816 = vmatpush1.msra.mxu0 0.0
        %1817 = vmatprep.subr.mxu0 0.0
        %1818 = vmatpush1.msra.mxu0 0.0
        %1819 = vmatprep.subr.mxu0 0.0
        %1820 = vmatpush1.msra.mxu0 0.0
        %1821 = vmatprep.subr.mxu0 0.0
        %1822 = vmatpush1.msra.mxu0 0.0
        %1823 = vmatprep.subr.mxu0 0.0
        %1824 = vmatpush1.msra.mxu0 0.0
        %1825 = vmatprep.subr.mxu0 0.0
        %1826 = vmatpush1.msra.mxu0 0.0
        %1827 = vmatprep.subr.mxu0 0.0
        %1828 = vmatpush1.msra.mxu0 0.0
        %1829 = vmatprep.subr.mxu0 0.0
        %1830 = vmatpush1.msra.mxu0 0.0
        %1831 = vmatprep.subr.mxu0 0.0
        %1832 = vmatpush1.msra.mxu0 0.0
        %1833 = vmatprep.subr.mxu0 0.0
        %1834 = vmatpush1.msra.mxu0 0.0
        %1835 = vmatprep.subr.mxu0 0.0
        %1836 = vmatpush1.msra.mxu0 0.0
        %1837 = vmatprep.mubr.f32.mxu0 %v1771
        %1838 = vmatmul.mubr.f32.gmra.mrb[0].mxu0 %v1765
        %v1839 = vpop.f32.mrb[0].mxu0
        %v1840 = vadd.f32 0.0, %v1839
        %v1841 = vpop.f32.mrb[0].mxu0
        %1842 = vdwg.mxu0
        %v1843 = vadd.f32 %v1739, %v1840
        %s1844 = scalar_lea.vmem [#allocation2], 21
        %v1845 = vld [vmem:[%s1844] ss:$8 sm:$0x3]
        %s1846 = scalar_lea.vmem %s3, 1872
        %v1847 = vld [vmem:[%s1846] sm:$0xff]
        %v1848 = vld [vmem:[%s1846 + $0x8] sm:$0xff]
        %v1849 = vld [vmem:[%s1846 + $0x10] sm:$0xff]
        %v1850 = vld [vmem:[%s1846 + $0x18] sm:$0xff]
        %v1851 = vld [vmem:[%s1846 + $0x20] sm:$0xff]
        %v1852 = vld [vmem:[%s1846 + $0x28] sm:$0xff]
        %v1853 = vld [vmem:[%s1846 + $0x30] sm:$0xff]
        %v1854 = vld [vmem:[%s1846 + $0x38] sm:$0xff]
        %v1855 = vld [vmem:[%s1846 + $0x40] sm:$0xff]
        %v1856 = vld [vmem:[%s1846 + $0x48] sm:$0xff]
        %v1857 = vld [vmem:[%s1846 + $0x50] sm:$0xff]
        %v1858 = vld [vmem:[%s1846 + $0x58] sm:$0xff]
        %v1859 = vld [vmem:[%s1846 + $0x60] sm:$0xff]
        %v1860 = vld [vmem:[%s1846 + $0x68] sm:$0xff]
        %v1861 = vld [vmem:[%s1846 + $0x70] sm:$0xff]
        %v1862 = vld [vmem:[%s1846 + $0x78] sm:$0xff]
        %v1863 = vld [vmem:[%s1846 + $0x80] sm:$0xff]
        %v1864 = vld [vmem:[%s1846 + $0x88] sm:$0xff]
        %v1866 = vlaneseq
        %v1867 = vshrl.u32 %v1866, 7
        %v1868 = vsub.s32 0, %v1867
        %v1869 = vrot.slane %v1845, %v1868
        %v1870 = vlaneseq
        %v1871 = vshrl.u32 %v1870, 7
        %v1872 = vsub.s32 1, %v1871
        %v1873 = vrot.slane %v1845, %v1872
        %v1875 = vsel %vm488, %v1873, 0
        %1877 = vmatprep.subr.mxu0 0.0
        %1878 = vmatpush1.msra.mxu0 %v1847
        %1879 = vmatprep.subr.mxu0 0.0
        %1880 = vmatpush1.msra.mxu0 %v1848
        %1881 = vmatprep.subr.mxu0 0.0
        %1882 = vmatpush1.msra.mxu0 %v1849
        %1883 = vmatprep.subr.mxu0 0.0
        %1884 = vmatpush1.msra.mxu0 %v1850
        %1885 = vmatprep.subr.mxu0 0.0
        %1886 = vmatpush1.msra.mxu0 %v1851
        %1887 = vmatprep.subr.mxu0 0.0
        %1888 = vmatpush1.msra.mxu0 %v1852
        %1889 = vmatprep.subr.mxu0 0.0
        %1890 = vmatpush1.msra.mxu0 %v1853
        %1891 = vmatprep.subr.mxu0 0.0
        %1892 = vmatpush1.msra.mxu0 %v1854
        %1893 = vmatprep.subr.mxu0 0.0
        %1894 = vmatpush1.msra.mxu0 %v1855
        %1895 = vmatprep.subr.mxu0 0.0
        %1896 = vmatpush1.msra.mxu0 %v1856
        %1897 = vmatprep.subr.mxu0 0.0
        %1898 = vmatpush1.msra.mxu0 %v1857
        %1899 = vmatprep.subr.mxu0 0.0
        %1900 = vmatpush1.msra.mxu0 %v1858
        %1901 = vmatprep.subr.mxu0 0.0
        %1902 = vmatpush1.msra.mxu0 %v1859
        %1903 = vmatprep.subr.mxu0 0.0
        %1904 = vmatpush1.msra.mxu0 %v1860
        %1905 = vmatprep.subr.mxu0 0.0
        %1906 = vmatpush1.msra.mxu0 %v1861
        %1907 = vmatprep.subr.mxu0 0.0
        %1908 = vmatpush1.msra.mxu0 %v1862
        %1909 = vmatprep.subr.mxu0 0.0
        %1910 = vmatpush1.msra.mxu0 %v1863
        %1911 = vmatprep.subr.mxu0 0.0
        %1912 = vmatpush1.msra.mxu0 %v1864
        %1913 = vmatprep.subr.mxu0 0.0
        %1914 = vmatpush1.msra.mxu0 0.0
        %1915 = vmatprep.subr.mxu0 0.0
        %1916 = vmatpush1.msra.mxu0 0.0
        %1917 = vmatprep.subr.mxu0 0.0
        %1918 = vmatpush1.msra.mxu0 0.0
        %1919 = vmatprep.subr.mxu0 0.0
        %1920 = vmatpush1.msra.mxu0 0.0
        %1921 = vmatprep.subr.mxu0 0.0
        %1922 = vmatpush1.msra.mxu0 0.0
        %1923 = vmatprep.subr.mxu0 0.0
        %1924 = vmatpush1.msra.mxu0 0.0
        %1925 = vmatprep.subr.mxu0 0.0
        %1926 = vmatpush1.msra.mxu0 0.0
        %1927 = vmatprep.subr.mxu0 0.0
        %1928 = vmatpush1.msra.mxu0 0.0
        %1929 = vmatprep.subr.mxu0 0.0
        %1930 = vmatpush1.msra.mxu0 0.0
        %1931 = vmatprep.subr.mxu0 0.0
        %1932 = vmatpush1.msra.mxu0 0.0
        %1933 = vmatprep.subr.mxu0 0.0
        %1934 = vmatpush1.msra.mxu0 0.0
        %1935 = vmatprep.subr.mxu0 0.0
        %1936 = vmatpush1.msra.mxu0 0.0
        %1937 = vmatprep.subr.mxu0 0.0
        %1938 = vmatpush1.msra.mxu0 0.0
        %1939 = vmatprep.subr.mxu0 0.0
        %1940 = vmatpush1.msra.mxu0 0.0
        %1941 = vmatprep.mubr.f32.mxu0 %v1875
        %1942 = vmatmul.mubr.f32.gmra.mrb[0].mxu0 %v1869
        %v1943 = vpop.f32.mrb[0].mxu0
        %v1944 = vadd.f32 0.0, %v1943
        %v1945 = vpop.f32.mrb[0].mxu0
        %1946 = vdwg.mxu0
        %v1947 = vadd.f32 %v1843, %v1944
        %s1948 = scalar_lea.vmem [#allocation2], 22
        %v1949 = vld [vmem:[%s1948] ss:$8 sm:$0x3]
        %s1950 = scalar_lea.vmem %s3, 2016
        %v1951 = vld [vmem:[%s1950] sm:$0xff]
        %v1952 = vld [vmem:[%s1950 + $0x8] sm:$0xff]
        %v1953 = vld [vmem:[%s1950 + $0x10] sm:$0xff]
        %v1954 = vld [vmem:[%s1950 + $0x18] sm:$0xff]
        %v1955 = vld [vmem:[%s1950 + $0x20] sm:$0xff]
        %v1956 = vld [vmem:[%s1950 + $0x28] sm:$0xff]
        %v1957 = vld [vmem:[%s1950 + $0x30] sm:$0xff]
        %v1958 = vld [vmem:[%s1950 + $0x38] sm:$0xff]
        %v1959 = vld [vmem:[%s1950 + $0x40] sm:$0xff]
        %v1960 = vld [vmem:[%s1950 + $0x48] sm:$0xff]
        %v1961 = vld [vmem:[%s1950 + $0x50] sm:$0xff]
        %v1962 = vld [vmem:[%s1950 + $0x58] sm:$0xff]
        %v1963 = vld [vmem:[%s1950 + $0x60] sm:$0xff]
        %v1964 = vld [vmem:[%s1950 + $0x68] sm:$0xff]
        %v1965 = vld [vmem:[%s1950 + $0x70] sm:$0xff]
        %v1966 = vld [vmem:[%s1950 + $0x78] sm:$0xff]
        %v1967 = vld [vmem:[%s1950 + $0x80] sm:$0xff]
        %v1968 = vld [vmem:[%s1950 + $0x88] sm:$0xff]
        %v1970 = vlaneseq
        %v1971 = vshrl.u32 %v1970, 7
        %v1972 = vsub.s32 0, %v1971
        %v1973 = vrot.slane %v1949, %v1972
        %v1974 = vlaneseq
        %v1975 = vshrl.u32 %v1974, 7
        %v1976 = vsub.s32 1, %v1975
        %v1977 = vrot.slane %v1949, %v1976
        %v1979 = vsel %vm488, %v1977, 0
        %1981 = vmatprep.subr.mxu0 0.0
        %1982 = vmatpush1.msra.mxu0 %v1951
        %1983 = vmatprep.subr.mxu0 0.0
        %1984 = vmatpush1.msra.mxu0 %v1952
        %1985 = vmatprep.subr.mxu0 0.0
        %1986 = vmatpush1.msra.mxu0 %v1953
        %1987 = vmatprep.subr.mxu0 0.0
        %1988 = vmatpush1.msra.mxu0 %v1954
        %1989 = vmatprep.subr.mxu0 0.0
        %1990 = vmatpush1.msra.mxu0 %v1955
        %1991 = vmatprep.subr.mxu0 0.0
        %1992 = vmatpush1.msra.mxu0 %v1956
        %1993 = vmatprep.subr.mxu0 0.0
        %1994 = vmatpush1.msra.mxu0 %v1957
        %1995 = vmatprep.subr.mxu0 0.0
        %1996 = vmatpush1.msra.mxu0 %v1958
        %1997 = vmatprep.subr.mxu0 0.0
        %1998 = vmatpush1.msra.mxu0 %v1959
        %1999 = vmatprep.subr.mxu0 0.0
        %2000 = vmatpush1.msra.mxu0 %v1960
        %2001 = vmatprep.subr.mxu0 0.0
        %2002 = vmatpush1.msra.mxu0 %v1961
        %2003 = vmatprep.subr.mxu0 0.0
        %2004 = vmatpush1.msra.mxu0 %v1962
        %2005 = vmatprep.subr.mxu0 0.0
        %2006 = vmatpush1.msra.mxu0 %v1963
        %2007 = vmatprep.subr.mxu0 0.0
        %2008 = vmatpush1.msra.mxu0 %v1964
        %2009 = vmatprep.subr.mxu0 0.0
        %2010 = vmatpush1.msra.mxu0 %v1965
        %2011 = vmatprep.subr.mxu0 0.0
        %2012 = vmatpush1.msra.mxu0 %v1966
        %2013 = vmatprep.subr.mxu0 0.0
        %2014 = vmatpush1.msra.mxu0 %v1967
        %2015 = vmatprep.subr.mxu0 0.0
        %2016 = vmatpush1.msra.mxu0 %v1968
        %2017 = vmatprep.subr.mxu0 0.0
        %2018 = vmatpush1.msra.mxu0 0.0
        %2019 = vmatprep.subr.mxu0 0.0
        %2020 = vmatpush1.msra.mxu0 0.0
        %2021 = vmatprep.subr.mxu0 0.0
        %2022 = vmatpush1.msra.mxu0 0.0
        %2023 = vmatprep.subr.mxu0 0.0
        %2024 = vmatpush1.msra.mxu0 0.0
        %2025 = vmatprep.subr.mxu0 0.0
        %2026 = vmatpush1.msra.mxu0 0.0
        %2027 = vmatprep.subr.mxu0 0.0
        %2028 = vmatpush1.msra.mxu0 0.0
        %2029 = vmatprep.subr.mxu0 0.0
        %2030 = vmatpush1.msra.mxu0 0.0
        %2031 = vmatprep.subr.mxu0 0.0
        %2032 = vmatpush1.msra.mxu0 0.0
        %2033 = vmatprep.subr.mxu0 0.0
        %2034 = vmatpush1.msra.mxu0 0.0
        %2035 = vmatprep.subr.mxu0 0.0
        %2036 = vmatpush1.msra.mxu0 0.0
        %2037 = vmatprep.subr.mxu0 0.0
        %2038 = vmatpush1.msra.mxu0 0.0
        %2039 = vmatprep.subr.mxu0 0.0
        %2040 = vmatpush1.msra.mxu0 0.0
        %2041 = vmatprep.subr.mxu0 0.0
        %2042 = vmatpush1.msra.mxu0 0.0
        %2043 = vmatprep.subr.mxu0 0.0
        %2044 = vmatpush1.msra.mxu0 0.0
        %2045 = vmatprep.mubr.f32.mxu0 %v1979
        %2046 = vmatmul.mubr.f32.gmra.mrb[0].mxu0 %v1973
        %v2047 = vpop.f32.mrb[0].mxu0
        %v2048 = vadd.f32 0.0, %v2047
        %v2049 = vpop.f32.mrb[0].mxu0
        %2050 = vdwg.mxu0
        %v2051 = vadd.f32 %v1947, %v2048
        %s2052 = scalar_lea.vmem [#allocation2], 23
        %v2053 = vld [vmem:[%s2052] ss:$8 sm:$0x3]
        %s2054 = scalar_lea.vmem %s3, 2160
        %v2055 = vld [vmem:[%s2054] sm:$0xff]
        %v2056 = vld [vmem:[%s2054 + $0x8] sm:$0xff]
        %v2057 = vld [vmem:[%s2054 + $0x10] sm:$0xff]
        %v2058 = vld [vmem:[%s2054 + $0x18] sm:$0xff]
        %v2059 = vld [vmem:[%s2054 + $0x20] sm:$0xff]
        %v2060 = vld [vmem:[%s2054 + $0x28] sm:$0xff]
        %v2061 = vld [vmem:[%s2054 + $0x30] sm:$0xff]
        %v2062 = vld [vmem:[%s2054 + $0x38] sm:$0xff]
        %v2063 = vld [vmem:[%s2054 + $0x40] sm:$0xff]
        %v2064 = vld [vmem:[%s2054 + $0x48] sm:$0xff]
        %v2065 = vld [vmem:[%s2054 + $0x50] sm:$0xff]
        %v2066 = vld [vmem:[%s2054 + $0x58] sm:$0xff]
        %v2067 = vld [vmem:[%s2054 + $0x60] sm:$0xff]
        %v2068 = vld [vmem:[%s2054 + $0x68] sm:$0xff]
        %v2069 = vld [vmem:[%s2054 + $0x70] sm:$0xff]
        %v2070 = vld [vmem:[%s2054 + $0x78] sm:$0xff]
        %v2071 = vld [vmem:[%s2054 + $0x80] sm:$0xff]
        %v2072 = vld [vmem:[%s2054 + $0x88] sm:$0xff]
        %v2074 = vlaneseq
        %v2075 = vshrl.u32 %v2074, 7
        %v2076 = vsub.s32 0, %v2075
        %v2077 = vrot.slane %v2053, %v2076
        %v2078 = vlaneseq
        %v2079 = vshrl.u32 %v2078, 7
        %v2080 = vsub.s32 1, %v2079
        %v2081 = vrot.slane %v2053, %v2080
        %v2083 = vsel %vm488, %v2081, 0
        %2085 = vmatprep.subr.mxu0 0.0
        %2086 = vmatpush1.msra.mxu0 %v2055
        %2087 = vmatprep.subr.mxu0 0.0
        %2088 = vmatpush1.msra.mxu0 %v2056
        %2089 = vmatprep.subr.mxu0 0.0
        %2090 = vmatpush1.msra.mxu0 %v2057
        %2091 = vmatprep.subr.mxu0 0.0
        %2092 = vmatpush1.msra.mxu0 %v2058
        %2093 = vmatprep.subr.mxu0 0.0
        %2094 = vmatpush1.msra.mxu0 %v2059
        %2095 = vmatprep.subr.mxu0 0.0
        %2096 = vmatpush1.msra.mxu0 %v2060
        %2097 = vmatprep.subr.mxu0 0.0
        %2098 = vmatpush1.msra.mxu0 %v2061
        %2099 = vmatprep.subr.mxu0 0.0
        %2100 = vmatpush1.msra.mxu0 %v2062
        %2101 = vmatprep.subr.mxu0 0.0
        %2102 = vmatpush1.msra.mxu0 %v2063
        %2103 = vmatprep.subr.mxu0 0.0
        %2104 = vmatpush1.msra.mxu0 %v2064
        %2105 = vmatprep.subr.mxu0 0.0
        %2106 = vmatpush1.msra.mxu0 %v2065
        %2107 = vmatprep.subr.mxu0 0.0
        %2108 = vmatpush1.msra.mxu0 %v2066
        %2109 = vmatprep.subr.mxu0 0.0
        %2110 = vmatpush1.msra.mxu0 %v2067
        %2111 = vmatprep.subr.mxu0 0.0
        %2112 = vmatpush1.msra.mxu0 %v2068
        %2113 = vmatprep.subr.mxu0 0.0
        %2114 = vmatpush1.msra.mxu0 %v2069
        %2115 = vmatprep.subr.mxu0 0.0
        %2116 = vmatpush1.msra.mxu0 %v2070
        %2117 = vmatprep.subr.mxu0 0.0
        %2118 = vmatpush1.msra.mxu0 %v2071
        %2119 = vmatprep.subr.mxu0 0.0
        %2120 = vmatpush1.msra.mxu0 %v2072
        %2121 = vmatprep.subr.mxu0 0.0
        %2122 = vmatpush1.msra.mxu0 0.0
        %2123 = vmatprep.subr.mxu0 0.0
        %2124 = vmatpush1.msra.mxu0 0.0
        %2125 = vmatprep.subr.mxu0 0.0
        %2126 = vmatpush1.msra.mxu0 0.0
        %2127 = vmatprep.subr.mxu0 0.0
        %2128 = vmatpush1.msra.mxu0 0.0
        %2129 = vmatprep.subr.mxu0 0.0
        %2130 = vmatpush1.msra.mxu0 0.0
        %2131 = vmatprep.subr.mxu0 0.0
        %2132 = vmatpush1.msra.mxu0 0.0
        %2133 = vmatprep.subr.mxu0 0.0
        %2134 = vmatpush1.msra.mxu0 0.0
        %2135 = vmatprep.subr.mxu0 0.0
        %2136 = vmatpush1.msra.mxu0 0.0
        %2137 = vmatprep.subr.mxu0 0.0
        %2138 = vmatpush1.msra.mxu0 0.0
        %2139 = vmatprep.subr.mxu0 0.0
        %2140 = vmatpush1.msra.mxu0 0.0
        %2141 = vmatprep.subr.mxu0 0.0
        %2142 = vmatpush1.msra.mxu0 0.0
        %2143 = vmatprep.subr.mxu0 0.0
        %2144 = vmatpush1.msra.mxu0 0.0
        %2145 = vmatprep.subr.mxu0 0.0
        %2146 = vmatpush1.msra.mxu0 0.0
        %2147 = vmatprep.subr.mxu0 0.0
        %2148 = vmatpush1.msra.mxu0 0.0
        %2149 = vmatprep.mubr.f32.mxu0 %v2083
        %2150 = vmatmul.mubr.f32.gmra.mrb[0].mxu0 %v2077
        %v2151 = vpop.f32.mrb[0].mxu0
        %v2152 = vadd.f32 0.0, %v2151
        %v2153 = vpop.f32.mrb[0].mxu0
        %2154 = vdwg.mxu0
        %v2155 = vadd.f32 %v2051, %v2152
        %s2156 = scalar_lea.vmem [#allocation2], 32
        %v2157 = vld [vmem:[%s2156] ss:$8 sm:$0x3]
        %s2158 = scalar_lea.vmem %s3, 2304
        %v2159 = vld [vmem:[%s2158] sm:$0xff]
        %v2160 = vld [vmem:[%s2158 + $0x8] sm:$0xff]
        %v2161 = vld [vmem:[%s2158 + $0x10] sm:$0xff]
        %v2162 = vld [vmem:[%s2158 + $0x18] sm:$0xff]
        %v2163 = vld [vmem:[%s2158 + $0x20] sm:$0xff]
        %v2164 = vld [vmem:[%s2158 + $0x28] sm:$0xff]
        %v2165 = vld [vmem:[%s2158 + $0x30] sm:$0xff]
        %v2166 = vld [vmem:[%s2158 + $0x38] sm:$0xff]
        %v2167 = vld [vmem:[%s2158 + $0x40] sm:$0xff]
        %v2168 = vld [vmem:[%s2158 + $0x48] sm:$0xff]
        %v2169 = vld [vmem:[%s2158 + $0x50] sm:$0xff]
        %v2170 = vld [vmem:[%s2158 + $0x58] sm:$0xff]
        %v2171 = vld [vmem:[%s2158 + $0x60] sm:$0xff]
        %v2172 = vld [vmem:[%s2158 + $0x68] sm:$0xff]
        %v2173 = vld [vmem:[%s2158 + $0x70] sm:$0xff]
        %v2174 = vld [vmem:[%s2158 + $0x78] sm:$0xff]
        %v2175 = vld [vmem:[%s2158 + $0x80] sm:$0xff]
        %v2176 = vld [vmem:[%s2158 + $0x88] sm:$0xff]
        %v2178 = vlaneseq
        %v2179 = vshrl.u32 %v2178, 7
        %v2180 = vsub.s32 0, %v2179
        %v2181 = vrot.slane %v2157, %v2180
        %v2182 = vlaneseq
        %v2183 = vshrl.u32 %v2182, 7
        %v2184 = vsub.s32 1, %v2183
        %v2185 = vrot.slane %v2157, %v2184
        %v2187 = vsel %vm488, %v2185, 0
        %2189 = vmatprep.subr.mxu0 0.0
        %2190 = vmatpush1.msra.mxu0 %v2159
        %2191 = vmatprep.subr.mxu0 0.0
        %2192 = vmatpush1.msra.mxu0 %v2160
        %2193 = vmatprep.subr.mxu0 0.0
        %2194 = vmatpush1.msra.mxu0 %v2161
        %2195 = vmatprep.subr.mxu0 0.0
        %2196 = vmatpush1.msra.mxu0 %v2162
        %2197 = vmatprep.subr.mxu0 0.0
        %2198 = vmatpush1.msra.mxu0 %v2163
        %2199 = vmatprep.subr.mxu0 0.0
        %2200 = vmatpush1.msra.mxu0 %v2164
        %2201 = vmatprep.subr.mxu0 0.0
        %2202 = vmatpush1.msra.mxu0 %v2165
        %2203 = vmatprep.subr.mxu0 0.0
        %2204 = vmatpush1.msra.mxu0 %v2166
        %2205 = vmatprep.subr.mxu0 0.0
        %2206 = vmatpush1.msra.mxu0 %v2167
        %2207 = vmatprep.subr.mxu0 0.0
        %2208 = vmatpush1.msra.mxu0 %v2168
        %2209 = vmatprep.subr.mxu0 0.0
        %2210 = vmatpush1.msra.mxu0 %v2169
        %2211 = vmatprep.subr.mxu0 0.0
        %2212 = vmatpush1.msra.mxu0 %v2170
        %2213 = vmatprep.subr.mxu0 0.0
        %2214 = vmatpush1.msra.mxu0 %v2171
        %2215 = vmatprep.subr.mxu0 0.0
        %2216 = vmatpush1.msra.mxu0 %v2172
        %2217 = vmatprep.subr.mxu0 0.0
        %2218 = vmatpush1.msra.mxu0 %v2173
        %2219 = vmatprep.subr.mxu0 0.0
        %2220 = vmatpush1.msra.mxu0 %v2174
        %2221 = vmatprep.subr.mxu0 0.0
        %2222 = vmatpush1.msra.mxu0 %v2175
        %2223 = vmatprep.subr.mxu0 0.0
        %2224 = vmatpush1.msra.mxu0 %v2176
        %2225 = vmatprep.subr.mxu0 0.0
        %2226 = vmatpush1.msra.mxu0 0.0
        %2227 = vmatprep.subr.mxu0 0.0
        %2228 = vmatpush1.msra.mxu0 0.0
        %2229 = vmatprep.subr.mxu0 0.0
        %2230 = vmatpush1.msra.mxu0 0.0
        %2231 = vmatprep.subr.mxu0 0.0
        %2232 = vmatpush1.msra.mxu0 0.0
        %2233 = vmatprep.subr.mxu0 0.0
        %2234 = vmatpush1.msra.mxu0 0.0
        %2235 = vmatprep.subr.mxu0 0.0
        %2236 = vmatpush1.msra.mxu0 0.0
        %2237 = vmatprep.subr.mxu0 0.0
        %2238 = vmatpush1.msra.mxu0 0.0
        %2239 = vmatprep.subr.mxu0 0.0
        %2240 = vmatpush1.msra.mxu0 0.0
        %2241 = vmatprep.subr.mxu0 0.0
        %2242 = vmatpush1.msra.mxu0 0.0
        %2243 = vmatprep.subr.mxu0 0.0
        %2244 = vmatpush1.msra.mxu0 0.0
        %2245 = vmatprep.subr.mxu0 0.0
        %2246 = vmatpush1.msra.mxu0 0.0
        %2247 = vmatprep.subr.mxu0 0.0
        %2248 = vmatpush1.msra.mxu0 0.0
        %2249 = vmatprep.subr.mxu0 0.0
        %2250 = vmatpush1.msra.mxu0 0.0
        %2251 = vmatprep.subr.mxu0 0.0
        %2252 = vmatpush1.msra.mxu0 0.0
        %2253 = vmatprep.mubr.f32.mxu0 %v2187
        %2254 = vmatmul.mubr.f32.gmra.mrb[0].mxu0 %v2181
        %v2255 = vpop.f32.mrb[0].mxu0
        %v2256 = vadd.f32 0.0, %v2255
        %v2257 = vpop.f32.mrb[0].mxu0
        %2258 = vdwg.mxu0
        %v2259 = vadd.f32 %v2155, %v2256
        %s2260 = scalar_lea.vmem [#allocation2], 33
        %v2261 = vld [vmem:[%s2260] ss:$8 sm:$0x3]
        %s2262 = scalar_lea.vmem %s3, 2448
        %v2263 = vld [vmem:[%s2262] sm:$0xff]
        %v2264 = vld [vmem:[%s2262 + $0x8] sm:$0xff]
        %v2265 = vld [vmem:[%s2262 + $0x10] sm:$0xff]
        %v2266 = vld [vmem:[%s2262 + $0x18] sm:$0xff]
        %v2267 = vld [vmem:[%s2262 + $0x20] sm:$0xff]
        %v2268 = vld [vmem:[%s2262 + $0x28] sm:$0xff]
        %v2269 = vld [vmem:[%s2262 + $0x30] sm:$0xff]
        %v2270 = vld [vmem:[%s2262 + $0x38] sm:$0xff]
        %v2271 = vld [vmem:[%s2262 + $0x40] sm:$0xff]
        %v2272 = vld [vmem:[%s2262 + $0x48] sm:$0xff]
        %v2273 = vld [vmem:[%s2262 + $0x50] sm:$0xff]
        %v2274 = vld [vmem:[%s2262 + $0x58] sm:$0xff]
        %v2275 = vld [vmem:[%s2262 + $0x60] sm:$0xff]
        %v2276 = vld [vmem:[%s2262 + $0x68] sm:$0xff]
        %v2277 = vld [vmem:[%s2262 + $0x70] sm:$0xff]
        %v2278 = vld [vmem:[%s2262 + $0x78] sm:$0xff]
        %v2279 = vld [vmem:[%s2262 + $0x80] sm:$0xff]
        %v2280 = vld [vmem:[%s2262 + $0x88] sm:$0xff]
        %v2282 = vlaneseq
        %v2283 = vshrl.u32 %v2282, 7
        %v2284 = vsub.s32 0, %v2283
        %v2285 = vrot.slane %v2261, %v2284
        %v2286 = vlaneseq
        %v2287 = vshrl.u32 %v2286, 7
        %v2288 = vsub.s32 1, %v2287
        %v2289 = vrot.slane %v2261, %v2288
        %v2291 = vsel %vm488, %v2289, 0
        %2293 = vmatprep.subr.mxu0 0.0
        %2294 = vmatpush1.msra.mxu0 %v2263
        %2295 = vmatprep.subr.mxu0 0.0
        %2296 = vmatpush1.msra.mxu0 %v2264
        %2297 = vmatprep.subr.mxu0 0.0
        %2298 = vmatpush1.msra.mxu0 %v2265
        %2299 = vmatprep.subr.mxu0 0.0
        %2300 = vmatpush1.msra.mxu0 %v2266
        %2301 = vmatprep.subr.mxu0 0.0
        %2302 = vmatpush1.msra.mxu0 %v2267
        %2303 = vmatprep.subr.mxu0 0.0
        %2304 = vmatpush1.msra.mxu0 %v2268
        %2305 = vmatprep.subr.mxu0 0.0
        %2306 = vmatpush1.msra.mxu0 %v2269
        %2307 = vmatprep.subr.mxu0 0.0
        %2308 = vmatpush1.msra.mxu0 %v2270
        %2309 = vmatprep.subr.mxu0 0.0
        %2310 = vmatpush1.msra.mxu0 %v2271
        %2311 = vmatprep.subr.mxu0 0.0
        %2312 = vmatpush1.msra.mxu0 %v2272
        %2313 = vmatprep.subr.mxu0 0.0
        %2314 = vmatpush1.msra.mxu0 %v2273
        %2315 = vmatprep.subr.mxu0 0.0
        %2316 = vmatpush1.msra.mxu0 %v2274
        %2317 = vmatprep.subr.mxu0 0.0
        %2318 = vmatpush1.msra.mxu0 %v2275
        %2319 = vmatprep.subr.mxu0 0.0
        %2320 = vmatpush1.msra.mxu0 %v2276
        %2321 = vmatprep.subr.mxu0 0.0
        %2322 = vmatpush1.msra.mxu0 %v2277
        %2323 = vmatprep.subr.mxu0 0.0
        %2324 = vmatpush1.msra.mxu0 %v2278
        %2325 = vmatprep.subr.mxu0 0.0
        %2326 = vmatpush1.msra.mxu0 %v2279
        %2327 = vmatprep.subr.mxu0 0.0
        %2328 = vmatpush1.msra.mxu0 %v2280
        %2329 = vmatprep.subr.mxu0 0.0
        %2330 = vmatpush1.msra.mxu0 0.0
        %2331 = vmatprep.subr.mxu0 0.0
        %2332 = vmatpush1.msra.mxu0 0.0
        %2333 = vmatprep.subr.mxu0 0.0
        %2334 = vmatpush1.msra.mxu0 0.0
        %2335 = vmatprep.subr.mxu0 0.0
        %2336 = vmatpush1.msra.mxu0 0.0
        %2337 = vmatprep.subr.mxu0 0.0
        %2338 = vmatpush1.msra.mxu0 0.0
        %2339 = vmatprep.subr.mxu0 0.0
        %2340 = vmatpush1.msra.mxu0 0.0
        %2341 = vmatprep.subr.mxu0 0.0
        %2342 = vmatpush1.msra.mxu0 0.0
        %2343 = vmatprep.subr.mxu0 0.0
        %2344 = vmatpush1.msra.mxu0 0.0
        %2345 = vmatprep.subr.mxu0 0.0
        %2346 = vmatpush1.msra.mxu0 0.0
        %2347 = vmatprep.subr.mxu0 0.0
        %2348 = vmatpush1.msra.mxu0 0.0
        %2349 = vmatprep.subr.mxu0 0.0
        %2350 = vmatpush1.msra.mxu0 0.0
        %2351 = vmatprep.subr.mxu0 0.0
        %2352 = vmatpush1.msra.mxu0 0.0
        %2353 = vmatprep.subr.mxu0 0.0
        %2354 = vmatpush1.msra.mxu0 0.0
        %2355 = vmatprep.subr.mxu0 0.0
        %2356 = vmatpush1.msra.mxu0 0.0
        %2357 = vmatprep.mubr.f32.mxu0 %v2291
        %2358 = vmatmul.mubr.f32.gmra.mrb[0].mxu0 %v2285
        %v2359 = vpop.f32.mrb[0].mxu0
        %v2360 = vadd.f32 0.0, %v2359
        %v2361 = vpop.f32.mrb[0].mxu0
        %2362 = vdwg.mxu0
        %v2363 = vadd.f32 %v2259, %v2360
        %s2364 = scalar_lea.vmem [#allocation2], 34
        %v2365 = vld [vmem:[%s2364] ss:$8 sm:$0x3]
        %s2366 = scalar_lea.vmem %s3, 2592
        %v2367 = vld [vmem:[%s2366] sm:$0xff]
        %v2368 = vld [vmem:[%s2366 + $0x8] sm:$0xff]
        %v2369 = vld [vmem:[%s2366 + $0x10] sm:$0xff]
        %v2370 = vld [vmem:[%s2366 + $0x18] sm:$0xff]
        %v2371 = vld [vmem:[%s2366 + $0x20] sm:$0xff]
        %v2372 = vld [vmem:[%s2366 + $0x28] sm:$0xff]
        %v2373 = vld [vmem:[%s2366 + $0x30] sm:$0xff]
        %v2374 = vld [vmem:[%s2366 + $0x38] sm:$0xff]
        %v2375 = vld [vmem:[%s2366 + $0x40] sm:$0xff]
        %v2376 = vld [vmem:[%s2366 + $0x48] sm:$0xff]
        %v2377 = vld [vmem:[%s2366 + $0x50] sm:$0xff]
        %v2378 = vld [vmem:[%s2366 + $0x58] sm:$0xff]
        %v2379 = vld [vmem:[%s2366 + $0x60] sm:$0xff]
        %v2380 = vld [vmem:[%s2366 + $0x68] sm:$0xff]
        %v2381 = vld [vmem:[%s2366 + $0x70] sm:$0xff]
        %v2382 = vld [vmem:[%s2366 + $0x78] sm:$0xff]
        %v2383 = vld [vmem:[%s2366 + $0x80] sm:$0xff]
        %v2384 = vld [vmem:[%s2366 + $0x88] sm:$0xff]
        %v2386 = vlaneseq
        %v2387 = vshrl.u32 %v2386, 7
        %v2388 = vsub.s32 0, %v2387
        %v2389 = vrot.slane %v2365, %v2388
        %v2390 = vlaneseq
        %v2391 = vshrl.u32 %v2390, 7
        %v2392 = vsub.s32 1, %v2391
        %v2393 = vrot.slane %v2365, %v2392
        %v2395 = vsel %vm488, %v2393, 0
        %2397 = vmatprep.subr.mxu0 0.0
        %2398 = vmatpush1.msra.mxu0 %v2367
        %2399 = vmatprep.subr.mxu0 0.0
        %2400 = vmatpush1.msra.mxu0 %v2368
        %2401 = vmatprep.subr.mxu0 0.0
        %2402 = vmatpush1.msra.mxu0 %v2369
        %2403 = vmatprep.subr.mxu0 0.0
        %2404 = vmatpush1.msra.mxu0 %v2370
        %2405 = vmatprep.subr.mxu0 0.0
        %2406 = vmatpush1.msra.mxu0 %v2371
        %2407 = vmatprep.subr.mxu0 0.0
        %2408 = vmatpush1.msra.mxu0 %v2372
        %2409 = vmatprep.subr.mxu0 0.0
        %2410 = vmatpush1.msra.mxu0 %v2373
        %2411 = vmatprep.subr.mxu0 0.0
        %2412 = vmatpush1.msra.mxu0 %v2374
        %2413 = vmatprep.subr.mxu0 0.0
        %2414 = vmatpush1.msra.mxu0 %v2375
        %2415 = vmatprep.subr.mxu0 0.0
        %2416 = vmatpush1.msra.mxu0 %v2376
        %2417 = vmatprep.subr.mxu0 0.0
        %2418 = vmatpush1.msra.mxu0 %v2377
        %2419 = vmatprep.subr.mxu0 0.0
        %2420 = vmatpush1.msra.mxu0 %v2378
        %2421 = vmatprep.subr.mxu0 0.0
        %2422 = vmatpush1.msra.mxu0 %v2379
        %2423 = vmatprep.subr.mxu0 0.0
        %2424 = vmatpush1.msra.mxu0 %v2380
        %2425 = vmatprep.subr.mxu0 0.0
        %2426 = vmatpush1.msra.mxu0 %v2381
        %2427 = vmatprep.subr.mxu0 0.0
        %2428 = vmatpush1.msra.mxu0 %v2382
        %2429 = vmatprep.subr.mxu0 0.0
        %2430 = vmatpush1.msra.mxu0 %v2383
        %2431 = vmatprep.subr.mxu0 0.0
        %2432 = vmatpush1.msra.mxu0 %v2384
        %2433 = vmatprep.subr.mxu0 0.0
        %2434 = vmatpush1.msra.mxu0 0.0
        %2435 = vmatprep.subr.mxu0 0.0
        %2436 = vmatpush1.msra.mxu0 0.0
        %2437 = vmatprep.subr.mxu0 0.0
        %2438 = vmatpush1.msra.mxu0 0.0
        %2439 = vmatprep.subr.mxu0 0.0
        %2440 = vmatpush1.msra.mxu0 0.0
        %2441 = vmatprep.subr.mxu0 0.0
        %2442 = vmatpush1.msra.mxu0 0.0
        %2443 = vmatprep.subr.mxu0 0.0
        %2444 = vmatpush1.msra.mxu0 0.0
        %2445 = vmatprep.subr.mxu0 0.0
        %2446 = vmatpush1.msra.mxu0 0.0
        %2447 = vmatprep.subr.mxu0 0.0
        %2448 = vmatpush1.msra.mxu0 0.0
        %2449 = vmatprep.subr.mxu0 0.0
        %2450 = vmatpush1.msra.mxu0 0.0
        %2451 = vmatprep.subr.mxu0 0.0
        %2452 = vmatpush1.msra.mxu0 0.0
        %2453 = vmatprep.subr.mxu0 0.0
        %2454 = vmatpush1.msra.mxu0 0.0
        %2455 = vmatprep.subr.mxu0 0.0
        %2456 = vmatpush1.msra.mxu0 0.0
        %2457 = vmatprep.subr.mxu0 0.0
        %2458 = vmatpush1.msra.mxu0 0.0
        %2459 = vmatprep.subr.mxu0 0.0
        %2460 = vmatpush1.msra.mxu0 0.0
        %2461 = vmatprep.mubr.f32.mxu0 %v2395
        %2462 = vmatmul.mubr.f32.gmra.mrb[0].mxu0 %v2389
        %v2463 = vpop.f32.mrb[0].mxu0
        %v2464 = vadd.f32 0.0, %v2463
        %v2465 = vpop.f32.mrb[0].mxu0
        %2466 = vdwg.mxu0
        %v2467 = vadd.f32 %v2363, %v2464
        %s2468 = scalar_lea.vmem [#allocation2], 35
        %v2469 = vld [vmem:[%s2468] ss:$8 sm:$0x3]
        %s2470 = scalar_lea.vmem %s3, 2736
        %v2471 = vld [vmem:[%s2470] sm:$0xff]
        %v2472 = vld [vmem:[%s2470 + $0x8] sm:$0xff]
        %v2473 = vld [vmem:[%s2470 + $0x10] sm:$0xff]
        %v2474 = vld [vmem:[%s2470 + $0x18] sm:$0xff]
        %v2475 = vld [vmem:[%s2470 + $0x20] sm:$0xff]
        %v2476 = vld [vmem:[%s2470 + $0x28] sm:$0xff]
        %v2477 = vld [vmem:[%s2470 + $0x30] sm:$0xff]
        %v2478 = vld [vmem:[%s2470 + $0x38] sm:$0xff]
        %v2479 = vld [vmem:[%s2470 + $0x40] sm:$0xff]
        %v2480 = vld [vmem:[%s2470 + $0x48] sm:$0xff]
        %v2481 = vld [vmem:[%s2470 + $0x50] sm:$0xff]
        %v2482 = vld [vmem:[%s2470 + $0x58] sm:$0xff]
        %v2483 = vld [vmem:[%s2470 + $0x60] sm:$0xff]
        %v2484 = vld [vmem:[%s2470 + $0x68] sm:$0xff]
        %v2485 = vld [vmem:[%s2470 + $0x70] sm:$0xff]
        %v2486 = vld [vmem:[%s2470 + $0x78] sm:$0xff]
        %v2487 = vld [vmem:[%s2470 + $0x80] sm:$0xff]
        %v2488 = vld [vmem:[%s2470 + $0x88] sm:$0xff]
        %v2490 = vlaneseq
        %v2491 = vshrl.u32 %v2490, 7
        %v2492 = vsub.s32 0, %v2491
        %v2493 = vrot.slane %v2469, %v2492
        %v2494 = vlaneseq
        %v2495 = vshrl.u32 %v2494, 7
        %v2496 = vsub.s32 1, %v2495
        %v2497 = vrot.slane %v2469, %v2496
        %v2499 = vsel %vm488, %v2497, 0
        %2501 = vmatprep.subr.mxu0 0.0
        %2502 = vmatpush1.msra.mxu0 %v2471
        %2503 = vmatprep.subr.mxu0 0.0
        %2504 = vmatpush1.msra.mxu0 %v2472
        %2505 = vmatprep.subr.mxu0 0.0
        %2506 = vmatpush1.msra.mxu0 %v2473
        %2507 = vmatprep.subr.mxu0 0.0
        %2508 = vmatpush1.msra.mxu0 %v2474
        %2509 = vmatprep.subr.mxu0 0.0
        %2510 = vmatpush1.msra.mxu0 %v2475
        %2511 = vmatprep.subr.mxu0 0.0
        %2512 = vmatpush1.msra.mxu0 %v2476
        %2513 = vmatprep.subr.mxu0 0.0
        %2514 = vmatpush1.msra.mxu0 %v2477
        %2515 = vmatprep.subr.mxu0 0.0
        %2516 = vmatpush1.msra.mxu0 %v2478
        %2517 = vmatprep.subr.mxu0 0.0
        %2518 = vmatpush1.msra.mxu0 %v2479
        %2519 = vmatprep.subr.mxu0 0.0
        %2520 = vmatpush1.msra.mxu0 %v2480
        %2521 = vmatprep.subr.mxu0 0.0
        %2522 = vmatpush1.msra.mxu0 %v2481
        %2523 = vmatprep.subr.mxu0 0.0
        %2524 = vmatpush1.msra.mxu0 %v2482
        %2525 = vmatprep.subr.mxu0 0.0
        %2526 = vmatpush1.msra.mxu0 %v2483
        %2527 = vmatprep.subr.mxu0 0.0
        %2528 = vmatpush1.msra.mxu0 %v2484
        %2529 = vmatprep.subr.mxu0 0.0
        %2530 = vmatpush1.msra.mxu0 %v2485
        %2531 = vmatprep.subr.mxu0 0.0
        %2532 = vmatpush1.msra.mxu0 %v2486
        %2533 = vmatprep.subr.mxu0 0.0
        %2534 = vmatpush1.msra.mxu0 %v2487
        %2535 = vmatprep.subr.mxu0 0.0
        %2536 = vmatpush1.msra.mxu0 %v2488
        %2537 = vmatprep.subr.mxu0 0.0
        %2538 = vmatpush1.msra.mxu0 0.0
        %2539 = vmatprep.subr.mxu0 0.0
        %2540 = vmatpush1.msra.mxu0 0.0
        %2541 = vmatprep.subr.mxu0 0.0
        %2542 = vmatpush1.msra.mxu0 0.0
        %2543 = vmatprep.subr.mxu0 0.0
        %2544 = vmatpush1.msra.mxu0 0.0
        %2545 = vmatprep.subr.mxu0 0.0
        %2546 = vmatpush1.msra.mxu0 0.0
        %2547 = vmatprep.subr.mxu0 0.0
        %2548 = vmatpush1.msra.mxu0 0.0
        %2549 = vmatprep.subr.mxu0 0.0
        %2550 = vmatpush1.msra.mxu0 0.0
        %2551 = vmatprep.subr.mxu0 0.0
        %2552 = vmatpush1.msra.mxu0 0.0
        %2553 = vmatprep.subr.mxu0 0.0
        %2554 = vmatpush1.msra.mxu0 0.0
        %2555 = vmatprep.subr.mxu0 0.0
        %2556 = vmatpush1.msra.mxu0 0.0
        %2557 = vmatprep.subr.mxu0 0.0
        %2558 = vmatpush1.msra.mxu0 0.0
        %2559 = vmatprep.subr.mxu0 0.0
        %2560 = vmatpush1.msra.mxu0 0.0
        %2561 = vmatprep.subr.mxu0 0.0
        %2562 = vmatpush1.msra.mxu0 0.0
        %2563 = vmatprep.subr.mxu0 0.0
        %2564 = vmatpush1.msra.mxu0 0.0
        %2565 = vmatprep.mubr.f32.mxu0 %v2499
        %2566 = vmatmul.mubr.f32.gmra.mrb[0].mxu0 %v2493
        %v2567 = vpop.f32.mrb[0].mxu0
        %v2568 = vadd.f32 0.0, %v2567
        %v2569 = vpop.f32.mrb[0].mxu0
        %2570 = vdwg.mxu0
        %v2571 = vadd.f32 %v2467, %v2568
        %s2572 = scalar_lea.vmem [#allocation2], 36
        %v2573 = vld [vmem:[%s2572] ss:$8 sm:$0x3]
        %s2574 = scalar_lea.vmem %s3, 2880
        %v2575 = vld [vmem:[%s2574] sm:$0xff]
        %v2576 = vld [vmem:[%s2574 + $0x8] sm:$0xff]
        %v2577 = vld [vmem:[%s2574 + $0x10] sm:$0xff]
        %v2578 = vld [vmem:[%s2574 + $0x18] sm:$0xff]
        %v2579 = vld [vmem:[%s2574 + $0x20] sm:$0xff]
        %v2580 = vld [vmem:[%s2574 + $0x28] sm:$0xff]
        %v2581 = vld [vmem:[%s2574 + $0x30] sm:$0xff]
        %v2582 = vld [vmem:[%s2574 + $0x38] sm:$0xff]
        %v2583 = vld [vmem:[%s2574 + $0x40] sm:$0xff]
        %v2584 = vld [vmem:[%s2574 + $0x48] sm:$0xff]
        %v2585 = vld [vmem:[%s2574 + $0x50] sm:$0xff]
        %v2586 = vld [vmem:[%s2574 + $0x58] sm:$0xff]
        %v2587 = vld [vmem:[%s2574 + $0x60] sm:$0xff]
        %v2588 = vld [vmem:[%s2574 + $0x68] sm:$0xff]
        %v2589 = vld [vmem:[%s2574 + $0x70] sm:$0xff]
        %v2590 = vld [vmem:[%s2574 + $0x78] sm:$0xff]
        %v2591 = vld [vmem:[%s2574 + $0x80] sm:$0xff]
        %v2592 = vld [vmem:[%s2574 + $0x88] sm:$0xff]
        %v2594 = vlaneseq
        %v2595 = vshrl.u32 %v2594, 7
        %v2596 = vsub.s32 0, %v2595
        %v2597 = vrot.slane %v2573, %v2596
        %v2598 = vlaneseq
        %v2599 = vshrl.u32 %v2598, 7
        %v2600 = vsub.s32 1, %v2599
        %v2601 = vrot.slane %v2573, %v2600
        %v2603 = vsel %vm488, %v2601, 0
        %2605 = vmatprep.subr.mxu0 0.0
        %2606 = vmatpush1.msra.mxu0 %v2575
        %2607 = vmatprep.subr.mxu0 0.0
        %2608 = vmatpush1.msra.mxu0 %v2576
        %2609 = vmatprep.subr.mxu0 0.0
        %2610 = vmatpush1.msra.mxu0 %v2577
        %2611 = vmatprep.subr.mxu0 0.0
        %2612 = vmatpush1.msra.mxu0 %v2578
        %2613 = vmatprep.subr.mxu0 0.0
        %2614 = vmatpush1.msra.mxu0 %v2579
        %2615 = vmatprep.subr.mxu0 0.0
        %2616 = vmatpush1.msra.mxu0 %v2580
        %2617 = vmatprep.subr.mxu0 0.0
        %2618 = vmatpush1.msra.mxu0 %v2581
        %2619 = vmatprep.subr.mxu0 0.0
        %2620 = vmatpush1.msra.mxu0 %v2582
        %2621 = vmatprep.subr.mxu0 0.0
        %2622 = vmatpush1.msra.mxu0 %v2583
        %2623 = vmatprep.subr.mxu0 0.0
        %2624 = vmatpush1.msra.mxu0 %v2584
        %2625 = vmatprep.subr.mxu0 0.0
        %2626 = vmatpush1.msra.mxu0 %v2585
        %2627 = vmatprep.subr.mxu0 0.0
        %2628 = vmatpush1.msra.mxu0 %v2586
        %2629 = vmatprep.subr.mxu0 0.0
        %2630 = vmatpush1.msra.mxu0 %v2587
        %2631 = vmatprep.subr.mxu0 0.0
        %2632 = vmatpush1.msra.mxu0 %v2588
        %2633 = vmatprep.subr.mxu0 0.0
        %2634 = vmatpush1.msra.mxu0 %v2589
        %2635 = vmatprep.subr.mxu0 0.0
        %2636 = vmatpush1.msra.mxu0 %v2590
        %2637 = vmatprep.subr.mxu0 0.0
        %2638 = vmatpush1.msra.mxu0 %v2591
        %2639 = vmatprep.subr.mxu0 0.0
        %2640 = vmatpush1.msra.mxu0 %v2592
        %2641 = vmatprep.subr.mxu0 0.0
        %2642 = vmatpush1.msra.mxu0 0.0
        %2643 = vmatprep.subr.mxu0 0.0
        %2644 = vmatpush1.msra.mxu0 0.0
        %2645 = vmatprep.subr.mxu0 0.0
        %2646 = vmatpush1.msra.mxu0 0.0
        %2647 = vmatprep.subr.mxu0 0.0
        %2648 = vmatpush1.msra.mxu0 0.0
        %2649 = vmatprep.subr.mxu0 0.0
        %2650 = vmatpush1.msra.mxu0 0.0
        %2651 = vmatprep.subr.mxu0 0.0
        %2652 = vmatpush1.msra.mxu0 0.0
        %2653 = vmatprep.subr.mxu0 0.0
        %2654 = vmatpush1.msra.mxu0 0.0
        %2655 = vmatprep.subr.mxu0 0.0
        %2656 = vmatpush1.msra.mxu0 0.0
        %2657 = vmatprep.subr.mxu0 0.0
        %2658 = vmatpush1.msra.mxu0 0.0
        %2659 = vmatprep.subr.mxu0 0.0
        %2660 = vmatpush1.msra.mxu0 0.0
        %2661 = vmatprep.subr.mxu0 0.0
        %2662 = vmatpush1.msra.mxu0 0.0
        %2663 = vmatprep.subr.mxu0 0.0
        %2664 = vmatpush1.msra.mxu0 0.0
        %2665 = vmatprep.subr.mxu0 0.0
        %2666 = vmatpush1.msra.mxu0 0.0
        %2667 = vmatprep.subr.mxu0 0.0
        %2668 = vmatpush1.msra.mxu0 0.0
        %2669 = vmatprep.mubr.f32.mxu0 %v2603
        %2670 = vmatmul.mubr.f32.gmra.mrb[0].mxu0 %v2597
        %v2671 = vpop.f32.mrb[0].mxu0
        %v2672 = vadd.f32 0.0, %v2671
        %v2673 = vpop.f32.mrb[0].mxu0
        %2674 = vdwg.mxu0
        %v2675 = vadd.f32 %v2571, %v2672
        %s2676 = scalar_lea.vmem [#allocation2], 37
        %v2677 = vld [vmem:[%s2676] ss:$8 sm:$0x3]
        %s2678 = scalar_lea.vmem %s3, 3024
        %v2679 = vld [vmem:[%s2678] sm:$0xff]
        %v2680 = vld [vmem:[%s2678 + $0x8] sm:$0xff]
        %v2681 = vld [vmem:[%s2678 + $0x10] sm:$0xff]
        %v2682 = vld [vmem:[%s2678 + $0x18] sm:$0xff]
        %v2683 = vld [vmem:[%s2678 + $0x20] sm:$0xff]
        %v2684 = vld [vmem:[%s2678 + $0x28] sm:$0xff]
        %v2685 = vld [vmem:[%s2678 + $0x30] sm:$0xff]
        %v2686 = vld [vmem:[%s2678 + $0x38] sm:$0xff]
        %v2687 = vld [vmem:[%s2678 + $0x40] sm:$0xff]
        %v2688 = vld [vmem:[%s2678 + $0x48] sm:$0xff]
        %v2689 = vld [vmem:[%s2678 + $0x50] sm:$0xff]
        %v2690 = vld [vmem:[%s2678 + $0x58] sm:$0xff]
        %v2691 = vld [vmem:[%s2678 + $0x60] sm:$0xff]
        %v2692 = vld [vmem:[%s2678 + $0x68] sm:$0xff]
        %v2693 = vld [vmem:[%s2678 + $0x70] sm:$0xff]
        %v2694 = vld [vmem:[%s2678 + $0x78] sm:$0xff]
        %v2695 = vld [vmem:[%s2678 + $0x80] sm:$0xff]
        %v2696 = vld [vmem:[%s2678 + $0x88] sm:$0xff]
        %v2698 = vlaneseq
        %v2699 = vshrl.u32 %v2698, 7
        %v2700 = vsub.s32 0, %v2699
        %v2701 = vrot.slane %v2677, %v2700
        %v2702 = vlaneseq
        %v2703 = vshrl.u32 %v2702, 7
        %v2704 = vsub.s32 1, %v2703
        %v2705 = vrot.slane %v2677, %v2704
        %v2707 = vsel %vm488, %v2705, 0
        %2709 = vmatprep.subr.mxu0 0.0
        %2710 = vmatpush1.msra.mxu0 %v2679
        %2711 = vmatprep.subr.mxu0 0.0
        %2712 = vmatpush1.msra.mxu0 %v2680
        %2713 = vmatprep.subr.mxu0 0.0
        %2714 = vmatpush1.msra.mxu0 %v2681
        %2715 = vmatprep.subr.mxu0 0.0
        %2716 = vmatpush1.msra.mxu0 %v2682
        %2717 = vmatprep.subr.mxu0 0.0
        %2718 = vmatpush1.msra.mxu0 %v2683
        %2719 = vmatprep.subr.mxu0 0.0
        %2720 = vmatpush1.msra.mxu0 %v2684
        %2721 = vmatprep.subr.mxu0 0.0
        %2722 = vmatpush1.msra.mxu0 %v2685
        %2723 = vmatprep.subr.mxu0 0.0
        %2724 = vmatpush1.msra.mxu0 %v2686
        %2725 = vmatprep.subr.mxu0 0.0
        %2726 = vmatpush1.msra.mxu0 %v2687
        %2727 = vmatprep.subr.mxu0 0.0
        %2728 = vmatpush1.msra.mxu0 %v2688
        %2729 = vmatprep.subr.mxu0 0.0
        %2730 = vmatpush1.msra.mxu0 %v2689
        %2731 = vmatprep.subr.mxu0 0.0
        %2732 = vmatpush1.msra.mxu0 %v2690
        %2733 = vmatprep.subr.mxu0 0.0
        %2734 = vmatpush1.msra.mxu0 %v2691
        %2735 = vmatprep.subr.mxu0 0.0
        %2736 = vmatpush1.msra.mxu0 %v2692
        %2737 = vmatprep.subr.mxu0 0.0
        %2738 = vmatpush1.msra.mxu0 %v2693
        %2739 = vmatprep.subr.mxu0 0.0
        %2740 = vmatpush1.msra.mxu0 %v2694
        %2741 = vmatprep.subr.mxu0 0.0
        %2742 = vmatpush1.msra.mxu0 %v2695
        %2743 = vmatprep.subr.mxu0 0.0
        %2744 = vmatpush1.msra.mxu0 %v2696
        %2745 = vmatprep.subr.mxu0 0.0
        %2746 = vmatpush1.msra.mxu0 0.0
        %2747 = vmatprep.subr.mxu0 0.0
        %2748 = vmatpush1.msra.mxu0 0.0
        %2749 = vmatprep.subr.mxu0 0.0
        %2750 = vmatpush1.msra.mxu0 0.0
        %2751 = vmatprep.subr.mxu0 0.0
        %2752 = vmatpush1.msra.mxu0 0.0
        %2753 = vmatprep.subr.mxu0 0.0
        %2754 = vmatpush1.msra.mxu0 0.0
        %2755 = vmatprep.subr.mxu0 0.0
        %2756 = vmatpush1.msra.mxu0 0.0
        %2757 = vmatprep.subr.mxu0 0.0
        %2758 = vmatpush1.msra.mxu0 0.0
        %2759 = vmatprep.subr.mxu0 0.0
        %2760 = vmatpush1.msra.mxu0 0.0
        %2761 = vmatprep.subr.mxu0 0.0
        %2762 = vmatpush1.msra.mxu0 0.0
        %2763 = vmatprep.subr.mxu0 0.0
        %2764 = vmatpush1.msra.mxu0 0.0
        %2765 = vmatprep.subr.mxu0 0.0
        %2766 = vmatpush1.msra.mxu0 0.0
        %2767 = vmatprep.subr.mxu0 0.0
        %2768 = vmatpush1.msra.mxu0 0.0
        %2769 = vmatprep.subr.mxu0 0.0
        %2770 = vmatpush1.msra.mxu0 0.0
        %2771 = vmatprep.subr.mxu0 0.0
        %2772 = vmatpush1.msra.mxu0 0.0
        %2773 = vmatprep.mubr.f32.mxu0 %v2707
        %2774 = vmatmul.mubr.f32.gmra.mrb[0].mxu0 %v2701
        %v2775 = vpop.f32.mrb[0].mxu0
        %v2776 = vadd.f32 0.0, %v2775
        %v2777 = vpop.f32.mrb[0].mxu0
        %2778 = vdwg.mxu0
        %v2779 = vadd.f32 %v2675, %v2776
        %s2780 = scalar_lea.vmem [#allocation2], 38
        %v2781 = vld [vmem:[%s2780] ss:$8 sm:$0x3]
        %s2782 = scalar_lea.vmem %s3, 3168
        %v2783 = vld [vmem:[%s2782] sm:$0xff]
        %v2784 = vld [vmem:[%s2782 + $0x8] sm:$0xff]
        %v2785 = vld [vmem:[%s2782 + $0x10] sm:$0xff]
        %v2786 = vld [vmem:[%s2782 + $0x18] sm:$0xff]
        %v2787 = vld [vmem:[%s2782 + $0x20] sm:$0xff]
        %v2788 = vld [vmem:[%s2782 + $0x28] sm:$0xff]
        %v2789 = vld [vmem:[%s2782 + $0x30] sm:$0xff]
        %v2790 = vld [vmem:[%s2782 + $0x38] sm:$0xff]
        %v2791 = vld [vmem:[%s2782 + $0x40] sm:$0xff]
        %v2792 = vld [vmem:[%s2782 + $0x48] sm:$0xff]
        %v2793 = vld [vmem:[%s2782 + $0x50] sm:$0xff]
        %v2794 = vld [vmem:[%s2782 + $0x58] sm:$0xff]
        %v2795 = vld [vmem:[%s2782 + $0x60] sm:$0xff]
        %v2796 = vld [vmem:[%s2782 + $0x68] sm:$0xff]
        %v2797 = vld [vmem:[%s2782 + $0x70] sm:$0xff]
        %v2798 = vld [vmem:[%s2782 + $0x78] sm:$0xff]
        %v2799 = vld [vmem:[%s2782 + $0x80] sm:$0xff]
        %v2800 = vld [vmem:[%s2782 + $0x88] sm:$0xff]
        %v2802 = vlaneseq
        %v2803 = vshrl.u32 %v2802, 7
        %v2804 = vsub.s32 0, %v2803
        %v2805 = vrot.slane %v2781, %v2804
        %v2806 = vlaneseq
        %v2807 = vshrl.u32 %v2806, 7
        %v2808 = vsub.s32 1, %v2807
        %v2809 = vrot.slane %v2781, %v2808
        %v2811 = vsel %vm488, %v2809, 0
        %2813 = vmatprep.subr.mxu0 0.0
        %2814 = vmatpush1.msra.mxu0 %v2783
        %2815 = vmatprep.subr.mxu0 0.0
        %2816 = vmatpush1.msra.mxu0 %v2784
        %2817 = vmatprep.subr.mxu0 0.0
        %2818 = vmatpush1.msra.mxu0 %v2785
        %2819 = vmatprep.subr.mxu0 0.0
        %2820 = vmatpush1.msra.mxu0 %v2786
        %2821 = vmatprep.subr.mxu0 0.0
        %2822 = vmatpush1.msra.mxu0 %v2787
        %2823 = vmatprep.subr.mxu0 0.0
        %2824 = vmatpush1.msra.mxu0 %v2788
        %2825 = vmatprep.subr.mxu0 0.0
        %2826 = vmatpush1.msra.mxu0 %v2789
        %2827 = vmatprep.subr.mxu0 0.0
        %2828 = vmatpush1.msra.mxu0 %v2790
        %2829 = vmatprep.subr.mxu0 0.0
        %2830 = vmatpush1.msra.mxu0 %v2791
        %2831 = vmatprep.subr.mxu0 0.0
        %2832 = vmatpush1.msra.mxu0 %v2792
        %2833 = vmatprep.subr.mxu0 0.0
        %2834 = vmatpush1.msra.mxu0 %v2793
        %2835 = vmatprep.subr.mxu0 0.0
        %2836 = vmatpush1.msra.mxu0 %v2794
        %2837 = vmatprep.subr.mxu0 0.0
        %2838 = vmatpush1.msra.mxu0 %v2795
        %2839 = vmatprep.subr.mxu0 0.0
        %2840 = vmatpush1.msra.mxu0 %v2796
        %2841 = vmatprep.subr.mxu0 0.0
        %2842 = vmatpush1.msra.mxu0 %v2797
        %2843 = vmatprep.subr.mxu0 0.0
        %2844 = vmatpush1.msra.mxu0 %v2798
        %2845 = vmatprep.subr.mxu0 0.0
        %2846 = vmatpush1.msra.mxu0 %v2799
        %2847 = vmatprep.subr.mxu0 0.0
        %2848 = vmatpush1.msra.mxu0 %v2800
        %2849 = vmatprep.subr.mxu0 0.0
        %2850 = vmatpush1.msra.mxu0 0.0
        %2851 = vmatprep.subr.mxu0 0.0
        %2852 = vmatpush1.msra.mxu0 0.0
        %2853 = vmatprep.subr.mxu0 0.0
        %2854 = vmatpush1.msra.mxu0 0.0
        %2855 = vmatprep.subr.mxu0 0.0
        %2856 = vmatpush1.msra.mxu0 0.0
        %2857 = vmatprep.subr.mxu0 0.0
        %2858 = vmatpush1.msra.mxu0 0.0
        %2859 = vmatprep.subr.mxu0 0.0
        %2860 = vmatpush1.msra.mxu0 0.0
        %2861 = vmatprep.subr.mxu0 0.0
        %2862 = vmatpush1.msra.mxu0 0.0
        %2863 = vmatprep.subr.mxu0 0.0
        %2864 = vmatpush1.msra.mxu0 0.0
        %2865 = vmatprep.subr.mxu0 0.0
        %2866 = vmatpush1.msra.mxu0 0.0
        %2867 = vmatprep.subr.mxu0 0.0
        %2868 = vmatpush1.msra.mxu0 0.0
        %2869 = vmatprep.subr.mxu0 0.0
        %2870 = vmatpush1.msra.mxu0 0.0
        %2871 = vmatprep.subr.mxu0 0.0
        %2872 = vmatpush1.msra.mxu0 0.0
        %2873 = vmatprep.subr.mxu0 0.0
        %2874 = vmatpush1.msra.mxu0 0.0
        %2875 = vmatprep.subr.mxu0 0.0
        %2876 = vmatpush1.msra.mxu0 0.0
        %2877 = vmatprep.mubr.f32.mxu0 %v2811
        %2878 = vmatmul.mubr.f32.gmra.mrb[0].mxu0 %v2805
        %v2879 = vpop.f32.mrb[0].mxu0
        %v2880 = vadd.f32 0.0, %v2879
        %v2881 = vpop.f32.mrb[0].mxu0
        %2882 = vdwg.mxu0
        %v2883 = vadd.f32 %v2779, %v2880
        %s2884 = scalar_lea.vmem [#allocation2], 39
        %v2885 = vld [vmem:[%s2884] ss:$8 sm:$0x3]
        %s2886 = scalar_lea.vmem %s3, 3312
        %v2887 = vld [vmem:[%s2886] sm:$0xff]
        %v2888 = vld [vmem:[%s2886 + $0x8] sm:$0xff]
        %v2889 = vld [vmem:[%s2886 + $0x10] sm:$0xff]
        %v2890 = vld [vmem:[%s2886 + $0x18] sm:$0xff]
        %v2891 = vld [vmem:[%s2886 + $0x20] sm:$0xff]
        %v2892 = vld [vmem:[%s2886 + $0x28] sm:$0xff]
        %v2893 = vld [vmem:[%s2886 + $0x30] sm:$0xff]
        %v2894 = vld [vmem:[%s2886 + $0x38] sm:$0xff]
        %v2895 = vld [vmem:[%s2886 + $0x40] sm:$0xff]
        %v2896 = vld [vmem:[%s2886 + $0x48] sm:$0xff]
        %v2897 = vld [vmem:[%s2886 + $0x50] sm:$0xff]
        %v2898 = vld [vmem:[%s2886 + $0x58] sm:$0xff]
        %v2899 = vld [vmem:[%s2886 + $0x60] sm:$0xff]
        %v2900 = vld [vmem:[%s2886 + $0x68] sm:$0xff]
        %v2901 = vld [vmem:[%s2886 + $0x70] sm:$0xff]
        %v2902 = vld [vmem:[%s2886 + $0x78] sm:$0xff]
        %v2903 = vld [vmem:[%s2886 + $0x80] sm:$0xff]
        %v2904 = vld [vmem:[%s2886 + $0x88] sm:$0xff]
        %v2906 = vlaneseq
        %v2907 = vshrl.u32 %v2906, 7
        %v2908 = vsub.s32 0, %v2907
        %v2909 = vrot.slane %v2885, %v2908
        %v2910 = vlaneseq
        %v2911 = vshrl.u32 %v2910, 7
        %v2912 = vsub.s32 1, %v2911
        %v2913 = vrot.slane %v2885, %v2912
        %v2915 = vsel %vm488, %v2913, 0
        %2917 = vmatprep.subr.mxu0 0.0
        %2918 = vmatpush1.msra.mxu0 %v2887
        %2919 = vmatprep.subr.mxu0 0.0
        %2920 = vmatpush1.msra.mxu0 %v2888
        %2921 = vmatprep.subr.mxu0 0.0
        %2922 = vmatpush1.msra.mxu0 %v2889
        %2923 = vmatprep.subr.mxu0 0.0
        %2924 = vmatpush1.msra.mxu0 %v2890
        %2925 = vmatprep.subr.mxu0 0.0
        %2926 = vmatpush1.msra.mxu0 %v2891
        %2927 = vmatprep.subr.mxu0 0.0
        %2928 = vmatpush1.msra.mxu0 %v2892
        %2929 = vmatprep.subr.mxu0 0.0
        %2930 = vmatpush1.msra.mxu0 %v2893
        %2931 = vmatprep.subr.mxu0 0.0
        %2932 = vmatpush1.msra.mxu0 %v2894
        %2933 = vmatprep.subr.mxu0 0.0
        %2934 = vmatpush1.msra.mxu0 %v2895
        %2935 = vmatprep.subr.mxu0 0.0
        %2936 = vmatpush1.msra.mxu0 %v2896
        %2937 = vmatprep.subr.mxu0 0.0
        %2938 = vmatpush1.msra.mxu0 %v2897
        %2939 = vmatprep.subr.mxu0 0.0
        %2940 = vmatpush1.msra.mxu0 %v2898
        %2941 = vmatprep.subr.mxu0 0.0
        %2942 = vmatpush1.msra.mxu0 %v2899
        %2943 = vmatprep.subr.mxu0 0.0
        %2944 = vmatpush1.msra.mxu0 %v2900
        %2945 = vmatprep.subr.mxu0 0.0
        %2946 = vmatpush1.msra.mxu0 %v2901
        %2947 = vmatprep.subr.mxu0 0.0
        %2948 = vmatpush1.msra.mxu0 %v2902
        %2949 = vmatprep.subr.mxu0 0.0
        %2950 = vmatpush1.msra.mxu0 %v2903
        %2951 = vmatprep.subr.mxu0 0.0
        %2952 = vmatpush1.msra.mxu0 %v2904
        %2953 = vmatprep.subr.mxu0 0.0
        %2954 = vmatpush1.msra.mxu0 0.0
        %2955 = vmatprep.subr.mxu0 0.0
        %2956 = vmatpush1.msra.mxu0 0.0
        %2957 = vmatprep.subr.mxu0 0.0
        %2958 = vmatpush1.msra.mxu0 0.0
        %2959 = vmatprep.subr.mxu0 0.0
        %2960 = vmatpush1.msra.mxu0 0.0
        %2961 = vmatprep.subr.mxu0 0.0
        %2962 = vmatpush1.msra.mxu0 0.0
        %2963 = vmatprep.subr.mxu0 0.0
        %2964 = vmatpush1.msra.mxu0 0.0
        %2965 = vmatprep.subr.mxu0 0.0
        %2966 = vmatpush1.msra.mxu0 0.0
        %2967 = vmatprep.subr.mxu0 0.0
        %2968 = vmatpush1.msra.mxu0 0.0
        %2969 = vmatprep.subr.mxu0 0.0
        %2970 = vmatpush1.msra.mxu0 0.0
        %2971 = vmatprep.subr.mxu0 0.0
        %2972 = vmatpush1.msra.mxu0 0.0
        %2973 = vmatprep.subr.mxu0 0.0
        %2974 = vmatpush1.msra.mxu0 0.0
        %2975 = vmatprep.subr.mxu0 0.0
        %2976 = vmatpush1.msra.mxu0 0.0
        %2977 = vmatprep.subr.mxu0 0.0
        %2978 = vmatpush1.msra.mxu0 0.0
        %2979 = vmatprep.subr.mxu0 0.0
        %2980 = vmatpush1.msra.mxu0 0.0
        %2981 = vmatprep.mubr.f32.mxu0 %v2915
        %2982 = vmatmul.mubr.f32.gmra.mrb[0].mxu0 %v2909
        %v2983 = vpop.f32.mrb[0].mxu0
        %v2984 = vadd.f32 0.0, %v2983
        %v2985 = vpop.f32.mrb[0].mxu0
        %2986 = vdwg.mxu0
        %v2987 = vadd.f32 %v2883, %v2984
        %s2988 = scalar_lea.vmem [#allocation2], 48
        %v2989 = vld [vmem:[%s2988] ss:$8 sm:$0x3]
        %s2990 = scalar_lea.vmem %s3, 3456
        %v2991 = vld [vmem:[%s2990] sm:$0xff]
        %v2992 = vld [vmem:[%s2990 + $0x8] sm:$0xff]
        %v2993 = vld [vmem:[%s2990 + $0x10] sm:$0xff]
        %v2994 = vld [vmem:[%s2990 + $0x18] sm:$0xff]
        %v2995 = vld [vmem:[%s2990 + $0x20] sm:$0xff]
        %v2996 = vld [vmem:[%s2990 + $0x28] sm:$0xff]
        %v2997 = vld [vmem:[%s2990 + $0x30] sm:$0xff]
        %v2998 = vld [vmem:[%s2990 + $0x38] sm:$0xff]
        %v2999 = vld [vmem:[%s2990 + $0x40] sm:$0xff]
        %v3000 = vld [vmem:[%s2990 + $0x48] sm:$0xff]
        %v3001 = vld [vmem:[%s2990 + $0x50] sm:$0xff]
        %v3002 = vld [vmem:[%s2990 + $0x58] sm:$0xff]
        %v3003 = vld [vmem:[%s2990 + $0x60] sm:$0xff]
        %v3004 = vld [vmem:[%s2990 + $0x68] sm:$0xff]
        %v3005 = vld [vmem:[%s2990 + $0x70] sm:$0xff]
        %v3006 = vld [vmem:[%s2990 + $0x78] sm:$0xff]
        %v3007 = vld [vmem:[%s2990 + $0x80] sm:$0xff]
        %v3008 = vld [vmem:[%s2990 + $0x88] sm:$0xff]
        %v3010 = vlaneseq
        %v3011 = vshrl.u32 %v3010, 7
        %v3012 = vsub.s32 0, %v3011
        %v3013 = vrot.slane %v2989, %v3012
        %v3014 = vlaneseq
        %v3015 = vshrl.u32 %v3014, 7
        %v3016 = vsub.s32 1, %v3015
        %v3017 = vrot.slane %v2989, %v3016
        %v3019 = vsel %vm488, %v3017, 0
        %3021 = vmatprep.subr.mxu0 0.0
        %3022 = vmatpush1.msra.mxu0 %v2991
        %3023 = vmatprep.subr.mxu0 0.0
        %3024 = vmatpush1.msra.mxu0 %v2992
        %3025 = vmatprep.subr.mxu0 0.0
        %3026 = vmatpush1.msra.mxu0 %v2993
        %3027 = vmatprep.subr.mxu0 0.0
        %3028 = vmatpush1.msra.mxu0 %v2994
        %3029 = vmatprep.subr.mxu0 0.0
        %3030 = vmatpush1.msra.mxu0 %v2995
        %3031 = vmatprep.subr.mxu0 0.0
        %3032 = vmatpush1.msra.mxu0 %v2996
        %3033 = vmatprep.subr.mxu0 0.0
        %3034 = vmatpush1.msra.mxu0 %v2997
        %3035 = vmatprep.subr.mxu0 0.0
        %3036 = vmatpush1.msra.mxu0 %v2998
        %3037 = vmatprep.subr.mxu0 0.0
        %3038 = vmatpush1.msra.mxu0 %v2999
        %3039 = vmatprep.subr.mxu0 0.0
        %3040 = vmatpush1.msra.mxu0 %v3000
        %3041 = vmatprep.subr.mxu0 0.0
        %3042 = vmatpush1.msra.mxu0 %v3001
        %3043 = vmatprep.subr.mxu0 0.0
        %3044 = vmatpush1.msra.mxu0 %v3002
        %3045 = vmatprep.subr.mxu0 0.0
        %3046 = vmatpush1.msra.mxu0 %v3003
        %3047 = vmatprep.subr.mxu0 0.0
        %3048 = vmatpush1.msra.mxu0 %v3004
        %3049 = vmatprep.subr.mxu0 0.0
        %3050 = vmatpush1.msra.mxu0 %v3005
        %3051 = vmatprep.subr.mxu0 0.0
        %3052 = vmatpush1.msra.mxu0 %v3006
        %3053 = vmatprep.subr.mxu0 0.0
        %3054 = vmatpush1.msra.mxu0 %v3007
        %3055 = vmatprep.subr.mxu0 0.0
        %3056 = vmatpush1.msra.mxu0 %v3008
        %3057 = vmatprep.subr.mxu0 0.0
        %3058 = vmatpush1.msra.mxu0 0.0
        %3059 = vmatprep.subr.mxu0 0.0
        %3060 = vmatpush1.msra.mxu0 0.0
        %3061 = vmatprep.subr.mxu0 0.0
        %3062 = vmatpush1.msra.mxu0 0.0
        %3063 = vmatprep.subr.mxu0 0.0
        %3064 = vmatpush1.msra.mxu0 0.0
        %3065 = vmatprep.subr.mxu0 0.0
        %3066 = vmatpush1.msra.mxu0 0.0
        %3067 = vmatprep.subr.mxu0 0.0
        %3068 = vmatpush1.msra.mxu0 0.0
        %3069 = vmatprep.subr.mxu0 0.0
        %3070 = vmatpush1.msra.mxu0 0.0
        %3071 = vmatprep.subr.mxu0 0.0
        %3072 = vmatpush1.msra.mxu0 0.0
        %3073 = vmatprep.subr.mxu0 0.0
        %3074 = vmatpush1.msra.mxu0 0.0
        %3075 = vmatprep.subr.mxu0 0.0
        %3076 = vmatpush1.msra.mxu0 0.0
        %3077 = vmatprep.subr.mxu0 0.0
        %3078 = vmatpush1.msra.mxu0 0.0
        %3079 = vmatprep.subr.mxu0 0.0
        %3080 = vmatpush1.msra.mxu0 0.0
        %3081 = vmatprep.subr.mxu0 0.0
        %3082 = vmatpush1.msra.mxu0 0.0
        %3083 = vmatprep.subr.mxu0 0.0
        %3084 = vmatpush1.msra.mxu0 0.0
        %3085 = vmatprep.mubr.f32.mxu0 %v3019
        %3086 = vmatmul.mubr.f32.gmra.mrb[0].mxu0 %v3013
        %v3087 = vpop.f32.mrb[0].mxu0
        %v3088 = vadd.f32 0.0, %v3087
        %v3089 = vpop.f32.mrb[0].mxu0
        %3090 = vdwg.mxu0
        %v3091 = vadd.f32 %v2987, %v3088
        %s3092 = scalar_lea.vmem [#allocation2], 49
        %v3093 = vld [vmem:[%s3092] ss:$8 sm:$0x3]
        %s3094 = scalar_lea.vmem %s3, 3600
        %v3095 = vld [vmem:[%s3094] sm:$0xff]
        %v3096 = vld [vmem:[%s3094 + $0x8] sm:$0xff]
        %v3097 = vld [vmem:[%s3094 + $0x10] sm:$0xff]
        %v3098 = vld [vmem:[%s3094 + $0x18] sm:$0xff]
        %v3099 = vld [vmem:[%s3094 + $0x20] sm:$0xff]
        %v3100 = vld [vmem:[%s3094 + $0x28] sm:$0xff]
        %v3101 = vld [vmem:[%s3094 + $0x30] sm:$0xff]
        %v3102 = vld [vmem:[%s3094 + $0x38] sm:$0xff]
        %v3103 = vld [vmem:[%s3094 + $0x40] sm:$0xff]
        %v3104 = vld [vmem:[%s3094 + $0x48] sm:$0xff]
        %v3105 = vld [vmem:[%s3094 + $0x50] sm:$0xff]
        %v3106 = vld [vmem:[%s3094 + $0x58] sm:$0xff]
        %v3107 = vld [vmem:[%s3094 + $0x60] sm:$0xff]
        %v3108 = vld [vmem:[%s3094 + $0x68] sm:$0xff]
        %v3109 = vld [vmem:[%s3094 + $0x70] sm:$0xff]
        %v3110 = vld [vmem:[%s3094 + $0x78] sm:$0xff]
        %v3111 = vld [vmem:[%s3094 + $0x80] sm:$0xff]
        %v3112 = vld [vmem:[%s3094 + $0x88] sm:$0xff]
        %v3114 = vlaneseq
        %v3115 = vshrl.u32 %v3114, 7
        %v3116 = vsub.s32 0, %v3115
        %v3117 = vrot.slane %v3093, %v3116
        %v3118 = vlaneseq
        %v3119 = vshrl.u32 %v3118, 7
        %v3120 = vsub.s32 1, %v3119
        %v3121 = vrot.slane %v3093, %v3120
        %v3123 = vsel %vm488, %v3121, 0
        %3125 = vmatprep.subr.mxu0 0.0
        %3126 = vmatpush1.msra.mxu0 %v3095
        %3127 = vmatprep.subr.mxu0 0.0
        %3128 = vmatpush1.msra.mxu0 %v3096
        %3129 = vmatprep.subr.mxu0 0.0
        %3130 = vmatpush1.msra.mxu0 %v3097
        %3131 = vmatprep.subr.mxu0 0.0
        %3132 = vmatpush1.msra.mxu0 %v3098
        %3133 = vmatprep.subr.mxu0 0.0
        %3134 = vmatpush1.msra.mxu0 %v3099
        %3135 = vmatprep.subr.mxu0 0.0
        %3136 = vmatpush1.msra.mxu0 %v3100
        %3137 = vmatprep.subr.mxu0 0.0
        %3138 = vmatpush1.msra.mxu0 %v3101
        %3139 = vmatprep.subr.mxu0 0.0
        %3140 = vmatpush1.msra.mxu0 %v3102
        %3141 = vmatprep.subr.mxu0 0.0
        %3142 = vmatpush1.msra.mxu0 %v3103
        %3143 = vmatprep.subr.mxu0 0.0
        %3144 = vmatpush1.msra.mxu0 %v3104
        %3145 = vmatprep.subr.mxu0 0.0
        %3146 = vmatpush1.msra.mxu0 %v3105
        %3147 = vmatprep.subr.mxu0 0.0
        %3148 = vmatpush1.msra.mxu0 %v3106
        %3149 = vmatprep.subr.mxu0 0.0
        %3150 = vmatpush1.msra.mxu0 %v3107
        %3151 = vmatprep.subr.mxu0 0.0
        %3152 = vmatpush1.msra.mxu0 %v3108
        %3153 = vmatprep.subr.mxu0 0.0
        %3154 = vmatpush1.msra.mxu0 %v3109
        %3155 = vmatprep.subr.mxu0 0.0
        %3156 = vmatpush1.msra.mxu0 %v3110
        %3157 = vmatprep.subr.mxu0 0.0
        %3158 = vmatpush1.msra.mxu0 %v3111
        %3159 = vmatprep.subr.mxu0 0.0
        %3160 = vmatpush1.msra.mxu0 %v3112
        %3161 = vmatprep.subr.mxu0 0.0
        %3162 = vmatpush1.msra.mxu0 0.0
        %3163 = vmatprep.subr.mxu0 0.0
        %3164 = vmatpush1.msra.mxu0 0.0
        %3165 = vmatprep.subr.mxu0 0.0
        %3166 = vmatpush1.msra.mxu0 0.0
        %3167 = vmatprep.subr.mxu0 0.0
        %3168 = vmatpush1.msra.mxu0 0.0
        %3169 = vmatprep.subr.mxu0 0.0
        %3170 = vmatpush1.msra.mxu0 0.0
        %3171 = vmatprep.subr.mxu0 0.0
        %3172 = vmatpush1.msra.mxu0 0.0
        %3173 = vmatprep.subr.mxu0 0.0
        %3174 = vmatpush1.msra.mxu0 0.0
        %3175 = vmatprep.subr.mxu0 0.0
        %3176 = vmatpush1.msra.mxu0 0.0
        %3177 = vmatprep.subr.mxu0 0.0
        %3178 = vmatpush1.msra.mxu0 0.0
        %3179 = vmatprep.subr.mxu0 0.0
        %3180 = vmatpush1.msra.mxu0 0.0
        %3181 = vmatprep.subr.mxu0 0.0
        %3182 = vmatpush1.msra.mxu0 0.0
        %3183 = vmatprep.subr.mxu0 0.0
        %3184 = vmatpush1.msra.mxu0 0.0
        %3185 = vmatprep.subr.mxu0 0.0
        %3186 = vmatpush1.msra.mxu0 0.0
        %3187 = vmatprep.subr.mxu0 0.0
        %3188 = vmatpush1.msra.mxu0 0.0
        %3189 = vmatprep.mubr.f32.mxu0 %v3123
        %3190 = vmatmul.mubr.f32.gmra.mrb[0].mxu0 %v3117
        %v3191 = vpop.f32.mrb[0].mxu0
        %v3192 = vadd.f32 0.0, %v3191
        %v3193 = vpop.f32.mrb[0].mxu0
        %3194 = vdwg.mxu0
        %v3195 = vadd.f32 %v3091, %v3192
        %s3196 = scalar_lea.vmem [#allocation2], 50
        %v3197 = vld [vmem:[%s3196] ss:$8 sm:$0x3]
        %s3198 = scalar_lea.vmem %s3, 3744
        %v3199 = vld [vmem:[%s3198] sm:$0xff]
        %v3200 = vld [vmem:[%s3198 + $0x8] sm:$0xff]
        %v3201 = vld [vmem:[%s3198 + $0x10] sm:$0xff]
        %v3202 = vld [vmem:[%s3198 + $0x18] sm:$0xff]
        %v3203 = vld [vmem:[%s3198 + $0x20] sm:$0xff]
        %v3204 = vld [vmem:[%s3198 + $0x28] sm:$0xff]
        %v3205 = vld [vmem:[%s3198 + $0x30] sm:$0xff]
        %v3206 = vld [vmem:[%s3198 + $0x38] sm:$0xff]
        %v3207 = vld [vmem:[%s3198 + $0x40] sm:$0xff]
        %v3208 = vld [vmem:[%s3198 + $0x48] sm:$0xff]
        %v3209 = vld [vmem:[%s3198 + $0x50] sm:$0xff]
        %v3210 = vld [vmem:[%s3198 + $0x58] sm:$0xff]
        %v3211 = vld [vmem:[%s3198 + $0x60] sm:$0xff]
        %v3212 = vld [vmem:[%s3198 + $0x68] sm:$0xff]
        %v3213 = vld [vmem:[%s3198 + $0x70] sm:$0xff]
        %v3214 = vld [vmem:[%s3198 + $0x78] sm:$0xff]
        %v3215 = vld [vmem:[%s3198 + $0x80] sm:$0xff]
        %v3216 = vld [vmem:[%s3198 + $0x88] sm:$0xff]
        %v3218 = vlaneseq
        %v3219 = vshrl.u32 %v3218, 7
        %v3220 = vsub.s32 0, %v3219
        %v3221 = vrot.slane %v3197, %v3220
        %v3222 = vlaneseq
        %v3223 = vshrl.u32 %v3222, 7
        %v3224 = vsub.s32 1, %v3223
        %v3225 = vrot.slane %v3197, %v3224
        %v3227 = vsel %vm488, %v3225, 0
        %3229 = vmatprep.subr.mxu0 0.0
        %3230 = vmatpush1.msra.mxu0 %v3199
        %3231 = vmatprep.subr.mxu0 0.0
        %3232 = vmatpush1.msra.mxu0 %v3200
        %3233 = vmatprep.subr.mxu0 0.0
        %3234 = vmatpush1.msra.mxu0 %v3201
        %3235 = vmatprep.subr.mxu0 0.0
        %3236 = vmatpush1.msra.mxu0 %v3202
        %3237 = vmatprep.subr.mxu0 0.0
        %3238 = vmatpush1.msra.mxu0 %v3203
        %3239 = vmatprep.subr.mxu0 0.0
        %3240 = vmatpush1.msra.mxu0 %v3204
        %3241 = vmatprep.subr.mxu0 0.0
        %3242 = vmatpush1.msra.mxu0 %v3205
        %3243 = vmatprep.subr.mxu0 0.0
        %3244 = vmatpush1.msra.mxu0 %v3206
        %3245 = vmatprep.subr.mxu0 0.0
        %3246 = vmatpush1.msra.mxu0 %v3207
        %3247 = vmatprep.subr.mxu0 0.0
        %3248 = vmatpush1.msra.mxu0 %v3208
        %3249 = vmatprep.subr.mxu0 0.0
        %3250 = vmatpush1.msra.mxu0 %v3209
        %3251 = vmatprep.subr.mxu0 0.0
        %3252 = vmatpush1.msra.mxu0 %v3210
        %3253 = vmatprep.subr.mxu0 0.0
        %3254 = vmatpush1.msra.mxu0 %v3211
        %3255 = vmatprep.subr.mxu0 0.0
        %3256 = vmatpush1.msra.mxu0 %v3212
        %3257 = vmatprep.subr.mxu0 0.0
        %3258 = vmatpush1.msra.mxu0 %v3213
        %3259 = vmatprep.subr.mxu0 0.0
        %3260 = vmatpush1.msra.mxu0 %v3214
        %3261 = vmatprep.subr.mxu0 0.0
        %3262 = vmatpush1.msra.mxu0 %v3215
        %3263 = vmatprep.subr.mxu0 0.0
        %3264 = vmatpush1.msra.mxu0 %v3216
        %3265 = vmatprep.subr.mxu0 0.0
        %3266 = vmatpush1.msra.mxu0 0.0
        %3267 = vmatprep.subr.mxu0 0.0
        %3268 = vmatpush1.msra.mxu0 0.0
        %3269 = vmatprep.subr.mxu0 0.0
        %3270 = vmatpush1.msra.mxu0 0.0
        %3271 = vmatprep.subr.mxu0 0.0
        %3272 = vmatpush1.msra.mxu0 0.0
        %3273 = vmatprep.subr.mxu0 0.0
        %3274 = vmatpush1.msra.mxu0 0.0
        %3275 = vmatprep.subr.mxu0 0.0
        %3276 = vmatpush1.msra.mxu0 0.0
        %3277 = vmatprep.subr.mxu0 0.0
        %3278 = vmatpush1.msra.mxu0 0.0
        %3279 = vmatprep.subr.mxu0 0.0
        %3280 = vmatpush1.msra.mxu0 0.0
        %3281 = vmatprep.subr.mxu0 0.0
        %3282 = vmatpush1.msra.mxu0 0.0
        %3283 = vmatprep.subr.mxu0 0.0
        %3284 = vmatpush1.msra.mxu0 0.0
        %3285 = vmatprep.subr.mxu0 0.0
        %3286 = vmatpush1.msra.mxu0 0.0
        %3287 = vmatprep.subr.mxu0 0.0
        %3288 = vmatpush1.msra.mxu0 0.0
        %3289 = vmatprep.subr.mxu0 0.0
        %3290 = vmatpush1.msra.mxu0 0.0
        %3291 = vmatprep.subr.mxu0 0.0
        %3292 = vmatpush1.msra.mxu0 0.0
        %3293 = vmatprep.mubr.f32.mxu0 %v3227
        %3294 = vmatmul.mubr.f32.gmra.mrb[0].mxu0 %v3221
        %v3295 = vpop.f32.mrb[0].mxu0
        %v3296 = vadd.f32 0.0, %v3295
        %v3297 = vpop.f32.mrb[0].mxu0
        %3298 = vdwg.mxu0
        %v3299 = vadd.f32 %v3195, %v3296
        %s3300 = scalar_lea.vmem [#allocation2], 51
        %v3301 = vld [vmem:[%s3300] ss:$8 sm:$0x3]
        %s3302 = scalar_lea.vmem %s3, 3888
        %v3303 = vld [vmem:[%s3302] sm:$0xff]
        %v3304 = vld [vmem:[%s3302 + $0x8] sm:$0xff]
        %v3305 = vld [vmem:[%s3302 + $0x10] sm:$0xff]
        %v3306 = vld [vmem:[%s3302 + $0x18] sm:$0xff]
        %v3307 = vld [vmem:[%s3302 + $0x20] sm:$0xff]
        %v3308 = vld [vmem:[%s3302 + $0x28] sm:$0xff]
        %v3309 = vld [vmem:[%s3302 + $0x30] sm:$0xff]
        %v3310 = vld [vmem:[%s3302 + $0x38] sm:$0xff]
        %v3311 = vld [vmem:[%s3302 + $0x40] sm:$0xff]
        %v3312 = vld [vmem:[%s3302 + $0x48] sm:$0xff]
        %v3313 = vld [vmem:[%s3302 + $0x50] sm:$0xff]
        %v3314 = vld [vmem:[%s3302 + $0x58] sm:$0xff]
        %v3315 = vld [vmem:[%s3302 + $0x60] sm:$0xff]
        %v3316 = vld [vmem:[%s3302 + $0x68] sm:$0xff]
        %v3317 = vld [vmem:[%s3302 + $0x70] sm:$0xff]
        %v3318 = vld [vmem:[%s3302 + $0x78] sm:$0xff]
        %v3319 = vld [vmem:[%s3302 + $0x80] sm:$0xff]
        %v3320 = vld [vmem:[%s3302 + $0x88] sm:$0xff]
        %v3322 = vlaneseq
        %v3323 = vshrl.u32 %v3322, 7
        %v3324 = vsub.s32 0, %v3323
        %v3325 = vrot.slane %v3301, %v3324
        %v3326 = vlaneseq
        %v3327 = vshrl.u32 %v3326, 7
        %v3328 = vsub.s32 1, %v3327
        %v3329 = vrot.slane %v3301, %v3328
        %v3331 = vsel %vm488, %v3329, 0
        %3333 = vmatprep.subr.mxu0 0.0
        %3334 = vmatpush1.msra.mxu0 %v3303
        %3335 = vmatprep.subr.mxu0 0.0
        %3336 = vmatpush1.msra.mxu0 %v3304
        %3337 = vmatprep.subr.mxu0 0.0
        %3338 = vmatpush1.msra.mxu0 %v3305
        %3339 = vmatprep.subr.mxu0 0.0
        %3340 = vmatpush1.msra.mxu0 %v3306
        %3341 = vmatprep.subr.mxu0 0.0
        %3342 = vmatpush1.msra.mxu0 %v3307
        %3343 = vmatprep.subr.mxu0 0.0
        %3344 = vmatpush1.msra.mxu0 %v3308
        %3345 = vmatprep.subr.mxu0 0.0
        %3346 = vmatpush1.msra.mxu0 %v3309
        %3347 = vmatprep.subr.mxu0 0.0
        %3348 = vmatpush1.msra.mxu0 %v3310
        %3349 = vmatprep.subr.mxu0 0.0
        %3350 = vmatpush1.msra.mxu0 %v3311
        %3351 = vmatprep.subr.mxu0 0.0
        %3352 = vmatpush1.msra.mxu0 %v3312
        %3353 = vmatprep.subr.mxu0 0.0
        %3354 = vmatpush1.msra.mxu0 %v3313
        %3355 = vmatprep.subr.mxu0 0.0
        %3356 = vmatpush1.msra.mxu0 %v3314
        %3357 = vmatprep.subr.mxu0 0.0
        %3358 = vmatpush1.msra.mxu0 %v3315
        %3359 = vmatprep.subr.mxu0 0.0
        %3360 = vmatpush1.msra.mxu0 %v3316
        %3361 = vmatprep.subr.mxu0 0.0
        %3362 = vmatpush1.msra.mxu0 %v3317
        %3363 = vmatprep.subr.mxu0 0.0
        %3364 = vmatpush1.msra.mxu0 %v3318
        %3365 = vmatprep.subr.mxu0 0.0
        %3366 = vmatpush1.msra.mxu0 %v3319
        %3367 = vmatprep.subr.mxu0 0.0
        %3368 = vmatpush1.msra.mxu0 %v3320
        %3369 = vmatprep.subr.mxu0 0.0
        %3370 = vmatpush1.msra.mxu0 0.0
        %3371 = vmatprep.subr.mxu0 0.0
        %3372 = vmatpush1.msra.mxu0 0.0
        %3373 = vmatprep.subr.mxu0 0.0
        %3374 = vmatpush1.msra.mxu0 0.0
        %3375 = vmatprep.subr.mxu0 0.0
        %3376 = vmatpush1.msra.mxu0 0.0
        %3377 = vmatprep.subr.mxu0 0.0
        %3378 = vmatpush1.msra.mxu0 0.0
        %3379 = vmatprep.subr.mxu0 0.0
        %3380 = vmatpush1.msra.mxu0 0.0
        %3381 = vmatprep.subr.mxu0 0.0
        %3382 = vmatpush1.msra.mxu0 0.0
        %3383 = vmatprep.subr.mxu0 0.0
        %3384 = vmatpush1.msra.mxu0 0.0
        %3385 = vmatprep.subr.mxu0 0.0
        %3386 = vmatpush1.msra.mxu0 0.0
        %3387 = vmatprep.subr.mxu0 0.0
        %3388 = vmatpush1.msra.mxu0 0.0
        %3389 = vmatprep.subr.mxu0 0.0
        %3390 = vmatpush1.msra.mxu0 0.0
        %3391 = vmatprep.subr.mxu0 0.0
        %3392 = vmatpush1.msra.mxu0 0.0
        %3393 = vmatprep.subr.mxu0 0.0
        %3394 = vmatpush1.msra.mxu0 0.0
        %3395 = vmatprep.subr.mxu0 0.0
        %3396 = vmatpush1.msra.mxu0 0.0
        %3397 = vmatprep.mubr.f32.mxu0 %v3331
        %3398 = vmatmul.mubr.f32.gmra.mrb[0].mxu0 %v3325
        %v3399 = vpop.f32.mrb[0].mxu0
        %v3400 = vadd.f32 0.0, %v3399
        %v3401 = vpop.f32.mrb[0].mxu0
        %3402 = vdwg.mxu0
        %v3403 = vadd.f32 %v3299, %v3400
        %s3404 = scalar_lea.vmem [#allocation2], 52
        %v3405 = vld [vmem:[%s3404] ss:$8 sm:$0x3]
        %s3406 = scalar_lea.vmem %s3, 4032
        %v3407 = vld [vmem:[%s3406] sm:$0xff]
        %v3408 = vld [vmem:[%s3406 + $0x8] sm:$0xff]
        %v3409 = vld [vmem:[%s3406 + $0x10] sm:$0xff]
        %v3410 = vld [vmem:[%s3406 + $0x18] sm:$0xff]
        %v3411 = vld [vmem:[%s3406 + $0x20] sm:$0xff]
        %v3412 = vld [vmem:[%s3406 + $0x28] sm:$0xff]
        %v3413 = vld [vmem:[%s3406 + $0x30] sm:$0xff]
        %v3414 = vld [vmem:[%s3406 + $0x38] sm:$0xff]
        %v3415 = vld [vmem:[%s3406 + $0x40] sm:$0xff]
        %v3416 = vld [vmem:[%s3406 + $0x48] sm:$0xff]
        %v3417 = vld [vmem:[%s3406 + $0x50] sm:$0xff]
        %v3418 = vld [vmem:[%s3406 + $0x58] sm:$0xff]
        %v3419 = vld [vmem:[%s3406 + $0x60] sm:$0xff]
        %v3420 = vld [vmem:[%s3406 + $0x68] sm:$0xff]
        %v3421 = vld [vmem:[%s3406 + $0x70] sm:$0xff]
        %v3422 = vld [vmem:[%s3406 + $0x78] sm:$0xff]
        %v3423 = vld [vmem:[%s3406 + $0x80] sm:$0xff]
        %v3424 = vld [vmem:[%s3406 + $0x88] sm:$0xff]
        %v3426 = vlaneseq
        %v3427 = vshrl.u32 %v3426, 7
        %v3428 = vsub.s32 0, %v3427
        %v3429 = vrot.slane %v3405, %v3428
        %v3430 = vlaneseq
        %v3431 = vshrl.u32 %v3430, 7
        %v3432 = vsub.s32 1, %v3431
        %v3433 = vrot.slane %v3405, %v3432
        %v3435 = vsel %vm488, %v3433, 0
        %3437 = vmatprep.subr.mxu0 0.0
        %3438 = vmatpush1.msra.mxu0 %v3407
        %3439 = vmatprep.subr.mxu0 0.0
        %3440 = vmatpush1.msra.mxu0 %v3408
        %3441 = vmatprep.subr.mxu0 0.0
        %3442 = vmatpush1.msra.mxu0 %v3409
        %3443 = vmatprep.subr.mxu0 0.0
        %3444 = vmatpush1.msra.mxu0 %v3410
        %3445 = vmatprep.subr.mxu0 0.0
        %3446 = vmatpush1.msra.mxu0 %v3411
        %3447 = vmatprep.subr.mxu0 0.0
        %3448 = vmatpush1.msra.mxu0 %v3412
        %3449 = vmatprep.subr.mxu0 0.0
        %3450 = vmatpush1.msra.mxu0 %v3413
        %3451 = vmatprep.subr.mxu0 0.0
        %3452 = vmatpush1.msra.mxu0 %v3414
        %3453 = vmatprep.subr.mxu0 0.0
        %3454 = vmatpush1.msra.mxu0 %v3415
        %3455 = vmatprep.subr.mxu0 0.0
        %3456 = vmatpush1.msra.mxu0 %v3416
        %3457 = vmatprep.subr.mxu0 0.0
        %3458 = vmatpush1.msra.mxu0 %v3417
        %3459 = vmatprep.subr.mxu0 0.0
        %3460 = vmatpush1.msra.mxu0 %v3418
        %3461 = vmatprep.subr.mxu0 0.0
        %3462 = vmatpush1.msra.mxu0 %v3419
        %3463 = vmatprep.subr.mxu0 0.0
        %3464 = vmatpush1.msra.mxu0 %v3420
        %3465 = vmatprep.subr.mxu0 0.0
        %3466 = vmatpush1.msra.mxu0 %v3421
        %3467 = vmatprep.subr.mxu0 0.0
        %3468 = vmatpush1.msra.mxu0 %v3422
        %3469 = vmatprep.subr.mxu0 0.0
        %3470 = vmatpush1.msra.mxu0 %v3423
        %3471 = vmatprep.subr.mxu0 0.0
        %3472 = vmatpush1.msra.mxu0 %v3424
        %3473 = vmatprep.subr.mxu0 0.0
        %3474 = vmatpush1.msra.mxu0 0.0
        %3475 = vmatprep.subr.mxu0 0.0
        %3476 = vmatpush1.msra.mxu0 0.0
        %3477 = vmatprep.subr.mxu0 0.0
        %3478 = vmatpush1.msra.mxu0 0.0
        %3479 = vmatprep.subr.mxu0 0.0
        %3480 = vmatpush1.msra.mxu0 0.0
        %3481 = vmatprep.subr.mxu0 0.0
        %3482 = vmatpush1.msra.mxu0 0.0
        %3483 = vmatprep.subr.mxu0 0.0
        %3484 = vmatpush1.msra.mxu0 0.0
        %3485 = vmatprep.subr.mxu0 0.0
        %3486 = vmatpush1.msra.mxu0 0.0
        %3487 = vmatprep.subr.mxu0 0.0
        %3488 = vmatpush1.msra.mxu0 0.0
        %3489 = vmatprep.subr.mxu0 0.0
        %3490 = vmatpush1.msra.mxu0 0.0
        %3491 = vmatprep.subr.mxu0 0.0
        %3492 = vmatpush1.msra.mxu0 0.0
        %3493 = vmatprep.subr.mxu0 0.0
        %3494 = vmatpush1.msra.mxu0 0.0
        %3495 = vmatprep.subr.mxu0 0.0
        %3496 = vmatpush1.msra.mxu0 0.0
        %3497 = vmatprep.subr.mxu0 0.0
        %3498 = vmatpush1.msra.mxu0 0.0
        %3499 = vmatprep.subr.mxu0 0.0
        %3500 = vmatpush1.msra.mxu0 0.0
        %3501 = vmatprep.mubr.f32.mxu0 %v3435
        %3502 = vmatmul.mubr.f32.gmra.mrb[0].mxu0 %v3429
        %v3503 = vpop.f32.mrb[0].mxu0
        %v3504 = vadd.f32 0.0, %v3503
        %v3505 = vpop.f32.mrb[0].mxu0
        %3506 = vdwg.mxu0
        %v3507 = vadd.f32 %v3403, %v3504
        %s3508 = scalar_lea.vmem [#allocation2], 53
        %v3509 = vld [vmem:[%s3508] ss:$8 sm:$0x3]
        %s3510 = scalar_lea.vmem %s3, 4176
        %v3511 = vld [vmem:[%s3510] sm:$0xff]
        %v3512 = vld [vmem:[%s3510 + $0x8] sm:$0xff]
        %v3513 = vld [vmem:[%s3510 + $0x10] sm:$0xff]
        %v3514 = vld [vmem:[%s3510 + $0x18] sm:$0xff]
        %v3515 = vld [vmem:[%s3510 + $0x20] sm:$0xff]
        %v3516 = vld [vmem:[%s3510 + $0x28] sm:$0xff]
        %v3517 = vld [vmem:[%s3510 + $0x30] sm:$0xff]
        %v3518 = vld [vmem:[%s3510 + $0x38] sm:$0xff]
        %v3519 = vld [vmem:[%s3510 + $0x40] sm:$0xff]
        %v3520 = vld [vmem:[%s3510 + $0x48] sm:$0xff]
        %v3521 = vld [vmem:[%s3510 + $0x50] sm:$0xff]
        %v3522 = vld [vmem:[%s3510 + $0x58] sm:$0xff]
        %v3523 = vld [vmem:[%s3510 + $0x60] sm:$0xff]
        %v3524 = vld [vmem:[%s3510 + $0x68] sm:$0xff]
        %v3525 = vld [vmem:[%s3510 + $0x70] sm:$0xff]
        %v3526 = vld [vmem:[%s3510 + $0x78] sm:$0xff]
        %v3527 = vld [vmem:[%s3510 + $0x80] sm:$0xff]
        %v3528 = vld [vmem:[%s3510 + $0x88] sm:$0xff]
        %v3530 = vlaneseq
        %v3531 = vshrl.u32 %v3530, 7
        %v3532 = vsub.s32 0, %v3531
        %v3533 = vrot.slane %v3509, %v3532
        %v3534 = vlaneseq
        %v3535 = vshrl.u32 %v3534, 7
        %v3536 = vsub.s32 1, %v3535
        %v3537 = vrot.slane %v3509, %v3536
        %v3539 = vsel %vm488, %v3537, 0
        %3541 = vmatprep.subr.mxu0 0.0
        %3542 = vmatpush1.msra.mxu0 %v3511
        %3543 = vmatprep.subr.mxu0 0.0
        %3544 = vmatpush1.msra.mxu0 %v3512
        %3545 = vmatprep.subr.mxu0 0.0
        %3546 = vmatpush1.msra.mxu0 %v3513
        %3547 = vmatprep.subr.mxu0 0.0
        %3548 = vmatpush1.msra.mxu0 %v3514
        %3549 = vmatprep.subr.mxu0 0.0
        %3550 = vmatpush1.msra.mxu0 %v3515
        %3551 = vmatprep.subr.mxu0 0.0
        %3552 = vmatpush1.msra.mxu0 %v3516
        %3553 = vmatprep.subr.mxu0 0.0
        %3554 = vmatpush1.msra.mxu0 %v3517
        %3555 = vmatprep.subr.mxu0 0.0
        %3556 = vmatpush1.msra.mxu0 %v3518
        %3557 = vmatprep.subr.mxu0 0.0
        %3558 = vmatpush1.msra.mxu0 %v3519
        %3559 = vmatprep.subr.mxu0 0.0
        %3560 = vmatpush1.msra.mxu0 %v3520
        %3561 = vmatprep.subr.mxu0 0.0
        %3562 = vmatpush1.msra.mxu0 %v3521
        %3563 = vmatprep.subr.mxu0 0.0
        %3564 = vmatpush1.msra.mxu0 %v3522
        %3565 = vmatprep.subr.mxu0 0.0
        %3566 = vmatpush1.msra.mxu0 %v3523
        %3567 = vmatprep.subr.mxu0 0.0
        %3568 = vmatpush1.msra.mxu0 %v3524
        %3569 = vmatprep.subr.mxu0 0.0
        %3570 = vmatpush1.msra.mxu0 %v3525
        %3571 = vmatprep.subr.mxu0 0.0
        %3572 = vmatpush1.msra.mxu0 %v3526
        %3573 = vmatprep.subr.mxu0 0.0
        %3574 = vmatpush1.msra.mxu0 %v3527
        %3575 = vmatprep.subr.mxu0 0.0
        %3576 = vmatpush1.msra.mxu0 %v3528
        %3577 = vmatprep.subr.mxu0 0.0
        %3578 = vmatpush1.msra.mxu0 0.0
        %3579 = vmatprep.subr.mxu0 0.0
        %3580 = vmatpush1.msra.mxu0 0.0
        %3581 = vmatprep.subr.mxu0 0.0
        %3582 = vmatpush1.msra.mxu0 0.0
        %3583 = vmatprep.subr.mxu0 0.0
        %3584 = vmatpush1.msra.mxu0 0.0
        %3585 = vmatprep.subr.mxu0 0.0
        %3586 = vmatpush1.msra.mxu0 0.0
        %3587 = vmatprep.subr.mxu0 0.0
        %3588 = vmatpush1.msra.mxu0 0.0
        %3589 = vmatprep.subr.mxu0 0.0
        %3590 = vmatpush1.msra.mxu0 0.0
        %3591 = vmatprep.subr.mxu0 0.0
        %3592 = vmatpush1.msra.mxu0 0.0
        %3593 = vmatprep.subr.mxu0 0.0
        %3594 = vmatpush1.msra.mxu0 0.0
        %3595 = vmatprep.subr.mxu0 0.0
        %3596 = vmatpush1.msra.mxu0 0.0
        %3597 = vmatprep.subr.mxu0 0.0
        %3598 = vmatpush1.msra.mxu0 0.0
        %3599 = vmatprep.subr.mxu0 0.0
        %3600 = vmatpush1.msra.mxu0 0.0
        %3601 = vmatprep.subr.mxu0 0.0
        %3602 = vmatpush1.msra.mxu0 0.0
        %3603 = vmatprep.subr.mxu0 0.0
        %3604 = vmatpush1.msra.mxu0 0.0
        %3605 = vmatprep.mubr.f32.mxu0 %v3539
        %3606 = vmatmul.mubr.f32.gmra.mrb[0].mxu0 %v3533
        %v3607 = vpop.f32.mrb[0].mxu0
        %v3608 = vadd.f32 0.0, %v3607
        %v3609 = vpop.f32.mrb[0].mxu0
        %3610 = vdwg.mxu0
        %v3611 = vadd.f32 %v3507, %v3608
        %s3612 = scalar_lea.vmem [#allocation2], 54
        %v3613 = vld [vmem:[%s3612] ss:$8 sm:$0x3]
        %s3614 = scalar_lea.vmem %s3, 4320
        %v3615 = vld [vmem:[%s3614] sm:$0xff]
        %v3616 = vld [vmem:[%s3614 + $0x8] sm:$0xff]
        %v3617 = vld [vmem:[%s3614 + $0x10] sm:$0xff]
        %v3618 = vld [vmem:[%s3614 + $0x18] sm:$0xff]
        %v3619 = vld [vmem:[%s3614 + $0x20] sm:$0xff]
        %v3620 = vld [vmem:[%s3614 + $0x28] sm:$0xff]
        %v3621 = vld [vmem:[%s3614 + $0x30] sm:$0xff]
        %v3622 = vld [vmem:[%s3614 + $0x38] sm:$0xff]
        %v3623 = vld [vmem:[%s3614 + $0x40] sm:$0xff]
        %v3624 = vld [vmem:[%s3614 + $0x48] sm:$0xff]
        %v3625 = vld [vmem:[%s3614 + $0x50] sm:$0xff]
        %v3626 = vld [vmem:[%s3614 + $0x58] sm:$0xff]
        %v3627 = vld [vmem:[%s3614 + $0x60] sm:$0xff]
        %v3628 = vld [vmem:[%s3614 + $0x68] sm:$0xff]
        %v3629 = vld [vmem:[%s3614 + $0x70] sm:$0xff]
        %v3630 = vld [vmem:[%s3614 + $0x78] sm:$0xff]
        %v3631 = vld [vmem:[%s3614 + $0x80] sm:$0xff]
        %v3632 = vld [vmem:[%s3614 + $0x88] sm:$0xff]
        %v3634 = vlaneseq
        %v3635 = vshrl.u32 %v3634, 7
        %v3636 = vsub.s32 0, %v3635
        %v3637 = vrot.slane %v3613, %v3636
        %v3638 = vlaneseq
        %v3639 = vshrl.u32 %v3638, 7
        %v3640 = vsub.s32 1, %v3639
        %v3641 = vrot.slane %v3613, %v3640
        %v3643 = vsel %vm488, %v3641, 0
        %3645 = vmatprep.subr.mxu0 0.0
        %3646 = vmatpush1.msra.mxu0 %v3615
        %3647 = vmatprep.subr.mxu0 0.0
        %3648 = vmatpush1.msra.mxu0 %v3616
        %3649 = vmatprep.subr.mxu0 0.0
        %3650 = vmatpush1.msra.mxu0 %v3617
        %3651 = vmatprep.subr.mxu0 0.0
        %3652 = vmatpush1.msra.mxu0 %v3618
        %3653 = vmatprep.subr.mxu0 0.0
        %3654 = vmatpush1.msra.mxu0 %v3619
        %3655 = vmatprep.subr.mxu0 0.0
        %3656 = vmatpush1.msra.mxu0 %v3620
        %3657 = vmatprep.subr.mxu0 0.0
        %3658 = vmatpush1.msra.mxu0 %v3621
        %3659 = vmatprep.subr.mxu0 0.0
        %3660 = vmatpush1.msra.mxu0 %v3622
        %3661 = vmatprep.subr.mxu0 0.0
        %3662 = vmatpush1.msra.mxu0 %v3623
        %3663 = vmatprep.subr.mxu0 0.0
        %3664 = vmatpush1.msra.mxu0 %v3624
        %3665 = vmatprep.subr.mxu0 0.0
        %3666 = vmatpush1.msra.mxu0 %v3625
        %3667 = vmatprep.subr.mxu0 0.0
        %3668 = vmatpush1.msra.mxu0 %v3626
        %3669 = vmatprep.subr.mxu0 0.0
        %3670 = vmatpush1.msra.mxu0 %v3627
        %3671 = vmatprep.subr.mxu0 0.0
        %3672 = vmatpush1.msra.mxu0 %v3628
        %3673 = vmatprep.subr.mxu0 0.0
        %3674 = vmatpush1.msra.mxu0 %v3629
        %3675 = vmatprep.subr.mxu0 0.0
        %3676 = vmatpush1.msra.mxu0 %v3630
        %3677 = vmatprep.subr.mxu0 0.0
        %3678 = vmatpush1.msra.mxu0 %v3631
        %3679 = vmatprep.subr.mxu0 0.0
        %3680 = vmatpush1.msra.mxu0 %v3632
        %3681 = vmatprep.subr.mxu0 0.0
        %3682 = vmatpush1.msra.mxu0 0.0
        %3683 = vmatprep.subr.mxu0 0.0
        %3684 = vmatpush1.msra.mxu0 0.0
        %3685 = vmatprep.subr.mxu0 0.0
        %3686 = vmatpush1.msra.mxu0 0.0
        %3687 = vmatprep.subr.mxu0 0.0
        %3688 = vmatpush1.msra.mxu0 0.0
        %3689 = vmatprep.subr.mxu0 0.0
        %3690 = vmatpush1.msra.mxu0 0.0
        %3691 = vmatprep.subr.mxu0 0.0
        %3692 = vmatpush1.msra.mxu0 0.0
        %3693 = vmatprep.subr.mxu0 0.0
        %3694 = vmatpush1.msra.mxu0 0.0
        %3695 = vmatprep.subr.mxu0 0.0
        %3696 = vmatpush1.msra.mxu0 0.0
        %3697 = vmatprep.subr.mxu0 0.0
        %3698 = vmatpush1.msra.mxu0 0.0
        %3699 = vmatprep.subr.mxu0 0.0
        %3700 = vmatpush1.msra.mxu0 0.0
        %3701 = vmatprep.subr.mxu0 0.0
        %3702 = vmatpush1.msra.mxu0 0.0
        %3703 = vmatprep.subr.mxu0 0.0
        %3704 = vmatpush1.msra.mxu0 0.0
        %3705 = vmatprep.subr.mxu0 0.0
        %3706 = vmatpush1.msra.mxu0 0.0
        %3707 = vmatprep.subr.mxu0 0.0
        %3708 = vmatpush1.msra.mxu0 0.0
        %3709 = vmatprep.mubr.f32.mxu0 %v3643
        %3710 = vmatmul.mubr.f32.gmra.mrb[0].mxu0 %v3637
        %v3711 = vpop.f32.mrb[0].mxu0
        %v3712 = vadd.f32 0.0, %v3711
        %v3713 = vpop.f32.mrb[0].mxu0
        %3714 = vdwg.mxu0
        %v3715 = vadd.f32 %v3611, %v3712
        %s3716 = scalar_lea.vmem [#allocation2], 55
        %v3717 = vld [vmem:[%s3716] ss:$8 sm:$0x3]
        %s3718 = scalar_lea.vmem %s3, 4464
        %v3719 = vld [vmem:[%s3718] sm:$0xff]
        %v3720 = vld [vmem:[%s3718 + $0x8] sm:$0xff]
        %v3721 = vld [vmem:[%s3718 + $0x10] sm:$0xff]
        %v3722 = vld [vmem:[%s3718 + $0x18] sm:$0xff]
        %v3723 = vld [vmem:[%s3718 + $0x20] sm:$0xff]
        %v3724 = vld [vmem:[%s3718 + $0x28] sm:$0xff]
        %v3725 = vld [vmem:[%s3718 + $0x30] sm:$0xff]
        %v3726 = vld [vmem:[%s3718 + $0x38] sm:$0xff]
        %v3727 = vld [vmem:[%s3718 + $0x40] sm:$0xff]
        %v3728 = vld [vmem:[%s3718 + $0x48] sm:$0xff]
        %v3729 = vld [vmem:[%s3718 + $0x50] sm:$0xff]
        %v3730 = vld [vmem:[%s3718 + $0x58] sm:$0xff]
        %v3731 = vld [vmem:[%s3718 + $0x60] sm:$0xff]
        %v3732 = vld [vmem:[%s3718 + $0x68] sm:$0xff]
        %v3733 = vld [vmem:[%s3718 + $0x70] sm:$0xff]
        %v3734 = vld [vmem:[%s3718 + $0x78] sm:$0xff]
        %v3735 = vld [vmem:[%s3718 + $0x80] sm:$0xff]
        %v3736 = vld [vmem:[%s3718 + $0x88] sm:$0xff]
        %v3738 = vlaneseq
        %v3739 = vshrl.u32 %v3738, 7
        %v3740 = vsub.s32 0, %v3739
        %v3741 = vrot.slane %v3717, %v3740
        %v3742 = vlaneseq
        %v3743 = vshrl.u32 %v3742, 7
        %v3744 = vsub.s32 1, %v3743
        %v3745 = vrot.slane %v3717, %v3744
        %v3747 = vsel %vm488, %v3745, 0
        %3749 = vmatprep.subr.mxu0 0.0
        %3750 = vmatpush1.msra.mxu0 %v3719
        %3751 = vmatprep.subr.mxu0 0.0
        %3752 = vmatpush1.msra.mxu0 %v3720
        %3753 = vmatprep.subr.mxu0 0.0
        %3754 = vmatpush1.msra.mxu0 %v3721
        %3755 = vmatprep.subr.mxu0 0.0
        %3756 = vmatpush1.msra.mxu0 %v3722
        %3757 = vmatprep.subr.mxu0 0.0
        %3758 = vmatpush1.msra.mxu0 %v3723
        %3759 = vmatprep.subr.mxu0 0.0
        %3760 = vmatpush1.msra.mxu0 %v3724
        %3761 = vmatprep.subr.mxu0 0.0
        %3762 = vmatpush1.msra.mxu0 %v3725
        %3763 = vmatprep.subr.mxu0 0.0
        %3764 = vmatpush1.msra.mxu0 %v3726
        %3765 = vmatprep.subr.mxu0 0.0
        %3766 = vmatpush1.msra.mxu0 %v3727
        %3767 = vmatprep.subr.mxu0 0.0
        %3768 = vmatpush1.msra.mxu0 %v3728
        %3769 = vmatprep.subr.mxu0 0.0
        %3770 = vmatpush1.msra.mxu0 %v3729
        %3771 = vmatprep.subr.mxu0 0.0
        %3772 = vmatpush1.msra.mxu0 %v3730
        %3773 = vmatprep.subr.mxu0 0.0
        %3774 = vmatpush1.msra.mxu0 %v3731
        %3775 = vmatprep.subr.mxu0 0.0
        %3776 = vmatpush1.msra.mxu0 %v3732
        %3777 = vmatprep.subr.mxu0 0.0
        %3778 = vmatpush1.msra.mxu0 %v3733
        %3779 = vmatprep.subr.mxu0 0.0
        %3780 = vmatpush1.msra.mxu0 %v3734
        %3781 = vmatprep.subr.mxu0 0.0
        %3782 = vmatpush1.msra.mxu0 %v3735
        %3783 = vmatprep.subr.mxu0 0.0
        %3784 = vmatpush1.msra.mxu0 %v3736
        %3785 = vmatprep.subr.mxu0 0.0
        %3786 = vmatpush1.msra.mxu0 0.0
        %3787 = vmatprep.subr.mxu0 0.0
        %3788 = vmatpush1.msra.mxu0 0.0
        %3789 = vmatprep.subr.mxu0 0.0
        %3790 = vmatpush1.msra.mxu0 0.0
        %3791 = vmatprep.subr.mxu0 0.0
        %3792 = vmatpush1.msra.mxu0 0.0
        %3793 = vmatprep.subr.mxu0 0.0
        %3794 = vmatpush1.msra.mxu0 0.0
        %3795 = vmatprep.subr.mxu0 0.0
        %3796 = vmatpush1.msra.mxu0 0.0
        %3797 = vmatprep.subr.mxu0 0.0
        %3798 = vmatpush1.msra.mxu0 0.0
        %3799 = vmatprep.subr.mxu0 0.0
        %3800 = vmatpush1.msra.mxu0 0.0
        %3801 = vmatprep.subr.mxu0 0.0
        %3802 = vmatpush1.msra.mxu0 0.0
        %3803 = vmatprep.subr.mxu0 0.0
        %3804 = vmatpush1.msra.mxu0 0.0
        %3805 = vmatprep.subr.mxu0 0.0
        %3806 = vmatpush1.msra.mxu0 0.0
        %3807 = vmatprep.subr.mxu0 0.0
        %3808 = vmatpush1.msra.mxu0 0.0
        %3809 = vmatprep.subr.mxu0 0.0
        %3810 = vmatpush1.msra.mxu0 0.0
        %3811 = vmatprep.subr.mxu0 0.0
        %3812 = vmatpush1.msra.mxu0 0.0
        %3813 = vmatprep.mubr.f32.mxu0 %v3747
        %3814 = vmatmul.mubr.f32.gmra.mrb[0].mxu0 %v3741
        %v3815 = vpop.f32.mrb[0].mxu0
        %v3816 = vadd.f32 0.0, %v3815
        %v3817 = vpop.f32.mrb[0].mxu0
        %3818 = vdwg.mxu0
        %v3819 = vadd.f32 %v3715, %v3816
        %v3820 = vld [vmem:[%s4] sm:$0x1]
        %v3821 = vadd.f32 %v3819, %v3820
        %v3822 = vmax.f32 %v3821, 0.0
        %v3823 = vld [vmem:[%s5] sm:$0xff]
        %v3824 = vld [vmem:[%s5 + $0x8] sm:$0xff]
        %v3825 = vld [vmem:[%s5 + $0x10] sm:$0xff]
        %v3826 = vld [vmem:[%s5 + $0x18] sm:$0xff]
        %v3827 = vld [vmem:[%s5 + $0x20] sm:$0xff]
        %v3828 = vld [vmem:[%s5 + $0x28] sm:$0xff]
        %v3829 = vld [vmem:[%s5 + $0x30] sm:$0xff]
        %v3830 = vld [vmem:[%s5 + $0x38] sm:$0xff]
        %v3831 = vld [vmem:[%s5 + $0x40] sm:$0xff]
        %v3832 = vld [vmem:[%s5 + $0x48] sm:$0xff]
        %v3833 = vld [vmem:[%s5 + $0x50] sm:$0xff]
        %v3834 = vld [vmem:[%s5 + $0x58] sm:$0xff]
        %v3835 = vld [vmem:[%s5 + $0x60] sm:$0xff]
        %v3836 = vld [vmem:[%s5 + $0x68] sm:$0xff]
        %v3837 = vld [vmem:[%s5 + $0x70] sm:$0xff]
        %v3838 = vld [vmem:[%s5 + $0x78] sm:$0xff]
        %v3839 = vld [vmem:[%s6] sm:$0x1]
        %3840 = vmatprep.subr.mxu0 0.0
        %3841 = vmatpush1.msra.mxu0 %v3823
        %3842 = vmatprep.subr.mxu0 0.0
        %3843 = vmatpush1.msra.mxu0 %v3824
        %3844 = vmatprep.subr.mxu0 0.0
        %3845 = vmatpush1.msra.mxu0 %v3825
        %3846 = vmatprep.subr.mxu0 0.0
        %3847 = vmatpush1.msra.mxu0 %v3826
        %3848 = vmatprep.subr.mxu0 0.0
        %3849 = vmatpush1.msra.mxu0 %v3827
        %3850 = vmatprep.subr.mxu0 0.0
        %3851 = vmatpush1.msra.mxu0 %v3828
        %3852 = vmatprep.subr.mxu0 0.0
        %3853 = vmatpush1.msra.mxu0 %v3829
        %3854 = vmatprep.subr.mxu0 0.0
        %3855 = vmatpush1.msra.mxu0 %v3830
        %3856 = vmatprep.subr.mxu0 0.0
        %3857 = vmatpush1.msra.mxu0 %v3831
        %3858 = vmatprep.subr.mxu0 0.0
        %3859 = vmatpush1.msra.mxu0 %v3832
        %3860 = vmatprep.subr.mxu0 0.0
        %3861 = vmatpush1.msra.mxu0 %v3833
        %3862 = vmatprep.subr.mxu0 0.0
        %3863 = vmatpush1.msra.mxu0 %v3834
        %3864 = vmatprep.subr.mxu0 0.0
        %3865 = vmatpush1.msra.mxu0 %v3835
        %3866 = vmatprep.subr.mxu0 0.0
        %3867 = vmatpush1.msra.mxu0 %v3836
        %3868 = vmatprep.subr.mxu0 0.0
        %3869 = vmatpush1.msra.mxu0 %v3837
        %3870 = vmatprep.subr.mxu0 0.0
        %3871 = vmatpush1.msra.mxu0 %v3838
        %3872 = vmatprep.subr.mxu0 0.0
        %3873 = vmatpush1.msra.mxu0 0.0
        %3874 = vmatprep.subr.mxu0 0.0
        %3875 = vmatpush1.msra.mxu0 0.0
        %3876 = vmatprep.subr.mxu0 0.0
        %3877 = vmatpush1.msra.mxu0 0.0
        %3878 = vmatprep.subr.mxu0 0.0
        %3879 = vmatpush1.msra.mxu0 0.0
        %3880 = vmatprep.subr.mxu0 0.0
        %3881 = vmatpush1.msra.mxu0 0.0
        %3882 = vmatprep.subr.mxu0 0.0
        %3883 = vmatpush1.msra.mxu0 0.0
        %3884 = vmatprep.subr.mxu0 0.0
        %3885 = vmatpush1.msra.mxu0 0.0
        %3886 = vmatprep.subr.mxu0 0.0
        %3887 = vmatpush1.msra.mxu0 0.0
        %3888 = vmatprep.subr.mxu0 0.0
        %3889 = vmatpush1.msra.mxu0 0.0
        %3890 = vmatprep.subr.mxu0 0.0
        %3891 = vmatpush1.msra.mxu0 0.0
        %3892 = vmatprep.subr.mxu0 0.0
        %3893 = vmatpush1.msra.mxu0 0.0
        %3894 = vmatprep.subr.mxu0 0.0
        %3895 = vmatpush1.msra.mxu0 0.0
        %3896 = vmatprep.subr.mxu0 0.0
        %3897 = vmatpush1.msra.mxu0 0.0
        %3898 = vmatprep.subr.mxu0 0.0
        %3899 = vmatpush1.msra.mxu0 0.0
        %3900 = vmatprep.subr.mxu0 0.0
        %3901 = vmatpush1.msra.mxu0 0.0
        %3902 = vmatprep.subr.mxu0 0.0
        %3903 = vmatpush1.msra.mxu0 0.0
        %3904 = vmatprep.mubr.f32.mxu0 0.0
        %3905 = vmatmul.mubr.f32.gmra.mrb[0].mxu0 %v3822
        %v3906 = vpop.f32.mrb[0].mxu0
        %v3907 = vadd.f32 %v3839, %v3906
        %v3908 = vpop.f32.mrb[0].mxu0
        %3909 = vdwg.mxu0
        %v3910 = vmax.f32 %v3907, 0.0
        %v3911 = vld [vmem:[%s7] sm:$0xff]
        %v3912 = vld [vmem:[%s7 + $0x8] sm:$0xff]
        %v3913 = vld [vmem:[%s7 + $0x10] sm:$0xff]
        %v3914 = vld [vmem:[%s7 + $0x18] sm:$0xff]
        %v3915 = vld [vmem:[%s7 + $0x20] sm:$0xff]
        %v3916 = vld [vmem:[%s7 + $0x28] sm:$0xff]
        %v3917 = vld [vmem:[%s7 + $0x30] sm:$0xff]
        %v3918 = vld [vmem:[%s7 + $0x38] sm:$0xff]
        %v3919 = vld [vmem:[%s7 + $0x40] sm:$0xff]
        %v3920 = vld [vmem:[%s7 + $0x48] sm:$0xff]
        %v3921 = vld [vmem:[%s7 + $0x50] sm:$0xff]
        %v3922 = vld [vmem:[%s7 + $0x58] sm:$0xff]
        %v3923 = vld [vmem:[%s7 + $0x60] sm:$0xff]
        %v3924 = vld [vmem:[%s7 + $0x68] sm:$0xff]
        %v3925 = vld [vmem:[%s7 + $0x70] sm:$0xff]
        %v3926 = vld [vmem:[%s7 + $0x78] sm:$0xff]
        %v3927 = vld [vmem:[%s8] sm:$0x1]
        %3928 = vmatprep.subr.mxu0 0.0
        %3929 = vmatpush1.msra.mxu0 %v3911
        %3930 = vmatprep.subr.mxu0 0.0
        %3931 = vmatpush1.msra.mxu0 %v3912
        %3932 = vmatprep.subr.mxu0 0.0
        %3933 = vmatpush1.msra.mxu0 %v3913
        %3934 = vmatprep.subr.mxu0 0.0
        %3935 = vmatpush1.msra.mxu0 %v3914
        %3936 = vmatprep.subr.mxu0 0.0
        %3937 = vmatpush1.msra.mxu0 %v3915
        %3938 = vmatprep.subr.mxu0 0.0
        %3939 = vmatpush1.msra.mxu0 %v3916
        %3940 = vmatprep.subr.mxu0 0.0
        %3941 = vmatpush1.msra.mxu0 %v3917
        %3942 = vmatprep.subr.mxu0 0.0
        %3943 = vmatpush1.msra.mxu0 %v3918
        %3944 = vmatprep.subr.mxu0 0.0
        %3945 = vmatpush1.msra.mxu0 %v3919
        %3946 = vmatprep.subr.mxu0 0.0
        %3947 = vmatpush1.msra.mxu0 %v3920
        %3948 = vmatprep.subr.mxu0 0.0
        %3949 = vmatpush1.msra.mxu0 %v3921
        %3950 = vmatprep.subr.mxu0 0.0
        %3951 = vmatpush1.msra.mxu0 %v3922
        %3952 = vmatprep.subr.mxu0 0.0
        %3953 = vmatpush1.msra.mxu0 %v3923
        %3954 = vmatprep.subr.mxu0 0.0
        %3955 = vmatpush1.msra.mxu0 %v3924
        %3956 = vmatprep.subr.mxu0 0.0
        %3957 = vmatpush1.msra.mxu0 %v3925
        %3958 = vmatprep.subr.mxu0 0.0
        %3959 = vmatpush1.msra.mxu0 %v3926
        %3960 = vmatprep.subr.mxu0 0.0
        %3961 = vmatpush1.msra.mxu0 0.0
        %3962 = vmatprep.subr.mxu0 0.0
        %3963 = vmatpush1.msra.mxu0 0.0
        %3964 = vmatprep.subr.mxu0 0.0
        %3965 = vmatpush1.msra.mxu0 0.0
        %3966 = vmatprep.subr.mxu0 0.0
        %3967 = vmatpush1.msra.mxu0 0.0
        %3968 = vmatprep.subr.mxu0 0.0
        %3969 = vmatpush1.msra.mxu0 0.0
        %3970 = vmatprep.subr.mxu0 0.0
        %3971 = vmatpush1.msra.mxu0 0.0
        %3972 = vmatprep.subr.mxu0 0.0
        %3973 = vmatpush1.msra.mxu0 0.0
        %3974 = vmatprep.subr.mxu0 0.0
        %3975 = vmatpush1.msra.mxu0 0.0
        %3976 = vmatprep.subr.mxu0 0.0
        %3977 = vmatpush1.msra.mxu0 0.0
        %3978 = vmatprep.subr.mxu0 0.0
        %3979 = vmatpush1.msra.mxu0 0.0
        %3980 = vmatprep.subr.mxu0 0.0
        %3981 = vmatpush1.msra.mxu0 0.0
        %3982 = vmatprep.subr.mxu0 0.0
        %3983 = vmatpush1.msra.mxu0 0.0
        %3984 = vmatprep.subr.mxu0 0.0
        %3985 = vmatpush1.msra.mxu0 0.0
        %3986 = vmatprep.subr.mxu0 0.0
        %3987 = vmatpush1.msra.mxu0 0.0
        %3988 = vmatprep.subr.mxu0 0.0
        %3989 = vmatpush1.msra.mxu0 0.0
        %3990 = vmatprep.subr.mxu0 0.0
        %3991 = vmatpush1.msra.mxu0 0.0
        %3992 = vmatprep.mubr.f32.mxu0 0.0
        %3993 = vmatmul.mubr.f32.gmra.mrb[0].mxu0 %v3910
        %v3994 = vpop.f32.mrb[0].mxu0
        %v3995 = vadd.f32 %v3927, %v3994
        %v3996 = vpop.f32.mrb[0].mxu0
        %3997 = vdwg.mxu0
        %vm3998 = vcmask 1040384
        %v3999 = vsel %vm3998, %v3995, -inf
        %4000 = vmax.xlane.f32.xlu0 %v3999
        %v4001 = vpop.xlane.xlu0 %4000
        %v4002 = vsub.f32 %v3995, %v4001
        %v4003 = vmul.f32 %v4002, 1.442695
        %v4004 = vpow.pop %v4003
        %v4005 = vsel %vm3998, %v4004, 0.0
        %4006 = vadd.xlane.f32.xlu0 %v4005
        %v4007 = vpop.xlane.xlu0 %4006
        %v4008 = vrcp.pop %v4007
        %v4009 = vmul.f32 %v4004, %v4008
        %4010 = vst [vmem:[%s324] sm:$0x1] %v4009
        %s4011 = sand.u32 %s225, 1
        %s4012 = scalar_lea.sflag [#allocation4], %s4011
        %s4013 = sand.u32 %s225, 1
        %s4014 = scalar_lea.vmem [#allocation3], %s4013
        // Predicated region
        $region57: #{actor_net_forward.1} parent=55 // pred_check
          %p4015 = pneg %p235
        $region58: #{actor_net_forward.1} parent=55 // pred_check_branch
          %4017 = sbr.rel (%p4015) target = $region60
        $region59: #{actor_net_forward.1} parent=55 // pred_region
          %s4019 = ssub.s32 16, 16
          %4020 = vsyncadd %s4012, %s4019
          %s4021 = smul.addr %s23, 16
          %s4022 = scalar_lea.hbm %s9, %s4021
          %s4024 = sshll.u32 %s4014, 4
          %s4025 = int_to_ptr.vmem [resolvable:$true] %s4024
          %4027 = dma.vmem_to_hbm [thread:$0]  %s4025, 16, %s4022, %s4012
        $region60: #{actor_net_forward.1} parent=55 // pred_fallthru
          _
      $region56: #{actor_net_forward.1} parent=5 // pred_fallthru
        _
      %p4028 = scmp.le.s32.totalorder 2, %s18
      // Predicated region
      $region61: #{actor_net_forward.1} parent=5 // pred_check
        %p4029 = pneg %p4028
      $region62: #{actor_net_forward.1} parent=5 // pred_check_branch
        %4031 = sbr.rel (%p4029) target = $region64
      $region63: #{actor_net_forward.1} parent=5 // pred_region
        %s4032 = ssub.s32 %s18, 2
        // Predicated region
        $region65: #{actor_net_forward.1} parent=63 // pred_check
          %p4033 = pneg %p241
        $region66: #{actor_net_forward.1} parent=63 // pred_check_branch
          %4035 = sbr.rel (%p4033) target = $region68
        $region67: #{actor_net_forward.1} parent=63 // pred_region
          %s4036 = sand.u32 %s226, 1
          %s4037 = scalar_lea.sflag [#allocation4], %s4036
          %s4038 = sand.u32 %s226, 1
          %s4039 = scalar_lea.vmem [#allocation3], %s4038
          %4040 = dma.done %s4037, 16
        $region68: #{actor_net_forward.1} parent=63 // pred_fallthru
          _
      $region64: #{actor_net_forward.1} parent=5 // pred_fallthru
        _
    $region6: #{actor_net_forward.1} parent=1 // loop_footer
      %s22 = sadd.s32 1, %s18
    $region7: #{actor_net_forward.1} parent=1 // loop_footer_branch
      %17 = sbr.rel target = $region3
    $region8: #{actor_net_forward.1} parent=1 // loop_exit
      _
    %4041 = vsyncpa [#allocation4], 1
    %s4042 = scalar_lea.sflag [#allocation4], 1
    %4043 = vsyncpa %s4042, 1

</llo_original>
